<compile_context>
chip_gen: v6e
topology: v6e:2x2x1
jax: 0.10.0
libtpu: 0.0.40
codegen_flags: <defaults>
</compile_context>

<pallas_src>
import functools

import jax
import jax.numpy as jnp
from jax.experimental import pallas as pl
from jax.experimental.pallas import tpu as pltpu


def _round_up(x, m):
    return (x + m - 1) // m * m


# ----------------------------------------------------------------------------
# Recurrent LSTM kernel. Grid = (batch_blocks [parallel], time_chunks
# [arbitrary/sequential]). One grid step processes TC timesteps for one batch
# block; only the small recurrent matmul (BB,Hp)x(Hp,4Hp) runs on the MXU here
# (bf16 operands, f32 accumulation). The input projection (embedding gather)
# is precomputed outside; its bias is folded in-kernel.
# ----------------------------------------------------------------------------
def _lstm_step_kernel(seq_len, padded_time,
                      gx_ref, w_hh_t_ref, b_ref, h0_ref, c0_ref,
                      y_ref, hN_ref, cN_ref,
                      h_sc, c_sc):
    nt = pl.program_id(1)                     # sequential time-chunk index
    Hp = h_sc.shape[-1]
    TC = gx_ref.shape[0]

    # Initialize the carried state from the provided initial state at chunk 0.
    @pl.when(nt == 0)
    def _():
        h_sc[...] = h0_ref[...]
        c_sc[...] = c0_ref[...]

    # W_hh^T lives in VMEM as a single resident copy (memory_space=VMEM spec);
    # hoist the ref read out of the unrolled timestep loop.
    w_hh_t = w_hh_t_ref[...]                  # (Hp, 4Hp)  bf16
    bias = b_ref[...]                         # (1, 4Hp)   f32

    t_base = nt * TC

    # TODO(synk): for very large Hp, split the 4Hp dot into per-gate (Hp,Hp)
    # dots consumed immediately by their activation if vreg spills show up.
    def step(t, carry):
        h = h_sc[...]                         # (BB, Hp) f32
        c = c_sc[...]                         # (BB, Hp) f32

        # gates = x-proj (gathered, bf16) + bias + h @ W_hh^T ; PyTorch gate
        # order [i, f, g, o]; gate slices are lane-aligned (Hp % 128 == 0).
        gates = (jnp.dot(h.astype(jnp.bfloat16), w_hh_t,
                         preferred_element_type=jnp.float32)
                 + gx_ref[t].astype(jnp.float32) + bias)

        i_g = jax.nn.sigmoid(gates[:, 0 * Hp:1 * Hp])
        f_g = jax.nn.sigmoid(gates[:, 1 * Hp:2 * Hp])
        g_g = jnp.tanh(gates[:, 2 * Hp:3 * Hp])
        o_g = jax.nn.sigmoid(gates[:, 3 * Hp:4 * Hp])

        c_new = f_g * c + i_g * g_g
        h_new = o_g * jnp.tanh(c_new)

        if padded_time:
            # Ragged tail: padded timesteps must not advance the carried state.
            valid = (t_base + t) < seq_len
            h_sc[...] = jnp.where(valid, h_new, h)
            c_sc[...] = jnp.where(valid, c_new, c)
        else:
            h_sc[...] = h_new
            c_sc[...] = c_new
        y_ref[t] = h_new.astype(y_ref.dtype)  # lane-dense (BB, Hp) bf16 store
        return carry

    jax.lax.fori_loop(0, TC, step, 0, unroll=True)

    # Emit the final state on the last time chunk (per batch block).
    @pl.when(nt == pl.num_programs(1) - 1)
    def _():
        hN_ref[...] = h_sc[...]
        cN_ref[...] = c_sc[...]


# ----------------------------------------------------------------------------
# Output projection kernel: (T*Bp, Hp) x (Hp, Vp) tiled over (M, N); bf16
# operands, f32 accumulate, bias add fused.
# ----------------------------------------------------------------------------
def _proj_kernel(y_ref, w_ref, b_ref, o_ref):
    o_ref[...] = (
        jnp.dot(y_ref[...], w_ref[...], preferred_element_type=jnp.float32)
        + b_ref[...]
    )


@jax.jit
def rnn_model_forward(inputs, h0, c0, params):
    """inputs: (B, T) int32 token ids; h0/c0: (1, B, H); params: LSTM+Linear weights.

    Returns (output, (h, c)) with output: (T*B, V) f32, h/c: (1, B, H) f32.
    """
    w_ih, w_hh, b_ih, b_hh, w_lin, b_lin = (
        params["w_ih"], params["w_hh"], params["b_ih"], params["b_hh"],
        params["w_lin"], params["b_lin"],
    )
    V = w_ih.shape[1]
    H = w_hh.shape[1]
    B, T = inputs.shape

    LANE, SUB = 128, 8
    Hp = _round_up(H, LANE)        # per-gate hidden, lane-aligned
    Bp = _round_up(B, SUB)         # sublane-aligned batch
    Vp = _round_up(V, LANE)        # lane-aligned vocab (projection)
    dH = Hp - H

    # Batch blocking: 2 blocks when the padded batch allows it, so the
    # "parallel" grid axis can use v7x's second TensorCore; harmless on 1-TC
    # chips (tiny extra per-grid-step overhead).
    NB = 2 if (Bp % (2 * SUB) == 0) else 1
    BB = Bp // NB

    # Time chunking: as large as a ~4 MiB bf16 gates_x block allows, capped at
    # 32, no divisibility requirement on T (cdiv + in-kernel guard).
    gx_bytes_per_t = BB * 4 * Hp * 2          # bf16
    TC = max(1, min(32, (4 * 1024 * 1024) // gx_bytes_per_t))
    TC = min(TC, T)
    NT = pl.cdiv(T, TC)
    Tp = NT * TC

    # ---- pad weights gate-wise so the 4*Hp layout keeps PyTorch [i,f,g,o] ----
    w_ih_p = jnp.pad(w_ih.reshape(4, H, V),
                     ((0, 0), (0, dH), (0, 0))).reshape(4 * Hp, V)
    w_hh_p = jnp.pad(w_hh.reshape(4, H, H),
                     ((0, 0), (0, dH), (0, dH))).reshape(4 * Hp, Hp)
    b_p = jnp.pad((b_ih + b_hh).reshape(4, H),
                  ((0, 0), (0, dH))).reshape(1, 4 * Hp)              # f32
    w_lin_p = jnp.pad(w_lin, ((0, Vp - V), (0, dH)))                 # (Vp, Hp)
    b_lin_p = jnp.pad(b_lin, (0, Vp - V)).reshape(1, Vp)             # f32

    h0_p = jnp.pad(h0.reshape(B, H), ((0, Bp - B), (0, dH)))         # (Bp, Hp)
    c0_p = jnp.pad(c0.reshape(B, H), ((0, Bp - B), (0, dH)))         # (Bp, Hp)

    # ---- input projection hoisted out of the recurrence ----------------------
    # one_hot(ids) @ W_ih^T is just an embedding gather; emitted in bf16 to
    # halve its HBM round trip (bias is added in-kernel instead).
    ids = jnp.pad(inputs, ((0, Bp - B), (0, Tp - T))).T              # (Tp, Bp)
    w_ih_t_bf16 = w_ih_p.T.astype(jnp.bfloat16)                      # (V, 4Hp)
    gates_x = jnp.take(w_ih_t_bf16, ids, axis=0)                     # (Tp,Bp,4Hp) bf16

    w_hh_t_bf16 = w_hh_p.T.astype(jnp.bfloat16)                      # (Hp, 4Hp)

    kernel = functools.partial(_lstm_step_kernel, T, Tp != T)
    y, hN, cN = pl.pallas_call(
        kernel,
        out_shape=(
            jax.ShapeDtypeStruct((Tp, Bp, Hp), jnp.bfloat16),   # hidden states Y
            jax.ShapeDtypeStruct((Bp, Hp), jnp.float32),        # final h
            jax.ShapeDtypeStruct((Bp, Hp), jnp.float32),        # final c
        ),
        grid_spec=pltpu.PrefetchScalarGridSpec(
            num_scalar_prefetch=0,
            grid=(NB, NT),
            in_specs=[
                pl.BlockSpec((TC, BB, 4 * Hp), lambda b, i: (i, b, 0)),   # gates_x chunk
                pl.BlockSpec(memory_space=pltpu.MemorySpace.VMEM),        # W_hh^T (resident, single copy)
                pl.BlockSpec(memory_space=pltpu.MemorySpace.VMEM),        # folded bias
                pl.BlockSpec((BB, Hp), lambda b, i: (b, 0)),              # h0 block
                pl.BlockSpec((BB, Hp), lambda b, i: (b, 0)),              # c0 block
            ],
            out_specs=[
                pl.BlockSpec((TC, BB, Hp), lambda b, i: (i, b, 0)),       # Y chunk
                pl.BlockSpec((BB, Hp), lambda b, i: (b, 0)),              # final h
                pl.BlockSpec((BB, Hp), lambda b, i: (b, 0)),              # final c
            ],
            scratch_shapes=[
                pltpu.VMEM((BB, Hp), jnp.float32),                        # carried h (f32)
                pltpu.VMEM((BB, Hp), jnp.float32),                        # carried c (f32)
            ],
        ),
        compiler_params=pltpu.CompilerParams(
            dimension_semantics=("parallel", "arbitrary"),  # batch ∥ , time sequential
            vmem_limit_bytes=64 * 1024 * 1024,
        ),
    )(gates_x, w_hh_t_bf16, b_p, h0_p, c0_p)

    # ---- output projection: one big tiled matmul over all Tp*Bp rows ----------
    M = Tp * Bp
    # TM chosen from divisors of M (= Bp * k with k | Tp) so no pad/copy of Y
    # is needed; up to 512 rows per tile.
    TM = Bp
    for k in range(Tp, 0, -1):
        if Tp % k == 0 and Bp * k <= 512:
            TM = Bp * k
            break
    TN = 128
    for cand in (512, 256, 128):
        if Vp % cand == 0:
            TN = cand
            break

    y2 = y.reshape(M, Hp)                                    # free reshape, no pad

    logits_p = pl.pallas_call(
        _proj_kernel,
        out_shape=jax.ShapeDtypeStruct((M, Vp), jnp.float32),
        grid_spec=pltpu.PrefetchScalarGridSpec(
            num_scalar_prefetch=0,
            grid=(M // TM, Vp // TN),
            in_specs=[
                pl.BlockSpec((TM, Hp), lambda i, j: (i, 0)),          # Y rows (bf16)
                pl.BlockSpec((Hp, TN), lambda i, j: (0, j)),          # W_out cols (bf16)
                pl.BlockSpec((1, TN), lambda i, j: (0, j)),           # b_out (f32)
            ],
            out_specs=pl.BlockSpec((TM, TN), lambda i, j: (i, j)),
        ),
        compiler_params=pltpu.CompilerParams(
            dimension_semantics=("parallel", "parallel"),
        ),
    )(y2, w_lin_p.T.astype(jnp.bfloat16), b_lin_p)

    # Strip padding, restore (T*B, V) row order (t-major, then b).
    logits = logits_p.reshape(Tp, Bp, Vp)[:T, :B, :V].reshape(T * B, V)
    hN = hN[:B, :H].reshape(1, B, H)
    cN = cN[:B, :H].reshape(1, B, H)
    return logits, (hN, cN)


def _reference_forward(inputs, h0, c0, params):
    """Pure-JAX f32 reference (lax.scan) mirroring torch.nn.LSTM + nn.Linear."""
    w_ih, w_hh, b_ih, b_hh, w_lin, b_lin = (
        params["w_ih"], params["w_hh"], params["b_ih"], params["b_hh"],
        params["w_lin"], params["b_lin"],
    )
    V = w_ih.shape[1]
    H = w_hh.shape[1]
    x = jax.nn.one_hot(inputs.T, V, dtype=jnp.float32)        # (T, B, V)

    def step(carry, x_t):
        h, c = carry
        gates = x_t @ w_ih.T + h @ w_hh.T + b_ih + b_hh
        i = jax.nn.sigmoid(gates[:, 0 * H:1 * H])
        f = jax.nn.sigmoid(gates[:, 1 * H:2 * H])
        g = jnp.tanh(gates[:, 2 * H:3 * H])
        o = jax.nn.sigmoid(gates[:, 3 * H:4 * H])
        c = f * c + i * g
        h = o * jnp.tanh(c)
        return (h, c), h

    (hN, cN), ys = jax.lax.scan(step, (h0[0], c0[0]), x)
    out = ys.reshape(-1, H) @ w_lin.T + b_lin
    return out, (hN[None], cN[None])


if __name__ == "__main__":
    # Small deterministic setup; intentionally non-aligned (V=100, H=96, B=5,
    # T=12) to exercise the internal lane/sublane/time padding paths.
    V, H, B, T = 100, 96, 5, 12
    key = jax.random.PRNGKey(0)
    k = jax.random.split(key, 8)

    scale = 1.0 / jnp.sqrt(H)
    params = {
        "w_ih": jax.random.uniform(k[0], (4 * H, V), jnp.float32, -scale, scale),
        "w_hh": jax.random.uniform(k[1], (4 * H, H), jnp.float32, -scale, scale),
        "b_ih": jax.random.uniform(k[2], (4 * H,), jnp.float32, -scale, scale),
        "b_hh": jax.random.uniform(k[3], (4 * H,), jnp.float32, -scale, scale),
        "w_lin": jax.random.uniform(k[4], (V, H), jnp.float32, -scale, scale),
        "b_lin": jax.random.uniform(k[5], (V,), jnp.float32, -scale, scale),
    }

    inputs = jax.random.randint(k[6], (B, T), 0, V, dtype=jnp.int32)   # (batch, seq)
    h0 = jnp.zeros((1, B, H), jnp.float32)   # num_directions * num_layers = 1
    c0 = jnp.zeros((1, B, H), jnp.float32)

    out, (hN, cN) = rnn_model_forward(inputs, h0, c0, params)
    jax.block_until_ready((out, hN, cN))

    # Correctness check against a pure-f32 JAX reference. Tolerances loosened
    # because MXU operands (W_hh, W_ih gather, Y, W_out) are bf16 (f32 accum).
    out_ref, (h_ref, c_ref) = _reference_forward(inputs, h0, c0, params)
    assert out.shape == (T * B, V) and hN.shape == (1, B, H) and cN.shape == (1, B, H)
    assert jnp.allclose(out, out_ref, atol=3e-2, rtol=2e-2), "logits mismatch"
    assert jnp.allclose(hN, h_ref, atol=3e-2, rtol=2e-2), "h state mismatch"
    assert jnp.allclose(cN, c_ref, atol=3e-2, rtol=2e-2), "c state mismatch"

    print("KERNEL_OK")
</pallas_src>

<mosaic_0001>
module attributes {stable_mosaic.version = 11 : i64} {
  func.func @_lstm_step_kernel(%arg0: i32, %arg1: i32, %arg2: memref<12x8x512xbf16, #tpu.memory_space<vmem>>, %arg3: memref<128x512xbf16, #tpu.memory_space<vmem>>, %arg4: memref<1x512xf32, #tpu.memory_space<vmem>>, %arg5: memref<8x128xf32, #tpu.memory_space<vmem>>, %arg6: memref<8x128xf32, #tpu.memory_space<vmem>>, %arg7: memref<12x8x128xbf16, #tpu.memory_space<vmem>>, %arg8: memref<8x128xf32, #tpu.memory_space<vmem>>, %arg9: memref<8x128xf32, #tpu.memory_space<vmem>>, %arg10: memref<8x128xf32, #tpu.memory_space<vmem>>, %arg11: memref<8x128xf32, #tpu.memory_space<vmem>>) attributes {dimension_semantics = [#tpu.dimension_semantics<parallel>, #tpu.dimension_semantics<arbitrary>], iteration_bounds = array<i64: 1, 1>, scalar_prefetch = 0 : i64, scratch_operands = 2 : i64, tpu.core_type = #tpu.core_type<tc>, window_params = [{transform_indices = @transform_0, window_bounds = array<i64: 12, 8, 512>}, {pipeline_mode = #tpu.pipeline_mode<synchronous>, transform_indices = @transform_1, window_bounds = array<i64: 128, 512>}, {pipeline_mode = #tpu.pipeline_mode<synchronous>, transform_indices = @transform_2, window_bounds = array<i64: 1, 512>}, {transform_indices = @transform_3, window_bounds = array<i64: 8, 128>}, {transform_indices = @transform_4, window_bounds = array<i64: 8, 128>}, {transform_indices = @transform_5, window_bounds = array<i64: 12, 8, 128>}, {transform_indices = @transform_6, window_bounds = array<i64: 8, 128>}, {transform_indices = @transform_7, window_bounds = array<i64: 8, 128>}]} {
    %c0_i32 = arith.constant 0 : i32
    %0 = arith.cmpi eq, %arg1, %c0_i32 : i32
    %1 = arith.extui %0 : i1 to i32
    %c0_i32_0 = arith.constant 0 : i32
    %2 = arith.cmpi ne, %1, %c0_i32_0 : i32
    scf.if %2 {
      %c0_198 = arith.constant 0 : index
      %c0_199 = arith.constant 0 : index
      %524 = vector.load %arg5[%c0_198, %c0_199] : memref<8x128xf32, #tpu.memory_space<vmem>>, vector<8x128xf32>
      %c0_200 = arith.constant 0 : index
      %c0_201 = arith.constant 0 : index
      %525 = vector.load %arg10[%c0_200, %c0_201] : memref<8x128xf32, #tpu.memory_space<vmem>>, vector<8x128xf32>
      tpu.vector_store %arg10[%c0_200, %c0_201], %524 {strides = array<i32>} : memref<8x128xf32, #tpu.memory_space<vmem>>, vector<8x128xf32>,
      %c0_202 = arith.constant 0 : index
      %c0_203 = arith.constant 0 : index
      %526 = vector.load %arg6[%c0_202, %c0_203] : memref<8x128xf32, #tpu.memory_space<vmem>>, vector<8x128xf32>
      %c0_204 = arith.constant 0 : index
      %c0_205 = arith.constant 0 : index
      %527 = vector.load %arg11[%c0_204, %c0_205] : memref<8x128xf32, #tpu.memory_space<vmem>>, vector<8x128xf32>
      tpu.vector_store %arg11[%c0_204, %c0_205], %526 {strides = array<i32>} : memref<8x128xf32, #tpu.memory_space<vmem>>, vector<8x128xf32>,
    } else {
    }
    %c0 = arith.constant 0 : index
    %c0_1 = arith.constant 0 : index
    %3 = vector.load %arg3[%c0, %c0_1] : memref<128x512xbf16, #tpu.memory_space<vmem>>, vector<128x512xbf16>
    %c0_2 = arith.constant 0 : index
    %c0_3 = arith.constant 0 : index
    %4 = vector.load %arg4[%c0_2, %c0_3] : memref<1x512xf32, #tpu.memory_space<vmem>>, vector<1x512xf32>
    %c0_i32_4 = arith.constant 0 : i32
    %c0_5 = arith.constant 0 : index
    %c0_6 = arith.constant 0 : index
    %5 = vector.load %arg10[%c0_5, %c0_6] : memref<8x128xf32, #tpu.memory_space<vmem>>, vector<8x128xf32>
    %c0_7 = arith.constant 0 : index
    %c0_8 = arith.constant 0 : index
    %6 = vector.load %arg11[%c0_7, %c0_8] : memref<8x128xf32, #tpu.memory_space<vmem>>, vector<8x128xf32>
    %7 = arith.truncf %5 : vector<8x128xf32> to vector<8x128xbf16>
    %cst = arith.constant dense<0.000000e+00> : vector<8x512xf32>
    %8 = tpu.matmul %7, %3, %cst {dimension_numbers = #tpu.dot_dimension_numbers<[1], [0], [0], [1], [0, 0, 1, 1], [], []>} : vector<8x128xbf16>, vector<128x512xbf16>, vector<8x512xf32> -> vector<8x512xf32>
    %9 = arith.index_cast %c0_i32_4 : i32 to index
    %c0_9 = arith.constant 0 : index
    %c0_10 = arith.constant 0 : index
    %10 = vector.load %arg2[%9, %c0_9, %c0_10] : memref<12x8x512xbf16, #tpu.memory_space<vmem>>, vector<1x8x512xbf16>
    %11 = vector.shape_cast %10 : vector<1x8x512xbf16> to vector<8x512xbf16>
    %12 = arith.extf %11 : vector<8x512xbf16> to vector<8x512xf32>
    %13 = arith.addf %8, %12 : vector<8x512xf32>
    %14 = vector.broadcast %4 : vector<1x512xf32> to vector<8x512xf32>
    %15 = arith.addf %13, %14 : vector<8x512xf32>
    %16 = vector.extract_strided_slice %15 {offsets = [0, 0], sizes = [8, 128], strides = [1, 1]} : vector<8x512xf32> to vector<8x128xf32>
    %17 = arith.negf %16 : vector<8x128xf32>
    %18 = math.exp %17 : vector<8x128xf32>
    %cst_11 = arith.constant 1.000000e+00 : f32
    %19 = vector.broadcast %cst_11 : f32 to vector<8x128xf32>
    %20 = arith.addf %19, %18 : vector<8x128xf32>
    %21 = arith.divf %19, %20 : vector<8x128xf32>
    %22 = vector.extract_strided_slice %15 {offsets = [0, 128], sizes = [8, 128], strides = [1, 1]} : vector<8x512xf32> to vector<8x128xf32>
    %23 = arith.negf %22 : vector<8x128xf32>
    %24 = math.exp %23 : vector<8x128xf32>
    %cst_12 = arith.constant 1.000000e+00 : f32
    %25 = vector.broadcast %cst_12 : f32 to vector<8x128xf32>
    %26 = arith.addf %25, %24 : vector<8x128xf32>
    %27 = arith.divf %25, %26 : vector<8x128xf32>
    %28 = vector.extract_strided_slice %15 {offsets = [0, 256], sizes = [8, 128], strides = [1, 1]} : vector<8x512xf32> to vector<8x128xf32>
    %29 = math.tanh %28 : vector<8x128xf32>
    %30 = vector.extract_strided_slice %15 {offsets = [0, 384], sizes = [8, 128], strides = [1, 1]} : vector<8x512xf32> to vector<8x128xf32>
    %31 = arith.negf %30 : vector<8x128xf32>
    %32 = math.exp %31 : vector<8x128xf32>
    %cst_13 = arith.constant 1.000000e+00 : f32
    %33 = vector.broadcast %cst_13 : f32 to vector<8x128xf32>
    %34 = arith.addf %33, %32 : vector<8x128xf32>
    %35 = arith.divf %33, %34 : vector<8x128xf32>
    %36 = arith.mulf %27, %6 : vector<8x128xf32>
    %37 = arith.mulf %21, %29 : vector<8x128xf32>
    %38 = arith.addf %36, %37 : vector<8x128xf32>
    %39 = math.tanh %38 : vector<8x128xf32>
    %40 = arith.mulf %35, %39 : vector<8x128xf32>
    %c0_14 = arith.constant 0 : index
    %c0_15 = arith.constant 0 : index
    %41 = vector.load %arg10[%c0_14, %c0_15] : memref<8x128xf32, #tpu.memory_space<vmem>>, vector<8x128xf32>
    tpu.vector_store %arg10[%c0_14, %c0_15], %40 {strides = array<i32>} : memref<8x128xf32, #tpu.memory_space<vmem>>, vector<8x128xf32>,
    %c0_16 = arith.constant 0 : index
    %c0_17 = arith.constant 0 : index
    %42 = vector.load %arg11[%c0_16, %c0_17] : memref<8x128xf32, #tpu.memory_space<vmem>>, vector<8x128xf32>
    tpu.vector_store %arg11[%c0_16, %c0_17], %38 {strides = array<i32>} : memref<8x128xf32, #tpu.memory_space<vmem>>, vector<8x128xf32>,
    %43 = arith.truncf %40 : vector<8x128xf32> to vector<8x128xbf16>
    %44 = arith.index_cast %c0_i32_4 : i32 to index
    %c0_18 = arith.constant 0 : index
    %c0_19 = arith.constant 0 : index
    %45 = vector.load %arg7[%44, %c0_18, %c0_19] : memref<12x8x128xbf16, #tpu.memory_space<vmem>>, vector<1x8x128xbf16>
    %46 = vector.shape_cast %45 : vector<1x8x128xbf16> to vector<8x128xbf16>
    %47 = vector.shape_cast %43 : vector<8x128xbf16> to vector<1x8x128xbf16>
    tpu.vector_store %arg7[%44, %c0_18, %c0_19], %47 {strides = array<i32>} : memref<12x8x128xbf16, #tpu.memory_space<vmem>>, vector<1x8x128xbf16>,
    %c1_i32 = arith.constant 1 : i32
    %c0_20 = arith.constant 0 : index
    %c0_21 = arith.constant 0 : index
    %48 = vector.load %arg10[%c0_20, %c0_21] : memref<8x128xf32, #tpu.memory_space<vmem>>, vector<8x128xf32>
    %c0_22 = arith.constant 0 : index
    %c0_23 = arith.constant 0 : index
    %49 = vector.load %arg11[%c0_22, %c0_23] : memref<8x128xf32, #tpu.memory_space<vmem>>, vector<8x128xf32>
    %50 = arith.truncf %48 : vector<8x128xf32> to vector<8x128xbf16>
    %cst_24 = arith.constant dense<0.000000e+00> : vector<8x512xf32>
    %51 = tpu.matmul %50, %3, %cst_24 {dimension_numbers = #tpu.dot_dimension_numbers<[1], [0], [0], [1], [0, 0, 1, 1], [], []>} : vector<8x128xbf16>, vector<128x512xbf16>, vector<8x512xf32> -> vector<8x512xf32>
    %52 = arith.index_cast %c1_i32 : i32 to index
    %c0_25 = arith.constant 0 : index
    %c0_26 = arith.constant 0 : index
    %53 = vector.load %arg2[%52, %c0_25, %c0_26] : memref<12x8x512xbf16, #tpu.memory_space<vmem>>, vector<1x8x512xbf16>
    %54 = vector.shape_cast %53 : vector<1x8x512xbf16> to vector<8x512xbf16>
    %55 = arith.extf %54 : vector<8x512xbf16> to vector<8x512xf32>
    %56 = arith.addf %51, %55 : vector<8x512xf32>
    %57 = vector.broadcast %4 : vector<1x512xf32> to vector<8x512xf32>
    %58 = arith.addf %56, %57 : vector<8x512xf32>
    %59 = vector.extract_strided_slice %58 {offsets = [0, 0], sizes = [8, 128], strides = [1, 1]} : vector<8x512xf32> to vector<8x128xf32>
    %60 = arith.negf %59 : vector<8x128xf32>
    %61 = math.exp %60 : vector<8x128xf32>
    %cst_27 = arith.constant 1.000000e+00 : f32
    %62 = vector.broadcast %cst_27 : f32 to vector<8x128xf32>
    %63 = arith.addf %62, %61 : vector<8x128xf32>
    %64 = arith.divf %62, %63 : vector<8x128xf32>
    %65 = vector.extract_strided_slice %58 {offsets = [0, 128], sizes = [8, 128], strides = [1, 1]} : vector<8x512xf32> to vector<8x128xf32>
    %66 = arith.negf %65 : vector<8x128xf32>
    %67 = math.exp %66 : vector<8x128xf32>
    %cst_28 = arith.constant 1.000000e+00 : f32
    %68 = vector.broadcast %cst_28 : f32 to vector<8x128xf32>
    %69 = arith.addf %68, %67 : vector<8x128xf32>
    %70 = arith.divf %68, %69 : vector<8x128xf32>
    %71 = vector.extract_strided_slice %58 {offsets = [0, 256], sizes = [8, 128], strides = [1, 1]} : vector<8x512xf32> to vector<8x128xf32>
    %72 = math.tanh %71 : vector<8x128xf32>
    %73 = vector.extract_strided_slice %58 {offsets = [0, 384], sizes = [8, 128], strides = [1, 1]} : vector<8x512xf32> to vector<8x128xf32>
    %74 = arith.negf %73 : vector<8x128xf32>
    %75 = math.exp %74 : vector<8x128xf32>
    %cst_29 = arith.constant 1.000000e+00 : f32
    %76 = vector.broadcast %cst_29 : f32 to vector<8x128xf32>
    %77 = arith.addf %76, %75 : vector<8x128xf32>
    %78 = arith.divf %76, %77 : vector<8x128xf32>
    %79 = arith.mulf %70, %49 : vector<8x128xf32>
    %80 = arith.mulf %64, %72 : vector<8x128xf32>
    %81 = arith.addf %79, %80 : vector<8x128xf32>
    %82 = math.tanh %81 : vector<8x128xf32>
    %83 = arith.mulf %78, %82 : vector<8x128xf32>
    %c0_30 = arith.constant 0 : index
    %c0_31 = arith.constant 0 : index
    %84 = vector.load %arg10[%c0_30, %c0_31] : memref<8x128xf32, #tpu.memory_space<vmem>>, vector<8x128xf32>
    tpu.vector_store %arg10[%c0_30, %c0_31], %83 {strides = array<i32>} : memref<8x128xf32, #tpu.memory_space<vmem>>, vector<8x128xf32>,
    %c0_32 = arith.constant 0 : index
    %c0_33 = arith.constant 0 : index
    %85 = vector.load %arg11[%c0_32, %c0_33] : memref<8x128xf32, #tpu.memory_space<vmem>>, vector<8x128xf32>
    tpu.vector_store %arg11[%c0_32, %c0_33], %81 {strides = array<i32>} : memref<8x128xf32, #tpu.memory_space<vmem>>, vector<8x128xf32>,
    %86 = arith.truncf %83 : vector<8x128xf32> to vector<8x128xbf16>
    %87 = arith.index_cast %c1_i32 : i32 to index
    %c0_34 = arith.constant 0 : index
    %c0_35 = arith.constant 0 : index
    %88 = vector.load %arg7[%87, %c0_34, %c0_35] : memref<12x8x128xbf16, #tpu.memory_space<vmem>>, vector<1x8x128xbf16>
    %89 = vector.shape_cast %88 : vector<1x8x128xbf16> to vector<8x128xbf16>
    %90 = vector.shape_cast %86 : vector<8x128xbf16> to vector<1x8x128xbf16>
    tpu.vector_store %arg7[%87, %c0_34, %c0_35], %90 {strides = array<i32>} : memref<12x8x128xbf16, #tpu.memory_space<vmem>>, vector<1x8x128xbf16>,
    %c2_i32 = arith.constant 2 : i32
    %c0_36 = arith.constant 0 : index
    %c0_37 = arith.constant 0 : index
    %91 = vector.load %arg10[%c0_36, %c0_37] : memref<8x128xf32, #tpu.memory_space<vmem>>, vector<8x128xf32>
    %c0_38 = arith.constant 0 : index
    %c0_39 = arith.constant 0 : index
    %92 = vector.load %arg11[%c0_38, %c0_39] : memref<8x128xf32, #tpu.memory_space<vmem>>, vector<8x128xf32>
    %93 = arith.truncf %91 : vector<8x128xf32> to vector<8x128xbf16>
    %cst_40 = arith.constant dense<0.000000e+00> : vector<8x512xf32>
    %94 = tpu.matmul %93, %3, %cst_40 {dimension_numbers = #tpu.dot_dimension_numbers<[1], [0], [0], [1], [0, 0, 1, 1], [], []>} : vector<8x128xbf16>, vector<128x512xbf16>, vector<8x512xf32> -> vector<8x512xf32>
    %95 = arith.index_cast %c2_i32 : i32 to index
    %c0_41 = arith.constant 0 : index
    %c0_42 = arith.constant 0 : index
    %96 = vector.load %arg2[%95, %c0_41, %c0_42] : memref<12x8x512xbf16, #tpu.memory_space<vmem>>, vector<1x8x512xbf16>
    %97 = vector.shape_cast %96 : vector<1x8x512xbf16> to vector<8x512xbf16>
    %98 = arith.extf %97 : vector<8x512xbf16> to vector<8x512xf32>
    %99 = arith.addf %94, %98 : vector<8x512xf32>
    %100 = vector.broadcast %4 : vector<1x512xf32> to vector<8x512xf32>
    %101 = arith.addf %99, %100 : vector<8x512xf32>
    %102 = vector.extract_strided_slice %101 {offsets = [0, 0], sizes = [8, 128], strides = [1, 1]} : vector<8x512xf32> to vector<8x128xf32>
    %103 = arith.negf %102 : vector<8x128xf32>
    %104 = math.exp %103 : vector<8x128xf32>
    %cst_43 = arith.constant 1.000000e+00 : f32
    %105 = vector.broadcast %cst_43 : f32 to vector<8x128xf32>
    %106 = arith.addf %105, %104 : vector<8x128xf32>
    %107 = arith.divf %105, %106 : vector<8x128xf32>
    %108 = vector.extract_strided_slice %101 {offsets = [0, 128], sizes = [8, 128], strides = [1, 1]} : vector<8x512xf32> to vector<8x128xf32>
    %109 = arith.negf %108 : vector<8x128xf32>
    %110 = math.exp %109 : vector<8x128xf32>
    %cst_44 = arith.constant 1.000000e+00 : f32
    %111 = vector.broadcast %cst_44 : f32 to vector<8x128xf32>
    %112 = arith.addf %111, %110 : vector<8x128xf32>
    %113 = arith.divf %111, %112 : vector<8x128xf32>
    %114 = vector.extract_strided_slice %101 {offsets = [0, 256], sizes = [8, 128], strides = [1, 1]} : vector<8x512xf32> to vector<8x128xf32>
    %115 = math.tanh %114 : vector<8x128xf32>
    %116 = vector.extract_strided_slice %101 {offsets = [0, 384], sizes = [8, 128], strides = [1, 1]} : vector<8x512xf32> to vector<8x128xf32>
    %117 = arith.negf %116 : vector<8x128xf32>
    %118 = math.exp %117 : vector<8x128xf32>
    %cst_45 = arith.constant 1.000000e+00 : f32
    %119 = vector.broadcast %cst_45 : f32 to vector<8x128xf32>
    %120 = arith.addf %119, %118 : vector<8x128xf32>
    %121 = arith.divf %119, %120 : vector<8x128xf32>
    %122 = arith.mulf %113, %92 : vector<8x128xf32>
    %123 = arith.mulf %107, %115 : vector<8x128xf32>
    %124 = arith.addf %122, %123 : vector<8x128xf32>
    %125 = math.tanh %124 : vector<8x128xf32>
    %126 = arith.mulf %121, %125 : vector<8x128xf32>
    %c0_46 = arith.constant 0 : index
    %c0_47 = arith.constant 0 : index
    %127 = vector.load %arg10[%c0_46, %c0_47] : memref<8x128xf32, #tpu.memory_space<vmem>>, vector<8x128xf32>
    tpu.vector_store %arg10[%c0_46, %c0_47], %126 {strides = array<i32>} : memref<8x128xf32, #tpu.memory_space<vmem>>, vector<8x128xf32>,
    %c0_48 = arith.constant 0 : index
    %c0_49 = arith.constant 0 : index
    %128 = vector.load %arg11[%c0_48, %c0_49] : memref<8x128xf32, #tpu.memory_space<vmem>>, vector<8x128xf32>
    tpu.vector_store %arg11[%c0_48, %c0_49], %124 {strides = array<i32>} : memref<8x128xf32, #tpu.memory_space<vmem>>, vector<8x128xf32>,
    %129 = arith.truncf %126 : vector<8x128xf32> to vector<8x128xbf16>
    %130 = arith.index_cast %c2_i32 : i32 to index
    %c0_50 = arith.constant 0 : index
    %c0_51 = arith.constant 0 : index
    %131 = vector.load %arg7[%130, %c0_50, %c0_51] : memref<12x8x128xbf16, #tpu.memory_space<vmem>>, vector<1x8x128xbf16>
    %132 = vector.shape_cast %131 : vector<1x8x128xbf16> to vector<8x128xbf16>
    %133 = vector.shape_cast %129 : vector<8x128xbf16> to vector<1x8x128xbf16>
    tpu.vector_store %arg7[%130, %c0_50, %c0_51], %133 {strides = array<i32>} : memref<12x8x128xbf16, #tpu.memory_space<vmem>>, vector<1x8x128xbf16>,
    %c3_i32 = arith.constant 3 : i32
    %c0_52 = arith.constant 0 : index
    %c0_53 = arith.constant 0 : index
    %134 = vector.load %arg10[%c0_52, %c0_53] : memref<8x128xf32, #tpu.memory_space<vmem>>, vector<8x128xf32>
    %c0_54 = arith.constant 0 : index
    %c0_55 = arith.constant 0 : index
    %135 = vector.load %arg11[%c0_54, %c0_55] : memref<8x128xf32, #tpu.memory_space<vmem>>, vector<8x128xf32>
    %136 = arith.truncf %134 : vector<8x128xf32> to vector<8x128xbf16>
    %cst_56 = arith.constant dense<0.000000e+00> : vector<8x512xf32>
    %137 = tpu.matmul %136, %3, %cst_56 {dimension_numbers = #tpu.dot_dimension_numbers<[1], [0], [0], [1], [0, 0, 1, 1], [], []>} : vector<8x128xbf16>, vector<128x512xbf16>, vector<8x512xf32> -> vector<8x512xf32>
    %138 = arith.index_cast %c3_i32 : i32 to index
    %c0_57 = arith.constant 0 : index
    %c0_58 = arith.constant 0 : index
    %139 = vector.load %arg2[%138, %c0_57, %c0_58] : memref<12x8x512xbf16, #tpu.memory_space<vmem>>, vector<1x8x512xbf16>
    %140 = vector.shape_cast %139 : vector<1x8x512xbf16> to vector<8x512xbf16>
    %141 = arith.extf %140 : vector<8x512xbf16> to vector<8x512xf32>
    %142 = arith.addf %137, %141 : vector<8x512xf32>
    %143 = vector.broadcast %4 : vector<1x512xf32> to vector<8x512xf32>
    %144 = arith.addf %142, %143 : vector<8x512xf32>
    %145 = vector.extract_strided_slice %144 {offsets = [0, 0], sizes = [8, 128], strides = [1, 1]} : vector<8x512xf32> to vector<8x128xf32>
    %146 = arith.negf %145 : vector<8x128xf32>
    %147 = math.exp %146 : vector<8x128xf32>
    %cst_59 = arith.constant 1.000000e+00 : f32
    %148 = vector.broadcast %cst_59 : f32 to vector<8x128xf32>
    %149 = arith.addf %148, %147 : vector<8x128xf32>
    %150 = arith.divf %148, %149 : vector<8x128xf32>
    %151 = vector.extract_strided_slice %144 {offsets = [0, 128], sizes = [8, 128], strides = [1, 1]} : vector<8x512xf32> to vector<8x128xf32>
    %152 = arith.negf %151 : vector<8x128xf32>
    %153 = math.exp %152 : vector<8x128xf32>
    %cst_60 = arith.constant 1.000000e+00 : f32
    %154 = vector.broadcast %cst_60 : f32 to vector<8x128xf32>
    %155 = arith.addf %154, %153 : vector<8x128xf32>
    %156 = arith.divf %154, %155 : vector<8x128xf32>
    %157 = vector.extract_strided_slice %144 {offsets = [0, 256], sizes = [8, 128], strides = [1, 1]} : vector<8x512xf32> to vector<8x128xf32>
    %158 = math.tanh %157 : vector<8x128xf32>
    %159 = vector.extract_strided_slice %144 {offsets = [0, 384], sizes = [8, 128], strides = [1, 1]} : vector<8x512xf32> to vector<8x128xf32>
    %160 = arith.negf %159 : vector<8x128xf32>
    %161 = math.exp %160 : vector<8x128xf32>
    %cst_61 = arith.constant 1.000000e+00 : f32
    %162 = vector.broadcast %cst_61 : f32 to vector<8x128xf32>
    %163 = arith.addf %162, %161 : vector<8x128xf32>
    %164 = arith.divf %162, %163 : vector<8x128xf32>
    %165 = arith.mulf %156, %135 : vector<8x128xf32>
    %166 = arith.mulf %150, %158 : vector<8x128xf32>
    %167 = arith.addf %165, %166 : vector<8x128xf32>
    %168 = math.tanh %167 : vector<8x128xf32>
    %169 = arith.mulf %164, %168 : vector<8x128xf32>
    %c0_62 = arith.constant 0 : index
    %c0_63 = arith.constant 0 : index
    %170 = vector.load %arg10[%c0_62, %c0_63] : memref<8x128xf32, #tpu.memory_space<vmem>>, vector<8x128xf32>
    tpu.vector_store %arg10[%c0_62, %c0_63], %169 {strides = array<i32>} : memref<8x128xf32, #tpu.memory_space<vmem>>, vector<8x128xf32>,
    %c0_64 = arith.constant 0 : index
    %c0_65 = arith.constant 0 : index
    %171 = vector.load %arg11[%c0_64, %c0_65] : memref<8x128xf32, #tpu.memory_space<vmem>>, vector<8x128xf32>
    tpu.vector_store %arg11[%c0_64, %c0_65], %167 {strides = array<i32>} : memref<8x128xf32, #tpu.memory_space<vmem>>, vector<8x128xf32>,
    %172 = arith.truncf %169 : vector<8x128xf32> to vector<8x128xbf16>
    %173 = arith.index_cast %c3_i32 : i32 to index
    %c0_66 = arith.constant 0 : index
    %c0_67 = arith.constant 0 : index
    %174 = vector.load %arg7[%173, %c0_66, %c0_67] : memref<12x8x128xbf16, #tpu.memory_space<vmem>>, vector<1x8x128xbf16>
    %175 = vector.shape_cast %174 : vector<1x8x128xbf16> to vector<8x128xbf16>
    %176 = vector.shape_cast %172 : vector<8x128xbf16> to vector<1x8x128xbf16>
    tpu.vector_store %arg7[%173, %c0_66, %c0_67], %176 {strides = array<i32>} : memref<12x8x128xbf16, #tpu.memory_space<vmem>>, vector<1x8x128xbf16>,
    %c4_i32 = arith.constant 4 : i32
    %c0_68 = arith.constant 0 : index
    %c0_69 = arith.constant 0 : index
    %177 = vector.load %arg10[%c0_68, %c0_69] : memref<8x128xf32, #tpu.memory_space<vmem>>, vector<8x128xf32>
    %c0_70 = arith.constant 0 : index
    %c0_71 = arith.constant 0 : index
    %178 = vector.load %arg11[%c0_70, %c0_71] : memref<8x128xf32, #tpu.memory_space<vmem>>, vector<8x128xf32>
    %179 = arith.truncf %177 : vector<8x128xf32> to vector<8x128xbf16>
    %cst_72 = arith.constant dense<0.000000e+00> : vector<8x512xf32>
    %180 = tpu.matmul %179, %3, %cst_72 {dimension_numbers = #tpu.dot_dimension_numbers<[1], [0], [0], [1], [0, 0, 1, 1], [], []>} : vector<8x128xbf16>, vector<128x512xbf16>, vector<8x512xf32> -> vector<8x512xf32>
    %181 = arith.index_cast %c4_i32 : i32 to index
    %c0_73 = arith.constant 0 : index
    %c0_74 = arith.constant 0 : index
    %182 = vector.load %arg2[%181, %c0_73, %c0_74] : memref<12x8x512xbf16, #tpu.memory_space<vmem>>, vector<1x8x512xbf16>
    %183 = vector.shape_cast %182 : vector<1x8x512xbf16> to vector<8x512xbf16>
    %184 = arith.extf %183 : vector<8x512xbf16> to vector<8x512xf32>
    %185 = arith.addf %180, %184 : vector<8x512xf32>
    %186 = vector.broadcast %4 : vector<1x512xf32> to vector<8x512xf32>
    %187 = arith.addf %185, %186 : vector<8x512xf32>
    %188 = vector.extract_strided_slice %187 {offsets = [0, 0], sizes = [8, 128], strides = [1, 1]} : vector<8x512xf32> to vector<8x128xf32>
    %189 = arith.negf %188 : vector<8x128xf32>
    %190 = math.exp %189 : vector<8x128xf32>
    %cst_75 = arith.constant 1.000000e+00 : f32
    %191 = vector.broadcast %cst_75 : f32 to vector<8x128xf32>
    %192 = arith.addf %191, %190 : vector<8x128xf32>
    %193 = arith.divf %191, %192 : vector<8x128xf32>
    %194 = vector.extract_strided_slice %187 {offsets = [0, 128], sizes = [8, 128], strides = [1, 1]} : vector<8x512xf32> to vector<8x128xf32>
    %195 = arith.negf %194 : vector<8x128xf32>
    %196 = math.exp %195 : vector<8x128xf32>
    %cst_76 = arith.constant 1.000000e+00 : f32
    %197 = vector.broadcast %cst_76 : f32 to vector<8x128xf32>
    %198 = arith.addf %197, %196 : vector<8x128xf32>
    %199 = arith.divf %197, %198 : vector<8x128xf32>
    %200 = vector.extract_strided_slice %187 {offsets = [0, 256], sizes = [8, 128], strides = [1, 1]} : vector<8x512xf32> to vector<8x128xf32>
    %201 = math.tanh %200 : vector<8x128xf32>
    %202 = vector.extract_strided_slice %187 {offsets = [0, 384], sizes = [8, 128], strides = [1, 1]} : vector<8x512xf32> to vector<8x128xf32>
    %203 = arith.negf %202 : vector<8x128xf32>
    %204 = math.exp %203 : vector<8x128xf32>
    %cst_77 = arith.constant 1.000000e+00 : f32
    %205 = vector.broadcast %cst_77 : f32 to vector<8x128xf32>
    %206 = arith.addf %205, %204 : vector<8x128xf32>
    %207 = arith.divf %205, %206 : vector<8x128xf32>
    %208 = arith.mulf %199, %178 : vector<8x128xf32>
    %209 = arith.mulf %193, %201 : vector<8x128xf32>
    %210 = arith.addf %208, %209 : vector<8x128xf32>
    %211 = math.tanh %210 : vector<8x128xf32>
    %212 = arith.mulf %207, %211 : vector<8x128xf32>
    %c0_78 = arith.constant 0 : index
    %c0_79 = arith.constant 0 : index
    %213 = vector.load %arg10[%c0_78, %c0_79] : memref<8x128xf32, #tpu.memory_space<vmem>>, vector<8x128xf32>
    tpu.vector_store %arg10[%c0_78, %c0_79], %212 {strides = array<i32>} : memref<8x128xf32, #tpu.memory_space<vmem>>, vector<8x128xf32>,
    %c0_80 = arith.constant 0 : index
    %c0_81 = arith.constant 0 : index
    %214 = vector.load %arg11[%c0_80, %c0_81] : memref<8x128xf32, #tpu.memory_space<vmem>>, vector<8x128xf32>
    tpu.vector_store %arg11[%c0_80, %c0_81], %210 {strides = array<i32>} : memref<8x128xf32, #tpu.memory_space<vmem>>, vector<8x128xf32>,
    %215 = arith.truncf %212 : vector<8x128xf32> to vector<8x128xbf16>
    %216 = arith.index_cast %c4_i32 : i32 to index
    %c0_82 = arith.constant 0 : index
    %c0_83 = arith.constant 0 : index
    %217 = vector.load %arg7[%216, %c0_82, %c0_83] : memref<12x8x128xbf16, #tpu.memory_space<vmem>>, vector<1x8x128xbf16>
    %218 = vector.shape_cast %217 : vector<1x8x128xbf16> to vector<8x128xbf16>
    %219 = vector.shape_cast %215 : vector<8x128xbf16> to vector<1x8x128xbf16>
    tpu.vector_store %arg7[%216, %c0_82, %c0_83], %219 {strides = array<i32>} : memref<12x8x128xbf16, #tpu.memory_space<vmem>>, vector<1x8x128xbf16>,
    %c5_i32 = arith.constant 5 : i32
    %c0_84 = arith.constant 0 : index
    %c0_85 = arith.constant 0 : index
    %220 = vector.load %arg10[%c0_84, %c0_85] : memref<8x128xf32, #tpu.memory_space<vmem>>, vector<8x128xf32>
    %c0_86 = arith.constant 0 : index
    %c0_87 = arith.constant 0 : index
    %221 = vector.load %arg11[%c0_86, %c0_87] : memref<8x128xf32, #tpu.memory_space<vmem>>, vector<8x128xf32>
    %222 = arith.truncf %220 : vector<8x128xf32> to vector<8x128xbf16>
    %cst_88 = arith.constant dense<0.000000e+00> : vector<8x512xf32>
    %223 = tpu.matmul %222, %3, %cst_88 {dimension_numbers = #tpu.dot_dimension_numbers<[1], [0], [0], [1], [0, 0, 1, 1], [], []>} : vector<8x128xbf16>, vector<128x512xbf16>, vector<8x512xf32> -> vector<8x512xf32>
    %224 = arith.index_cast %c5_i32 : i32 to index
    %c0_89 = arith.constant 0 : index
    %c0_90 = arith.constant 0 : index
    %225 = vector.load %arg2[%224, %c0_89, %c0_90] : memref<12x8x512xbf16, #tpu.memory_space<vmem>>, vector<1x8x512xbf16>
    %226 = vector.shape_cast %225 : vector<1x8x512xbf16> to vector<8x512xbf16>
    %227 = arith.extf %226 : vector<8x512xbf16> to vector<8x512xf32>
    %228 = arith.addf %223, %227 : vector<8x512xf32>
    %229 = vector.broadcast %4 : vector<1x512xf32> to vector<8x512xf32>
    %230 = arith.addf %228, %229 : vector<8x512xf32>
    %231 = vector.extract_strided_slice %230 {offsets = [0, 0], sizes = [8, 128], strides = [1, 1]} : vector<8x512xf32> to vector<8x128xf32>
    %232 = arith.negf %231 : vector<8x128xf32>
    %233 = math.exp %232 : vector<8x128xf32>
    %cst_91 = arith.constant 1.000000e+00 : f32
    %234 = vector.broadcast %cst_91 : f32 to vector<8x128xf32>
    %235 = arith.addf %234, %233 : vector<8x128xf32>
    %236 = arith.divf %234, %235 : vector<8x128xf32>
    %237 = vector.extract_strided_slice %230 {offsets = [0, 128], sizes = [8, 128], strides = [1, 1]} : vector<8x512xf32> to vector<8x128xf32>
    %238 = arith.negf %237 : vector<8x128xf32>
    %239 = math.exp %238 : vector<8x128xf32>
    %cst_92 = arith.constant 1.000000e+00 : f32
    %240 = vector.broadcast %cst_92 : f32 to vector<8x128xf32>
    %241 = arith.addf %240, %239 : vector<8x128xf32>
    %242 = arith.divf %240, %241 : vector<8x128xf32>
    %243 = vector.extract_strided_slice %230 {offsets = [0, 256], sizes = [8, 128], strides = [1, 1]} : vector<8x512xf32> to vector<8x128xf32>
    %244 = math.tanh %243 : vector<8x128xf32>
    %245 = vector.extract_strided_slice %230 {offsets = [0, 384], sizes = [8, 128], strides = [1, 1]} : vector<8x512xf32> to vector<8x128xf32>
    %246 = arith.negf %245 : vector<8x128xf32>
    %247 = math.exp %246 : vector<8x128xf32>
    %cst_93 = arith.constant 1.000000e+00 : f32
    %248 = vector.broadcast %cst_93 : f32 to vector<8x128xf32>
    %249 = arith.addf %248, %247 : vector<8x128xf32>
    %250 = arith.divf %248, %249 : vector<8x128xf32>
    %251 = arith.mulf %242, %221 : vector<8x128xf32>
    %252 = arith.mulf %236, %244 : vector<8x128xf32>
    %253 = arith.addf %251, %252 : vector<8x128xf32>
    %254 = math.tanh %253 : vector<8x128xf32>
    %255 = arith.mulf %250, %254 : vector<8x128xf32>
    %c0_94 = arith.constant 0 : index
    %c0_95 = arith.constant 0 : index
    %256 = vector.load %arg10[%c0_94, %c0_95] : memref<8x128xf32, #tpu.memory_space<vmem>>, vector<8x128xf32>
    tpu.vector_store %arg10[%c0_94, %c0_95], %255 {strides = array<i32>} : memref<8x128xf32, #tpu.memory_space<vmem>>, vector<8x128xf32>,
    %c0_96 = arith.constant 0 : index
    %c0_97 = arith.constant 0 : index
    %257 = vector.load %arg11[%c0_96, %c0_97] : memref<8x128xf32, #tpu.memory_space<vmem>>, vector<8x128xf32>
    tpu.vector_store %arg11[%c0_96, %c0_97], %253 {strides = array<i32>} : memref<8x128xf32, #tpu.memory_space<vmem>>, vector<8x128xf32>,
    %258 = arith.truncf %255 : vector<8x128xf32> to vector<8x128xbf16>
    %259 = arith.index_cast %c5_i32 : i32 to index
    %c0_98 = arith.constant 0 : index
    %c0_99 = arith.constant 0 : index
    %260 = vector.load %arg7[%259, %c0_98, %c0_99] : memref<12x8x128xbf16, #tpu.memory_space<vmem>>, vector<1x8x128xbf16>
    %261 = vector.shape_cast %260 : vector<1x8x128xbf16> to vector<8x128xbf16>
    %262 = vector.shape_cast %258 : vector<8x128xbf16> to vector<1x8x128xbf16>
    tpu.vector_store %arg7[%259, %c0_98, %c0_99], %262 {strides = array<i32>} : memref<12x8x128xbf16, #tpu.memory_space<vmem>>, vector<1x8x128xbf16>,
    %c6_i32 = arith.constant 6 : i32
    %c0_100 = arith.constant 0 : index
    %c0_101 = arith.constant 0 : index
    %263 = vector.load %arg10[%c0_100, %c0_101] : memref<8x128xf32, #tpu.memory_space<vmem>>, vector<8x128xf32>
    %c0_102 = arith.constant 0 : index
    %c0_103 = arith.constant 0 : index
    %264 = vector.load %arg11[%c0_102, %c0_103] : memref<8x128xf32, #tpu.memory_space<vmem>>, vector<8x128xf32>
    %265 = arith.truncf %263 : vector<8x128xf32> to vector<8x128xbf16>
    %cst_104 = arith.constant dense<0.000000e+00> : vector<8x512xf32>
    %266 = tpu.matmul %265, %3, %cst_104 {dimension_numbers = #tpu.dot_dimension_numbers<[1], [0], [0], [1], [0, 0, 1, 1], [], []>} : vector<8x128xbf16>, vector<128x512xbf16>, vector<8x512xf32> -> vector<8x512xf32>
    %267 = arith.index_cast %c6_i32 : i32 to index
    %c0_105 = arith.constant 0 : index
    %c0_106 = arith.constant 0 : index
    %268 = vector.load %arg2[%267, %c0_105, %c0_106] : memref<12x8x512xbf16, #tpu.memory_space<vmem>>, vector<1x8x512xbf16>
    %269 = vector.shape_cast %268 : vector<1x8x512xbf16> to vector<8x512xbf16>
    %270 = arith.extf %269 : vector<8x512xbf16> to vector<8x512xf32>
    %271 = arith.addf %266, %270 : vector<8x512xf32>
    %272 = vector.broadcast %4 : vector<1x512xf32> to vector<8x512xf32>
    %273 = arith.addf %271, %272 : vector<8x512xf32>
    %274 = vector.extract_strided_slice %273 {offsets = [0, 0], sizes = [8, 128], strides = [1, 1]} : vector<8x512xf32> to vector<8x128xf32>
    %275 = arith.negf %274 : vector<8x128xf32>
    %276 = math.exp %275 : vector<8x128xf32>
    %cst_107 = arith.constant 1.000000e+00 : f32
    %277 = vector.broadcast %cst_107 : f32 to vector<8x128xf32>
    %278 = arith.addf %277, %276 : vector<8x128xf32>
    %279 = arith.divf %277, %278 : vector<8x128xf32>
    %280 = vector.extract_strided_slice %273 {offsets = [0, 128], sizes = [8, 128], strides = [1, 1]} : vector<8x512xf32> to vector<8x128xf32>
    %281 = arith.negf %280 : vector<8x128xf32>
    %282 = math.exp %281 : vector<8x128xf32>
    %cst_108 = arith.constant 1.000000e+00 : f32
    %283 = vector.broadcast %cst_108 : f32 to vector<8x128xf32>
    %284 = arith.addf %283, %282 : vector<8x128xf32>
    %285 = arith.divf %283, %284 : vector<8x128xf32>
    %286 = vector.extract_strided_slice %273 {offsets = [0, 256], sizes = [8, 128], strides = [1, 1]} : vector<8x512xf32> to vector<8x128xf32>
    %287 = math.tanh %286 : vector<8x128xf32>
    %288 = vector.extract_strided_slice %273 {offsets = [0, 384], sizes = [8, 128], strides = [1, 1]} : vector<8x512xf32> to vector<8x128xf32>
    %289 = arith.negf %288 : vector<8x128xf32>
    %290 = math.exp %289 : vector<8x128xf32>
    %cst_109 = arith.constant 1.000000e+00 : f32
    %291 = vector.broadcast %cst_109 : f32 to vector<8x128xf32>
    %292 = arith.addf %291, %290 : vector<8x128xf32>
    %293 = arith.divf %291, %292 : vector<8x128xf32>
    %294 = arith.mulf %285, %264 : vector<8x128xf32>
    %295 = arith.mulf %279, %287 : vector<8x128xf32>
    %296 = arith.addf %294, %295 : vector<8x128xf32>
    %297 = math.tanh %296 : vector<8x128xf32>
    %298 = arith.mulf %293, %297 : vector<8x128xf32>
    %c0_110 = arith.constant 0 : index
    %c0_111 = arith.constant 0 : index
    %299 = vector.load %arg10[%c0_110, %c0_111] : memref<8x128xf32, #tpu.memory_space<vmem>>, vector<8x128xf32>
    tpu.vector_store %arg10[%c0_110, %c0_111], %298 {strides = array<i32>} : memref<8x128xf32, #tpu.memory_space<vmem>>, vector<8x128xf32>,
    %c0_112 = arith.constant 0 : index
    %c0_113 = arith.constant 0 : index
    %300 = vector.load %arg11[%c0_112, %c0_113] : memref<8x128xf32, #tpu.memory_space<vmem>>, vector<8x128xf32>
    tpu.vector_store %arg11[%c0_112, %c0_113], %296 {strides = array<i32>} : memref<8x128xf32, #tpu.memory_space<vmem>>, vector<8x128xf32>,
    %301 = arith.truncf %298 : vector<8x128xf32> to vector<8x128xbf16>
    %302 = arith.index_cast %c6_i32 : i32 to index
    %c0_114 = arith.constant 0 : index
    %c0_115 = arith.constant 0 : index
    %303 = vector.load %arg7[%302, %c0_114, %c0_115] : memref<12x8x128xbf16, #tpu.memory_space<vmem>>, vector<1x8x128xbf16>
    %304 = vector.shape_cast %303 : vector<1x8x128xbf16> to vector<8x128xbf16>
    %305 = vector.shape_cast %301 : vector<8x128xbf16> to vector<1x8x128xbf16>
    tpu.vector_store %arg7[%302, %c0_114, %c0_115], %305 {strides = array<i32>} : memref<12x8x128xbf16, #tpu.memory_space<vmem>>, vector<1x8x128xbf16>,
    %c7_i32 = arith.constant 7 : i32
    %c0_116 = arith.constant 0 : index
    %c0_117 = arith.constant 0 : index
    %306 = vector.load %arg10[%c0_116, %c0_117] : memref<8x128xf32, #tpu.memory_space<vmem>>, vector<8x128xf32>
    %c0_118 = arith.constant 0 : index
    %c0_119 = arith.constant 0 : index
    %307 = vector.load %arg11[%c0_118, %c0_119] : memref<8x128xf32, #tpu.memory_space<vmem>>, vector<8x128xf32>
    %308 = arith.truncf %306 : vector<8x128xf32> to vector<8x128xbf16>
    %cst_120 = arith.constant dense<0.000000e+00> : vector<8x512xf32>
    %309 = tpu.matmul %308, %3, %cst_120 {dimension_numbers = #tpu.dot_dimension_numbers<[1], [0], [0], [1], [0, 0, 1, 1], [], []>} : vector<8x128xbf16>, vector<128x512xbf16>, vector<8x512xf32> -> vector<8x512xf32>
    %310 = arith.index_cast %c7_i32 : i32 to index
    %c0_121 = arith.constant 0 : index
    %c0_122 = arith.constant 0 : index
    %311 = vector.load %arg2[%310, %c0_121, %c0_122] : memref<12x8x512xbf16, #tpu.memory_space<vmem>>, vector<1x8x512xbf16>
    %312 = vector.shape_cast %311 : vector<1x8x512xbf16> to vector<8x512xbf16>
    %313 = arith.extf %312 : vector<8x512xbf16> to vector<8x512xf32>
    %314 = arith.addf %309, %313 : vector<8x512xf32>
    %315 = vector.broadcast %4 : vector<1x512xf32> to vector<8x512xf32>
    %316 = arith.addf %314, %315 : vector<8x512xf32>
    %317 = vector.extract_strided_slice %316 {offsets = [0, 0], sizes = [8, 128], strides = [1, 1]} : vector<8x512xf32> to vector<8x128xf32>
    %318 = arith.negf %317 : vector<8x128xf32>
    %319 = math.exp %318 : vector<8x128xf32>
    %cst_123 = arith.constant 1.000000e+00 : f32
    %320 = vector.broadcast %cst_123 : f32 to vector<8x128xf32>
    %321 = arith.addf %320, %319 : vector<8x128xf32>
    %322 = arith.divf %320, %321 : vector<8x128xf32>
    %323 = vector.extract_strided_slice %316 {offsets = [0, 128], sizes = [8, 128], strides = [1, 1]} : vector<8x512xf32> to vector<8x128xf32>
    %324 = arith.negf %323 : vector<8x128xf32>
    %325 = math.exp %324 : vector<8x128xf32>
    %cst_124 = arith.constant 1.000000e+00 : f32
    %326 = vector.broadcast %cst_124 : f32 to vector<8x128xf32>
    %327 = arith.addf %326, %325 : vector<8x128xf32>
    %328 = arith.divf %326, %327 : vector<8x128xf32>
    %329 = vector.extract_strided_slice %316 {offsets = [0, 256], sizes = [8, 128], strides = [1, 1]} : vector<8x512xf32> to vector<8x128xf32>
    %330 = math.tanh %329 : vector<8x128xf32>
    %331 = vector.extract_strided_slice %316 {offsets = [0, 384], sizes = [8, 128], strides = [1, 1]} : vector<8x512xf32> to vector<8x128xf32>
    %332 = arith.negf %331 : vector<8x128xf32>
    %333 = math.exp %332 : vector<8x128xf32>
    %cst_125 = arith.constant 1.000000e+00 : f32
    %334 = vector.broadcast %cst_125 : f32 to vector<8x128xf32>
    %335 = arith.addf %334, %333 : vector<8x128xf32>
    %336 = arith.divf %334, %335 : vector<8x128xf32>
    %337 = arith.mulf %328, %307 : vector<8x128xf32>
    %338 = arith.mulf %322, %330 : vector<8x128xf32>
    %339 = arith.addf %337, %338 : vector<8x128xf32>
    %340 = math.tanh %339 : vector<8x128xf32>
    %341 = arith.mulf %336, %340 : vector<8x128xf32>
    %c0_126 = arith.constant 0 : index
    %c0_127 = arith.constant 0 : index
    %342 = vector.load %arg10[%c0_126, %c0_127] : memref<8x128xf32, #tpu.memory_space<vmem>>, vector<8x128xf32>
    tpu.vector_store %arg10[%c0_126, %c0_127], %341 {strides = array<i32>} : memref<8x128xf32, #tpu.memory_space<vmem>>, vector<8x128xf32>,
    %c0_128 = arith.constant 0 : index
    %c0_129 = arith.constant 0 : index
    %343 = vector.load %arg11[%c0_128, %c0_129] : memref<8x128xf32, #tpu.memory_space<vmem>>, vector<8x128xf32>
    tpu.vector_store %arg11[%c0_128, %c0_129], %339 {strides = array<i32>} : memref<8x128xf32, #tpu.memory_space<vmem>>, vector<8x128xf32>,
    %344 = arith.truncf %341 : vector<8x128xf32> to vector<8x128xbf16>
    %345 = arith.index_cast %c7_i32 : i32 to index
    %c0_130 = arith.constant 0 : index
    %c0_131 = arith.constant 0 : index
    %346 = vector.load %arg7[%345, %c0_130, %c0_131] : memref<12x8x128xbf16, #tpu.memory_space<vmem>>, vector<1x8x128xbf16>
    %347 = vector.shape_cast %346 : vector<1x8x128xbf16> to vector<8x128xbf16>
    %348 = vector.shape_cast %344 : vector<8x128xbf16> to vector<1x8x128xbf16>
    tpu.vector_store %arg7[%345, %c0_130, %c0_131], %348 {strides = array<i32>} : memref<12x8x128xbf16, #tpu.memory_space<vmem>>, vector<1x8x128xbf16>,
    %c8_i32 = arith.constant 8 : i32
    %c0_132 = arith.constant 0 : index
    %c0_133 = arith.constant 0 : index
    %349 = vector.load %arg10[%c0_132, %c0_133] : memref<8x128xf32, #tpu.memory_space<vmem>>, vector<8x128xf32>
    %c0_134 = arith.constant 0 : index
    %c0_135 = arith.constant 0 : index
    %350 = vector.load %arg11[%c0_134, %c0_135] : memref<8x128xf32, #tpu.memory_space<vmem>>, vector<8x128xf32>
    %351 = arith.truncf %349 : vector<8x128xf32> to vector<8x128xbf16>
    %cst_136 = arith.constant dense<0.000000e+00> : vector<8x512xf32>
    %352 = tpu.matmul %351, %3, %cst_136 {dimension_numbers = #tpu.dot_dimension_numbers<[1], [0], [0], [1], [0, 0, 1, 1], [], []>} : vector<8x128xbf16>, vector<128x512xbf16>, vector<8x512xf32> -> vector<8x512xf32>
    %353 = arith.index_cast %c8_i32 : i32 to index
    %c0_137 = arith.constant 0 : index
    %c0_138 = arith.constant 0 : index
    %354 = vector.load %arg2[%353, %c0_137, %c0_138] : memref<12x8x512xbf16, #tpu.memory_space<vmem>>, vector<1x8x512xbf16>
    %355 = vector.shape_cast %354 : vector<1x8x512xbf16> to vector<8x512xbf16>
    %356 = arith.extf %355 : vector<8x512xbf16> to vector<8x512xf32>
    %357 = arith.addf %352, %356 : vector<8x512xf32>
    %358 = vector.broadcast %4 : vector<1x512xf32> to vector<8x512xf32>
    %359 = arith.addf %357, %358 : vector<8x512xf32>
    %360 = vector.extract_strided_slice %359 {offsets = [0, 0], sizes = [8, 128], strides = [1, 1]} : vector<8x512xf32> to vector<8x128xf32>
    %361 = arith.negf %360 : vector<8x128xf32>
    %362 = math.exp %361 : vector<8x128xf32>
    %cst_139 = arith.constant 1.000000e+00 : f32
    %363 = vector.broadcast %cst_139 : f32 to vector<8x128xf32>
    %364 = arith.addf %363, %362 : vector<8x128xf32>
    %365 = arith.divf %363, %364 : vector<8x128xf32>
    %366 = vector.extract_strided_slice %359 {offsets = [0, 128], sizes = [8, 128], strides = [1, 1]} : vector<8x512xf32> to vector<8x128xf32>
    %367 = arith.negf %366 : vector<8x128xf32>
    %368 = math.exp %367 : vector<8x128xf32>
    %cst_140 = arith.constant 1.000000e+00 : f32
    %369 = vector.broadcast %cst_140 : f32 to vector<8x128xf32>
    %370 = arith.addf %369, %368 : vector<8x128xf32>
    %371 = arith.divf %369, %370 : vector<8x128xf32>
    %372 = vector.extract_strided_slice %359 {offsets = [0, 256], sizes = [8, 128], strides = [1, 1]} : vector<8x512xf32> to vector<8x128xf32>
    %373 = math.tanh %372 : vector<8x128xf32>
    %374 = vector.extract_strided_slice %359 {offsets = [0, 384], sizes = [8, 128], strides = [1, 1]} : vector<8x512xf32> to vector<8x128xf32>
    %375 = arith.negf %374 : vector<8x128xf32>
    %376 = math.exp %375 : vector<8x128xf32>
    %cst_141 = arith.constant 1.000000e+00 : f32
    %377 = vector.broadcast %cst_141 : f32 to vector<8x128xf32>
    %378 = arith.addf %377, %376 : vector<8x128xf32>
    %379 = arith.divf %377, %378 : vector<8x128xf32>
    %380 = arith.mulf %371, %350 : vector<8x128xf32>
    %381 = arith.mulf %365, %373 : vector<8x128xf32>
    %382 = arith.addf %380, %381 : vector<8x128xf32>
    %383 = math.tanh %382 : vector<8x128xf32>
    %384 = arith.mulf %379, %383 : vector<8x128xf32>
    %c0_142 = arith.constant 0 : index
    %c0_143 = arith.constant 0 : index
    %385 = vector.load %arg10[%c0_142, %c0_143] : memref<8x128xf32, #tpu.memory_space<vmem>>, vector<8x128xf32>
    tpu.vector_store %arg10[%c0_142, %c0_143], %384 {strides = array<i32>} : memref<8x128xf32, #tpu.memory_space<vmem>>, vector<8x128xf32>,
    %c0_144 = arith.constant 0 : index
    %c0_145 = arith.constant 0 : index
    %386 = vector.load %arg11[%c0_144, %c0_145] : memref<8x128xf32, #tpu.memory_space<vmem>>, vector<8x128xf32>
    tpu.vector_store %arg11[%c0_144, %c0_145], %382 {strides = array<i32>} : memref<8x128xf32, #tpu.memory_space<vmem>>, vector<8x128xf32>,
    %387 = arith.truncf %384 : vector<8x128xf32> to vector<8x128xbf16>
    %388 = arith.index_cast %c8_i32 : i32 to index
    %c0_146 = arith.constant 0 : index
    %c0_147 = arith.constant 0 : index
    %389 = vector.load %arg7[%388, %c0_146, %c0_147] : memref<12x8x128xbf16, #tpu.memory_space<vmem>>, vector<1x8x128xbf16>
    %390 = vector.shape_cast %389 : vector<1x8x128xbf16> to vector<8x128xbf16>
    %391 = vector.shape_cast %387 : vector<8x128xbf16> to vector<1x8x128xbf16>
    tpu.vector_store %arg7[%388, %c0_146, %c0_147], %391 {strides = array<i32>} : memref<12x8x128xbf16, #tpu.memory_space<vmem>>, vector<1x8x128xbf16>,
    %c9_i32 = arith.constant 9 : i32
    %c0_148 = arith.constant 0 : index
    %c0_149 = arith.constant 0 : index
    %392 = vector.load %arg10[%c0_148, %c0_149] : memref<8x128xf32, #tpu.memory_space<vmem>>, vector<8x128xf32>
    %c0_150 = arith.constant 0 : index
    %c0_151 = arith.constant 0 : index
    %393 = vector.load %arg11[%c0_150, %c0_151] : memref<8x128xf32, #tpu.memory_space<vmem>>, vector<8x128xf32>
    %394 = arith.truncf %392 : vector<8x128xf32> to vector<8x128xbf16>
    %cst_152 = arith.constant dense<0.000000e+00> : vector<8x512xf32>
    %395 = tpu.matmul %394, %3, %cst_152 {dimension_numbers = #tpu.dot_dimension_numbers<[1], [0], [0], [1], [0, 0, 1, 1], [], []>} : vector<8x128xbf16>, vector<128x512xbf16>, vector<8x512xf32> -> vector<8x512xf32>
    %396 = arith.index_cast %c9_i32 : i32 to index
    %c0_153 = arith.constant 0 : index
    %c0_154 = arith.constant 0 : index
    %397 = vector.load %arg2[%396, %c0_153, %c0_154] : memref<12x8x512xbf16, #tpu.memory_space<vmem>>, vector<1x8x512xbf16>
    %398 = vector.shape_cast %397 : vector<1x8x512xbf16> to vector<8x512xbf16>
    %399 = arith.extf %398 : vector<8x512xbf16> to vector<8x512xf32>
    %400 = arith.addf %395, %399 : vector<8x512xf32>
    %401 = vector.broadcast %4 : vector<1x512xf32> to vector<8x512xf32>
    %402 = arith.addf %400, %401 : vector<8x512xf32>
    %403 = vector.extract_strided_slice %402 {offsets = [0, 0], sizes = [8, 128], strides = [1, 1]} : vector<8x512xf32> to vector<8x128xf32>
    %404 = arith.negf %403 : vector<8x128xf32>
    %405 = math.exp %404 : vector<8x128xf32>
    %cst_155 = arith.constant 1.000000e+00 : f32
    %406 = vector.broadcast %cst_155 : f32 to vector<8x128xf32>
    %407 = arith.addf %406, %405 : vector<8x128xf32>
    %408 = arith.divf %406, %407 : vector<8x128xf32>
    %409 = vector.extract_strided_slice %402 {offsets = [0, 128], sizes = [8, 128], strides = [1, 1]} : vector<8x512xf32> to vector<8x128xf32>
    %410 = arith.negf %409 : vector<8x128xf32>
    %411 = math.exp %410 : vector<8x128xf32>
    %cst_156 = arith.constant 1.000000e+00 : f32
    %412 = vector.broadcast %cst_156 : f32 to vector<8x128xf32>
    %413 = arith.addf %412, %411 : vector<8x128xf32>
    %414 = arith.divf %412, %413 : vector<8x128xf32>
    %415 = vector.extract_strided_slice %402 {offsets = [0, 256], sizes = [8, 128], strides = [1, 1]} : vector<8x512xf32> to vector<8x128xf32>
    %416 = math.tanh %415 : vector<8x128xf32>
    %417 = vector.extract_strided_slice %402 {offsets = [0, 384], sizes = [8, 128], strides = [1, 1]} : vector<8x512xf32> to vector<8x128xf32>
    %418 = arith.negf %417 : vector<8x128xf32>
    %419 = math.exp %418 : vector<8x128xf32>
    %cst_157 = arith.constant 1.000000e+00 : f32
    %420 = vector.broadcast %cst_157 : f32 to vector<8x128xf32>
    %421 = arith.addf %420, %419 : vector<8x128xf32>
    %422 = arith.divf %420, %421 : vector<8x128xf32>
    %423 = arith.mulf %414, %393 : vector<8x128xf32>
    %424 = arith.mulf %408, %416 : vector<8x128xf32>
    %425 = arith.addf %423, %424 : vector<8x128xf32>
    %426 = math.tanh %425 : vector<8x128xf32>
    %427 = arith.mulf %422, %426 : vector<8x128xf32>
    %c0_158 = arith.constant 0 : index
    %c0_159 = arith.constant 0 : index
    %428 = vector.load %arg10[%c0_158, %c0_159] : memref<8x128xf32, #tpu.memory_space<vmem>>, vector<8x128xf32>
    tpu.vector_store %arg10[%c0_158, %c0_159], %427 {strides = array<i32>} : memref<8x128xf32, #tpu.memory_space<vmem>>, vector<8x128xf32>,
    %c0_160 = arith.constant 0 : index
    %c0_161 = arith.constant 0 : index
    %429 = vector.load %arg11[%c0_160, %c0_161] : memref<8x128xf32, #tpu.memory_space<vmem>>, vector<8x128xf32>
    tpu.vector_store %arg11[%c0_160, %c0_161], %425 {strides = array<i32>} : memref<8x128xf32, #tpu.memory_space<vmem>>, vector<8x128xf32>,
    %430 = arith.truncf %427 : vector<8x128xf32> to vector<8x128xbf16>
    %431 = arith.index_cast %c9_i32 : i32 to index
    %c0_162 = arith.constant 0 : index
    %c0_163 = arith.constant 0 : index
    %432 = vector.load %arg7[%431, %c0_162, %c0_163] : memref<12x8x128xbf16, #tpu.memory_space<vmem>>, vector<1x8x128xbf16>
    %433 = vector.shape_cast %432 : vector<1x8x128xbf16> to vector<8x128xbf16>
    %434 = vector.shape_cast %430 : vector<8x128xbf16> to vector<1x8x128xbf16>
    tpu.vector_store %arg7[%431, %c0_162, %c0_163], %434 {strides = array<i32>} : memref<12x8x128xbf16, #tpu.memory_space<vmem>>, vector<1x8x128xbf16>,
    %c10_i32 = arith.constant 10 : i32
    %c0_164 = arith.constant 0 : index
    %c0_165 = arith.constant 0 : index
    %435 = vector.load %arg10[%c0_164, %c0_165] : memref<8x128xf32, #tpu.memory_space<vmem>>, vector<8x128xf32>
    %c0_166 = arith.constant 0 : index
    %c0_167 = arith.constant 0 : index
    %436 = vector.load %arg11[%c0_166, %c0_167] : memref<8x128xf32, #tpu.memory_space<vmem>>, vector<8x128xf32>
    %437 = arith.truncf %435 : vector<8x128xf32> to vector<8x128xbf16>
    %cst_168 = arith.constant dense<0.000000e+00> : vector<8x512xf32>
    %438 = tpu.matmul %437, %3, %cst_168 {dimension_numbers = #tpu.dot_dimension_numbers<[1], [0], [0], [1], [0, 0, 1, 1], [], []>} : vector<8x128xbf16>, vector<128x512xbf16>, vector<8x512xf32> -> vector<8x512xf32>
    %439 = arith.index_cast %c10_i32 : i32 to index
    %c0_169 = arith.constant 0 : index
    %c0_170 = arith.constant 0 : index
    %440 = vector.load %arg2[%439, %c0_169, %c0_170] : memref<12x8x512xbf16, #tpu.memory_space<vmem>>, vector<1x8x512xbf16>
    %441 = vector.shape_cast %440 : vector<1x8x512xbf16> to vector<8x512xbf16>
    %442 = arith.extf %441 : vector<8x512xbf16> to vector<8x512xf32>
    %443 = arith.addf %438, %442 : vector<8x512xf32>
    %444 = vector.broadcast %4 : vector<1x512xf32> to vector<8x512xf32>
    %445 = arith.addf %443, %444 : vector<8x512xf32>
    %446 = vector.extract_strided_slice %445 {offsets = [0, 0], sizes = [8, 128], strides = [1, 1]} : vector<8x512xf32> to vector<8x128xf32>
    %447 = arith.negf %446 : vector<8x128xf32>
    %448 = math.exp %447 : vector<8x128xf32>
    %cst_171 = arith.constant 1.000000e+00 : f32
    %449 = vector.broadcast %cst_171 : f32 to vector<8x128xf32>
    %450 = arith.addf %449, %448 : vector<8x128xf32>
    %451 = arith.divf %449, %450 : vector<8x128xf32>
    %452 = vector.extract_strided_slice %445 {offsets = [0, 128], sizes = [8, 128], strides = [1, 1]} : vector<8x512xf32> to vector<8x128xf32>
    %453 = arith.negf %452 : vector<8x128xf32>
    %454 = math.exp %453 : vector<8x128xf32>
    %cst_172 = arith.constant 1.000000e+00 : f32
    %455 = vector.broadcast %cst_172 : f32 to vector<8x128xf32>
    %456 = arith.addf %455, %454 : vector<8x128xf32>
    %457 = arith.divf %455, %456 : vector<8x128xf32>
    %458 = vector.extract_strided_slice %445 {offsets = [0, 256], sizes = [8, 128], strides = [1, 1]} : vector<8x512xf32> to vector<8x128xf32>
    %459 = math.tanh %458 : vector<8x128xf32>
    %460 = vector.extract_strided_slice %445 {offsets = [0, 384], sizes = [8, 128], strides = [1, 1]} : vector<8x512xf32> to vector<8x128xf32>
    %461 = arith.negf %460 : vector<8x128xf32>
    %462 = math.exp %461 : vector<8x128xf32>
    %cst_173 = arith.constant 1.000000e+00 : f32
    %463 = vector.broadcast %cst_173 : f32 to vector<8x128xf32>
    %464 = arith.addf %463, %462 : vector<8x128xf32>
    %465 = arith.divf %463, %464 : vector<8x128xf32>
    %466 = arith.mulf %457, %436 : vector<8x128xf32>
    %467 = arith.mulf %451, %459 : vector<8x128xf32>
    %468 = arith.addf %466, %467 : vector<8x128xf32>
    %469 = math.tanh %468 : vector<8x128xf32>
    %470 = arith.mulf %465, %469 : vector<8x128xf32>
    %c0_174 = arith.constant 0 : index
    %c0_175 = arith.constant 0 : index
    %471 = vector.load %arg10[%c0_174, %c0_175] : memref<8x128xf32, #tpu.memory_space<vmem>>, vector<8x128xf32>
    tpu.vector_store %arg10[%c0_174, %c0_175], %470 {strides = array<i32>} : memref<8x128xf32, #tpu.memory_space<vmem>>, vector<8x128xf32>,
    %c0_176 = arith.constant 0 : index
    %c0_177 = arith.constant 0 : index
    %472 = vector.load %arg11[%c0_176, %c0_177] : memref<8x128xf32, #tpu.memory_space<vmem>>, vector<8x128xf32>
    tpu.vector_store %arg11[%c0_176, %c0_177], %468 {strides = array<i32>} : memref<8x128xf32, #tpu.memory_space<vmem>>, vector<8x128xf32>,
    %473 = arith.truncf %470 : vector<8x128xf32> to vector<8x128xbf16>
    %474 = arith.index_cast %c10_i32 : i32 to index
    %c0_178 = arith.constant 0 : index
    %c0_179 = arith.constant 0 : index
    %475 = vector.load %arg7[%474, %c0_178, %c0_179] : memref<12x8x128xbf16, #tpu.memory_space<vmem>>, vector<1x8x128xbf16>
    %476 = vector.shape_cast %475 : vector<1x8x128xbf16> to vector<8x128xbf16>
    %477 = vector.shape_cast %473 : vector<8x128xbf16> to vector<1x8x128xbf16>
    tpu.vector_store %arg7[%474, %c0_178, %c0_179], %477 {strides = array<i32>} : memref<12x8x128xbf16, #tpu.memory_space<vmem>>, vector<1x8x128xbf16>,
    %c11_i32 = arith.constant 11 : i32
    %c0_180 = arith.constant 0 : index
    %c0_181 = arith.constant 0 : index
    %478 = vector.load %arg10[%c0_180, %c0_181] : memref<8x128xf32, #tpu.memory_space<vmem>>, vector<8x128xf32>
    %c0_182 = arith.constant 0 : index
    %c0_183 = arith.constant 0 : index
    %479 = vector.load %arg11[%c0_182, %c0_183] : memref<8x128xf32, #tpu.memory_space<vmem>>, vector<8x128xf32>
    %480 = arith.truncf %478 : vector<8x128xf32> to vector<8x128xbf16>
    %cst_184 = arith.constant dense<0.000000e+00> : vector<8x512xf32>
    %481 = tpu.matmul %480, %3, %cst_184 {dimension_numbers = #tpu.dot_dimension_numbers<[1], [0], [0], [1], [0, 0, 1, 1], [], []>} : vector<8x128xbf16>, vector<128x512xbf16>, vector<8x512xf32> -> vector<8x512xf32>
    %482 = arith.index_cast %c11_i32 : i32 to index
    %c0_185 = arith.constant 0 : index
    %c0_186 = arith.constant 0 : index
    %483 = vector.load %arg2[%482, %c0_185, %c0_186] : memref<12x8x512xbf16, #tpu.memory_space<vmem>>, vector<1x8x512xbf16>
    %484 = vector.shape_cast %483 : vector<1x8x512xbf16> to vector<8x512xbf16>
    %485 = arith.extf %484 : vector<8x512xbf16> to vector<8x512xf32>
    %486 = arith.addf %481, %485 : vector<8x512xf32>
    %487 = vector.broadcast %4 : vector<1x512xf32> to vector<8x512xf32>
    %488 = arith.addf %486, %487 : vector<8x512xf32>
    %489 = vector.extract_strided_slice %488 {offsets = [0, 0], sizes = [8, 128], strides = [1, 1]} : vector<8x512xf32> to vector<8x128xf32>
    %490 = arith.negf %489 : vector<8x128xf32>
    %491 = math.exp %490 : vector<8x128xf32>
    %cst_187 = arith.constant 1.000000e+00 : f32
    %492 = vector.broadcast %cst_187 : f32 to vector<8x128xf32>
    %493 = arith.addf %492, %491 : vector<8x128xf32>
    %494 = arith.divf %492, %493 : vector<8x128xf32>
    %495 = vector.extract_strided_slice %488 {offsets = [0, 128], sizes = [8, 128], strides = [1, 1]} : vector<8x512xf32> to vector<8x128xf32>
    %496 = arith.negf %495 : vector<8x128xf32>
    %497 = math.exp %496 : vector<8x128xf32>
    %cst_188 = arith.constant 1.000000e+00 : f32
    %498 = vector.broadcast %cst_188 : f32 to vector<8x128xf32>
    %499 = arith.addf %498, %497 : vector<8x128xf32>
    %500 = arith.divf %498, %499 : vector<8x128xf32>
    %501 = vector.extract_strided_slice %488 {offsets = [0, 256], sizes = [8, 128], strides = [1, 1]} : vector<8x512xf32> to vector<8x128xf32>
    %502 = math.tanh %501 : vector<8x128xf32>
    %503 = vector.extract_strided_slice %488 {offsets = [0, 384], sizes = [8, 128], strides = [1, 1]} : vector<8x512xf32> to vector<8x128xf32>
    %504 = arith.negf %503 : vector<8x128xf32>
    %505 = math.exp %504 : vector<8x128xf32>
    %cst_189 = arith.constant 1.000000e+00 : f32
    %506 = vector.broadcast %cst_189 : f32 to vector<8x128xf32>
    %507 = arith.addf %506, %505 : vector<8x128xf32>
    %508 = arith.divf %506, %507 : vector<8x128xf32>
    %509 = arith.mulf %500, %479 : vector<8x128xf32>
    %510 = arith.mulf %494, %502 : vector<8x128xf32>
    %511 = arith.addf %509, %510 : vector<8x128xf32>
    %512 = math.tanh %511 : vector<8x128xf32>
    %513 = arith.mulf %508, %512 : vector<8x128xf32>
    %c0_190 = arith.constant 0 : index
    %c0_191 = arith.constant 0 : index
    %514 = vector.load %arg10[%c0_190, %c0_191] : memref<8x128xf32, #tpu.memory_space<vmem>>, vector<8x128xf32>
    tpu.vector_store %arg10[%c0_190, %c0_191], %513 {strides = array<i32>} : memref<8x128xf32, #tpu.memory_space<vmem>>, vector<8x128xf32>,
    %c0_192 = arith.constant 0 : index
    %c0_193 = arith.constant 0 : index
    %515 = vector.load %arg11[%c0_192, %c0_193] : memref<8x128xf32, #tpu.memory_space<vmem>>, vector<8x128xf32>
    tpu.vector_store %arg11[%c0_192, %c0_193], %511 {strides = array<i32>} : memref<8x128xf32, #tpu.memory_space<vmem>>, vector<8x128xf32>,
    %516 = arith.truncf %513 : vector<8x128xf32> to vector<8x128xbf16>
    %517 = arith.index_cast %c11_i32 : i32 to index
    %c0_194 = arith.constant 0 : index
    %c0_195 = arith.constant 0 : index
    %518 = vector.load %arg7[%517, %c0_194, %c0_195] : memref<12x8x128xbf16, #tpu.memory_space<vmem>>, vector<1x8x128xbf16>
    %519 = vector.shape_cast %518 : vector<1x8x128xbf16> to vector<8x128xbf16>
    %520 = vector.shape_cast %516 : vector<8x128xbf16> to vector<1x8x128xbf16>
    tpu.vector_store %arg7[%517, %c0_194, %c0_195], %520 {strides = array<i32>} : memref<12x8x128xbf16, #tpu.memory_space<vmem>>, vector<1x8x128xbf16>,
    %c12_i32 = arith.constant 12 : i32
    %c0_i32_196 = arith.constant 0 : i32
    %521 = arith.cmpi eq, %arg1, %c0_i32_196 : i32
    %522 = arith.extui %521 : i1 to i32
    %c0_i32_197 = arith.constant 0 : i32
    %523 = arith.cmpi ne, %522, %c0_i32_197 : i32
    scf.if %523 {
      %c0_198 = arith.constant 0 : index
      %c0_199 = arith.constant 0 : index
      %524 = vector.load %arg10[%c0_198, %c0_199] : memref<8x128xf32, #tpu.memory_space<vmem>>, vector<8x128xf32>
      %c0_200 = arith.constant 0 : index
      %c0_201 = arith.constant 0 : index
      %525 = vector.load %arg8[%c0_200, %c0_201] : memref<8x128xf32, #tpu.memory_space<vmem>>, vector<8x128xf32>
      tpu.vector_store %arg8[%c0_200, %c0_201], %524 {strides = array<i32>} : memref<8x128xf32, #tpu.memory_space<vmem>>, vector<8x128xf32>,
      %c0_202 = arith.constant 0 : index
      %c0_203 = arith.constant 0 : index
      %526 = vector.load %arg11[%c0_202, %c0_203] : memref<8x128xf32, #tpu.memory_space<vmem>>, vector<8x128xf32>
      %c0_204 = arith.constant 0 : index
      %c0_205 = arith.constant 0 : index
      %527 = vector.load %arg9[%c0_204, %c0_205] : memref<8x128xf32, #tpu.memory_space<vmem>>, vector<8x128xf32>
      tpu.vector_store %arg9[%c0_204, %c0_205], %526 {strides = array<i32>} : memref<8x128xf32, #tpu.memory_space<vmem>>, vector<8x128xf32>,
    } else {
    }
    return
  }
  func.func @transform_0(%arg0: i32, %arg1: i32) -> (i32, i32, i32) {
    %c0_i32 = arith.constant 0 : i32
    %c0_i32_0 = arith.constant 0 : i32
    return %arg1, %arg0, %c0_i32 : i32, i32, i32
  }
  func.func @transform_1(%arg0: i32, %arg1: i32) -> (i32, i32) {
    %c0_i32 = arith.constant 0 : i32
    %c0_i32_0 = arith.constant 0 : i32
    %c0_i32_1 = arith.constant 0 : i32
    return %c0_i32, %c0_i32_0 : i32, i32
  }
  func.func @transform_2(%arg0: i32, %arg1: i32) -> (i32, i32) {
    %c0_i32 = arith.constant 0 : i32
    %c0_i32_0 = arith.constant 0 : i32
    %c0_i32_1 = arith.constant 0 : i32
    return %c0_i32, %c0_i32_0 : i32, i32
  }
  func.func @transform_3(%arg0: i32, %arg1: i32) -> (i32, i32) {
    %c0_i32 = arith.constant 0 : i32
    %c0_i32_0 = arith.constant 0 : i32
    return %arg0, %c0_i32 : i32, i32
  }
  func.func @transform_4(%arg0: i32, %arg1: i32) -> (i32, i32) {
    %c0_i32 = arith.constant 0 : i32
    %c0_i32_0 = arith.constant 0 : i32
    return %arg0, %c0_i32 : i32, i32
  }
  func.func @transform_5(%arg0: i32, %arg1: i32) -> (i32, i32, i32) {
    %c0_i32 = arith.constant 0 : i32
    %c0_i32_0 = arith.constant 0 : i32
    return %arg1, %arg0, %c0_i32 : i32, i32, i32
  }
  func.func @transform_6(%arg0: i32, %arg1: i32) -> (i32, i32) {
    %c0_i32 = arith.constant 0 : i32
    %c0_i32_0 = arith.constant 0 : i32
    return %arg0, %c0_i32 : i32, i32
  }
  func.func @transform_7(%arg0: i32, %arg1: i32) -> (i32, i32) {
    %c0_i32 = arith.constant 0 : i32
    %c0_i32_0 = arith.constant 0 : i32
    return %arg0, %c0_i32 : i32, i32
  }
}

module attributes {stable_mosaic.version = 11 : i64} {
  func.func @_proj_kernel(%arg0: i32, %arg1: i32, %arg2: memref<96x128xbf16, #tpu.memory_space<vmem>>, %arg3: memref<128x128xbf16, #tpu.memory_space<vmem>>, %arg4: memref<1x128xf32, #tpu.memory_space<vmem>>, %arg5: memref<96x128xf32, #tpu.memory_space<vmem>>) attributes {dimension_semantics = [#tpu.dimension_semantics<parallel>, #tpu.dimension_semantics<parallel>], iteration_bounds = array<i64: 1, 1>, scalar_prefetch = 0 : i64, scratch_operands = 0 : i64, tpu.core_type = #tpu.core_type<tc>, window_params = [{transform_indices = @transform_0, window_bounds = array<i64: 96, 128>}, {transform_indices = @transform_1, window_bounds = array<i64: 128, 128>}, {transform_indices = @transform_2, window_bounds = array<i64: 1, 128>}, {transform_indices = @transform_3, window_bounds = array<i64: 96, 128>}]} {
    %c0 = arith.constant 0 : index
    %c0_0 = arith.constant 0 : index
    %0 = vector.load %arg2[%c0, %c0_0] : memref<96x128xbf16, #tpu.memory_space<vmem>>, vector<96x128xbf16>
    %c0_1 = arith.constant 0 : index
    %c0_2 = arith.constant 0 : index
    %1 = vector.load %arg3[%c0_1, %c0_2] : memref<128x128xbf16, #tpu.memory_space<vmem>>, vector<128x128xbf16>
    %cst = arith.constant dense<0.000000e+00> : vector<96x128xf32>
    %2 = tpu.matmul %0, %1, %cst {dimension_numbers = #tpu.dot_dimension_numbers<[1], [0], [0], [1], [0, 0, 1, 1], [], []>} : vector<96x128xbf16>, vector<128x128xbf16>, vector<96x128xf32> -> vector<96x128xf32>
    %c0_3 = arith.constant 0 : index
    %c0_4 = arith.constant 0 : index
    %3 = vector.load %arg4[%c0_3, %c0_4] : memref<1x128xf32, #tpu.memory_space<vmem>>, vector<1x128xf32>
    %4 = vector.broadcast %3 : vector<1x128xf32> to vector<96x128xf32>
    %5 = arith.addf %2, %4 : vector<96x128xf32>
    %c0_5 = arith.constant 0 : index
    %c0_6 = arith.constant 0 : index
    %6 = vector.load %arg5[%c0_5, %c0_6] : memref<96x128xf32, #tpu.memory_space<vmem>>, vector<96x128xf32>
    tpu.vector_store %arg5[%c0_5, %c0_6], %5 {strides = array<i32>} : memref<96x128xf32, #tpu.memory_space<vmem>>, vector<96x128xf32>,
    return
  }
  func.func @transform_0(%arg0: i32, %arg1: i32) -> (i32, i32) {
    %c0_i32 = arith.constant 0 : i32
    %c0_i32_0 = arith.constant 0 : i32
    return %arg0, %c0_i32 : i32, i32
  }
  func.func @transform_1(%arg0: i32, %arg1: i32) -> (i32, i32) {
    %c0_i32 = arith.constant 0 : i32
    %c0_i32_0 = arith.constant 0 : i32
    return %c0_i32, %arg1 : i32, i32
  }
  func.func @transform_2(%arg0: i32, %arg1: i32) -> (i32, i32) {
    %c0_i32 = arith.constant 0 : i32
    %c0_i32_0 = arith.constant 0 : i32
    return %c0_i32, %arg1 : i32, i32
  }
  func.func @transform_3(%arg0: i32, %arg1: i32) -> (i32, i32) {
    %c0_i32 = arith.constant 0 : i32
    return %arg0, %arg1 : i32, i32
  }
}

</mosaic_0001>

<llo_original>
// kernel: rnn_model_forward.3
$region0: #{rnn_model_forward.3}
  #allocation0 [shape = 'u32[]', space=smem, size = 0x4, offset = 0x4, fixed_abs, tag = 'smem constant byte address 0x4 - core index']
  #allocation1 [shape = 'u32[144,128]{1,0:T(1,128)}', space=vmem, size = 0x12000, scoped, tag = 'internal scratch']
  %s0 = inlined_call_operand.vmem [shape: bf16[96,128], index: 0, kind: input, shape index: {}]
  %s1 = inlined_call_operand.vmem [shape: bf16[128,128], index: 1, kind: input, shape index: {}]
  %s2 = inlined_call_operand.vmem [shape: f32[1,128], index: 2, kind: input, shape index: {}]
  %s3 = inlined_call_operand.vmem [shape: f32[96,128], index: 3, kind: output, shape index: {}]
  %s4 = sld [smem:[#allocation0]]
  $region22: #{rnn_model_forward.3} parent=0
    _
  %s6 = ssub.s32 1, %s4
  %s7 = scalar_select 0, %s6, %s4
  // Predicated region
  $region2: #{rnn_model_forward.3} parent=0 // pred_check
    _
  $region3: #{rnn_model_forward.3} parent=0 // pred_check_branch
    %9 = sbr.rel (0) target = $region5
  $region4: #{rnn_model_forward.3} parent=0 // pred_region
    _
  $region5: #{rnn_model_forward.3} parent=0 // pred_fallthru
    _
  // Predicated region
  $region6: #{rnn_model_forward.3} parent=0 // pred_check
    _
  $region7: #{rnn_model_forward.3} parent=0 // pred_check_branch
    %11 = sbr.rel (0) target = $region9
  $region8: #{rnn_model_forward.3} parent=0 // pred_region
    _
  $region9: #{rnn_model_forward.3} parent=0 // pred_fallthru
    _
  // Predicated region
  $region10: #{rnn_model_forward.3} parent=0 // pred_check
    _
  $region11: #{rnn_model_forward.3} parent=0 // pred_check_branch
    %13 = sbr.rel (0) target = $region13
  $region12: #{rnn_model_forward.3} parent=0 // pred_region
    _
  $region13: #{rnn_model_forward.3} parent=0 // pred_fallthru
    _
  %v15 = vld [vmem:[%s0] sm:$0xf]
  %v16 = vld [vmem:[%s0 + $0x4] sm:$0xf]
  %v17 = vld [vmem:[%s0 + $0x8] sm:$0xf]
  %v18 = vld [vmem:[%s0 + $0xc] sm:$0xf]
  %v19 = vld [vmem:[%s0 + $0x10] sm:$0xf]
  %v20 = vld [vmem:[%s0 + $0x14] sm:$0xf]
  %v21 = vld [vmem:[%s0 + $0x18] sm:$0xf]
  %v22 = vld [vmem:[%s0 + $0x1c] sm:$0xf]
  %v23 = vld [vmem:[%s0 + $0x20] sm:$0xf]
  %v24 = vld [vmem:[%s0 + $0x24] sm:$0xf]
  %v25 = vld [vmem:[%s0 + $0x28] sm:$0xf]
  %v26 = vld [vmem:[%s0 + $0x2c] sm:$0xf]
  %v27 = vld [vmem:[%s1] sm:$0xf]
  %v28 = vld [vmem:[%s1 + $0x4] sm:$0xf]
  %v29 = vld [vmem:[%s1 + $0x8] sm:$0xf]
  %v30 = vld [vmem:[%s1 + $0xc] sm:$0xf]
  %v31 = vld [vmem:[%s1 + $0x10] sm:$0xf]
  %v32 = vld [vmem:[%s1 + $0x14] sm:$0xf]
  %v33 = vld [vmem:[%s1 + $0x18] sm:$0xf]
  %v34 = vld [vmem:[%s1 + $0x1c] sm:$0xf]
  %v35 = vld [vmem:[%s1 + $0x20] sm:$0xf]
  %v36 = vld [vmem:[%s1 + $0x24] sm:$0xf]
  %v37 = vld [vmem:[%s1 + $0x28] sm:$0xf]
  %v38 = vld [vmem:[%s1 + $0x2c] sm:$0xf]
  %v39 = vld [vmem:[%s1 + $0x30] sm:$0xf]
  %v40 = vld [vmem:[%s1 + $0x34] sm:$0xf]
  %v41 = vld [vmem:[%s1 + $0x38] sm:$0xf]
  %v42 = vld [vmem:[%s1 + $0x3c] sm:$0xf]
  %v43 = vld [vmem:[%s2] sm:$0x1]
  %v45 = vlaneseq
  %v46 = vshrl.u32 %v45, 7
  %v47 = vsub.s32 0, %v46
  %v48 = vrot.slane %v43, %v47
  %v62 = vunpack.c.l.b16 %v15
  %v63 = vunpack.c.l.b16 %v16
  %v64 = vunpack.c.l.b16 %v17
  %v65 = vunpack.c.l.b16 %v18
  %v66 = vunpack.c.l.b16 %v19
  %v67 = vunpack.c.l.b16 %v20
  %v68 = vunpack.c.l.b16 %v21
  %v69 = vunpack.c.l.b16 %v22
  %v70 = vunpack.c.l.b16 %v23
  %v71 = vunpack.c.l.b16 %v24
  %v72 = vunpack.c.l.b16 %v25
  %v73 = vunpack.c.l.b16 %v26
  %v74 = vpack.c.b16 %v63, %v62
  %v75 = vpack.c.b16 %v65, %v64
  %v76 = vpack.c.b16 %v67, %v66
  %v77 = vpack.c.b16 %v69, %v68
  %v78 = vpack.c.b16 %v71, %v70
  %v79 = vpack.c.b16 %v73, %v72
  %v102 = vunpack.c.l.b16 %v27
  %v103 = vunpack.c.l.b16 %v28
  %v104 = vunpack.c.l.b16 %v29
  %v105 = vunpack.c.l.b16 %v30
  %v106 = vunpack.c.l.b16 %v31
  %v107 = vunpack.c.l.b16 %v32
  %v108 = vunpack.c.l.b16 %v33
  %v109 = vunpack.c.l.b16 %v34
  %v110 = vunpack.c.l.b16 %v35
  %v111 = vunpack.c.l.b16 %v36
  %v112 = vunpack.c.l.b16 %v37
  %v113 = vunpack.c.l.b16 %v38
  %v114 = vunpack.c.l.b16 %v39
  %v115 = vunpack.c.l.b16 %v40
  %v116 = vunpack.c.l.b16 %v41
  %v117 = vunpack.c.l.b16 %v42
  %v118 = vpack.c.b16 %v103, %v102
  %v119 = vpack.c.b16 %v105, %v104
  %v120 = vpack.c.b16 %v107, %v106
  %v121 = vpack.c.b16 %v109, %v108
  %v122 = vpack.c.b16 %v111, %v110
  %v123 = vpack.c.b16 %v113, %v112
  %v124 = vpack.c.b16 %v115, %v114
  %v125 = vpack.c.b16 %v117, %v116
  %134 = vmatprep.subr.bf16.mxu0 0
  %135 = vmatpush1.bf16.msra.mxu0 %v125
  %136 = vmatprep.subr.bf16.mxu0 0
  %137 = vmatpush1.bf16.msra.mxu0 %v124
  %138 = vmatprep.subr.bf16.mxu0 0
  %139 = vmatpush1.bf16.msra.mxu0 %v123
  %140 = vmatprep.subr.bf16.mxu0 0
  %141 = vmatpush1.bf16.msra.mxu0 %v122
  %142 = vmatprep.subr.bf16.mxu0 0
  %143 = vmatpush1.bf16.msra.mxu0 %v121
  %144 = vmatprep.subr.bf16.mxu0 0
  %145 = vmatpush1.bf16.msra.mxu0 %v120
  %146 = vmatprep.subr.bf16.mxu0 0
  %147 = vmatpush1.bf16.msra.mxu0 %v119
  %148 = vmatprep.subr.bf16.mxu0 0
  %149 = vmatpush1.bf16.msra.mxu0 %v118
  %150 = vmatprep.subr.bf16.mxu0 0
  %151 = vmatpush2.bf16.msra.mxu0 0
  %152 = vmatprep.subr.bf16.mxu0 0
  %153 = vmatpush2.bf16.msra.mxu0 0
  %154 = vmatprep.subr.bf16.mxu0 0
  %155 = vmatpush2.bf16.msra.mxu0 0
  %156 = vmatprep.subr.bf16.mxu0 0
  %157 = vmatpush2.bf16.msra.mxu0 0
  %158 = vmatprep.subr.bf16.mxu0 0
  %159 = vmatpush2.bf16.msra.mxu0 0
  %160 = vmatprep.subr.bf16.mxu0 0
  %161 = vmatpush2.bf16.msra.mxu0 0
  %162 = vmatprep.subr.bf16.mxu0 0
  %163 = vmatpush2.bf16.msra.mxu0 0
  %164 = vmatprep.subr.bf16.mxu0 0
  %165 = vmatpush2.bf16.msra.mxu0 0
  %166 = vmatprep.mubr.bf16.mxu0 0
  %167 = vmatmul.mubr.bf16.gmra.mxu0 %v74
  %v168 = vpop.f32.mrf.mxu0
  %v169 = vadd.f32 %v48, %v168
  %v170 = vpop.f32.mrf.mxu0
  %v171 = vpop.f32.mrf.mxu0
  %v172 = vadd.f32 %v48, %v171
  %v173 = vpop.f32.mrf.mxu0
  %174 = vmatprep.mubr.bf16.mxu0 0
  %175 = vmatmul.mubr.bf16.gmra.mxu0 %v75
  %v176 = vpop.f32.mrf.mxu0
  %v177 = vadd.f32 %v48, %v176
  %v178 = vpop.f32.mrf.mxu0
  %v179 = vpop.f32.mrf.mxu0
  %v180 = vadd.f32 %v48, %v179
  %v181 = vpop.f32.mrf.mxu0
  %182 = vmatprep.mubr.bf16.mxu0 0
  %183 = vmatmul.mubr.bf16.gmra.mxu0 %v76
  %v184 = vpop.f32.mrf.mxu0
  %v185 = vadd.f32 %v48, %v184
  %v186 = vpop.f32.mrf.mxu0
  %v187 = vpop.f32.mrf.mxu0
  %v188 = vadd.f32 %v48, %v187
  %v189 = vpop.f32.mrf.mxu0
  %190 = vmatprep.mubr.bf16.mxu0 0
  %191 = vmatmul.mubr.bf16.gmra.mxu0 %v77
  %v192 = vpop.f32.mrf.mxu0
  %v193 = vadd.f32 %v48, %v192
  %v194 = vpop.f32.mrf.mxu0
  %v195 = vpop.f32.mrf.mxu0
  %v196 = vadd.f32 %v48, %v195
  %v197 = vpop.f32.mrf.mxu0
  %198 = vmatprep.mubr.bf16.mxu0 0
  %199 = vmatmul.mubr.bf16.gmra.mxu0 %v78
  %v200 = vpop.f32.mrf.mxu0
  %v201 = vadd.f32 %v48, %v200
  %v202 = vpop.f32.mrf.mxu0
  %v203 = vpop.f32.mrf.mxu0
  %v204 = vadd.f32 %v48, %v203
  %v205 = vpop.f32.mrf.mxu0
  %206 = vmatprep.mubr.bf16.mxu0 0
  %207 = vmatmul.mubr.bf16.gmra.mxu0 %v79
  %v208 = vpop.f32.mrf.mxu0
  %v209 = vadd.f32 %v48, %v208
  %v210 = vpop.f32.mrf.mxu0
  %v211 = vpop.f32.mrf.mxu0
  %v212 = vadd.f32 %v48, %v211
  %v213 = vpop.f32.mrf.mxu0
  %214 = vdwg.mxu0
  %215 = vst [vmem:[%s3] sm:$0xff] %v169
  %216 = vst [vmem:[%s3 + $0x8] sm:$0xff] %v172
  %217 = vst [vmem:[%s3 + $0x10] sm:$0xff] %v177
  %218 = vst [vmem:[%s3 + $0x18] sm:$0xff] %v180
  %219 = vst [vmem:[%s3 + $0x20] sm:$0xff] %v185
  %220 = vst [vmem:[%s3 + $0x28] sm:$0xff] %v188
  %221 = vst [vmem:[%s3 + $0x30] sm:$0xff] %v193
  %222 = vst [vmem:[%s3 + $0x38] sm:$0xff] %v196
  %223 = vst [vmem:[%s3 + $0x40] sm:$0xff] %v201
  %224 = vst [vmem:[%s3 + $0x48] sm:$0xff] %v204
  %225 = vst [vmem:[%s3 + $0x50] sm:$0xff] %v209
  %226 = vst [vmem:[%s3 + $0x58] sm:$0xff] %v212
  // Predicated region
  $region14: #{rnn_model_forward.3} parent=0 // pred_check
    _
  $region15: #{rnn_model_forward.3} parent=0 // pred_check_branch
    %228 = sbr.rel (0) target = $region17
  $region16: #{rnn_model_forward.3} parent=0 // pred_region
    _
  $region17: #{rnn_model_forward.3} parent=0 // pred_fallthru
    _
  // Predicated region
  $region18: #{rnn_model_forward.3} parent=0 // pred_check
    _
  $region19: #{rnn_model_forward.3} parent=0 // pred_check_branch
    %230 = sbr.rel (0) target = $region21
  $region20: #{rnn_model_forward.3} parent=0 // pred_region
    _
  $region21: #{rnn_model_forward.3} parent=0 // pred_fallthru
    _

// kernel: rnn_model_forward.2
$region0: #{rnn_model_forward.2}
  #allocation0 [shape = 'u32[]', space=smem, size = 0x4, offset = 0x4, fixed_abs, tag = 'smem constant byte address 0x4 - core index']
  #allocation1 [shape = 'u32[144,128]{1,0:T(1,128)}', space=vmem, size = 0x12000, scoped, tag = 'internal scratch']
  #allocation2 [shape = 'f32[8,128]{1,0:T(8,128)}', space=vmem, size = 0x1000, scoped, tag = 'scratch operand']
  #allocation3 [shape = 'f32[8,128]{1,0:T(8,128)}', space=vmem, size = 0x1000, scoped, tag = 'scratch operand']
  %s0 = inlined_call_operand.vmem [shape: bf16[12,8,512], index: 0, kind: input, shape index: {}]
  %s1 = inlined_call_operand.vmem [shape: bf16[128,512], index: 1, kind: input, shape index: {}]
  %s2 = inlined_call_operand.vmem [shape: f32[1,512], index: 2, kind: input, shape index: {}]
  %s3 = inlined_call_operand.vmem [shape: f32[8,128], index: 3, kind: input, shape index: {}]
  %s4 = inlined_call_operand.vmem [shape: f32[8,128], index: 4, kind: input, shape index: {}]
  %s5 = inlined_call_operand.vmem [shape: bf16[12,8,128], index: 5, kind: output, shape index: {0}]
  %s6 = inlined_call_operand.vmem [shape: f32[8,128], index: 6, kind: output, shape index: {1}]
  %s7 = inlined_call_operand.vmem [shape: f32[8,128], index: 7, kind: output, shape index: {2}]
  %8 = xla_tuple %s5, %s6, %s7
  %s9 = sld [smem:[#allocation0]]
  $region54: #{rnn_model_forward.2} parent=0
    _
  %s11 = ssub.s32 1, %s9
  %s12 = scalar_select 0, %s11, %s9
  // Predicated region
  $region2: #{rnn_model_forward.2} parent=0 // pred_check
    _
  $region3: #{rnn_model_forward.2} parent=0 // pred_check_branch
    %14 = sbr.rel (0) target = $region5
  $region4: #{rnn_model_forward.2} parent=0 // pred_region
    _
  $region5: #{rnn_model_forward.2} parent=0 // pred_fallthru
    _
  // Predicated region
  $region6: #{rnn_model_forward.2} parent=0 // pred_check
    _
  $region7: #{rnn_model_forward.2} parent=0 // pred_check_branch
    %16 = sbr.rel (0) target = $region9
  $region8: #{rnn_model_forward.2} parent=0 // pred_region
    _
  $region9: #{rnn_model_forward.2} parent=0 // pred_fallthru
    _
  // Predicated region
  $region10: #{rnn_model_forward.2} parent=0 // pred_check
    _
  $region11: #{rnn_model_forward.2} parent=0 // pred_check_branch
    %18 = sbr.rel (0) target = $region13
  $region12: #{rnn_model_forward.2} parent=0 // pred_region
    _
  $region13: #{rnn_model_forward.2} parent=0 // pred_fallthru
    _
  // Predicated region
  $region14: #{rnn_model_forward.2} parent=0 // pred_check
    _
  $region15: #{rnn_model_forward.2} parent=0 // pred_check_branch
    %20 = sbr.rel (0) target = $region17
  $region16: #{rnn_model_forward.2} parent=0 // pred_region
    _
  $region17: #{rnn_model_forward.2} parent=0 // pred_fallthru
    _
  // Predicated region
  $region18: #{rnn_model_forward.2} parent=0 // pred_check
    _
  $region19: #{rnn_model_forward.2} parent=0 // pred_check_branch
    %22 = sbr.rel (0) target = $region21
  $region20: #{rnn_model_forward.2} parent=0 // pred_region
    _
  $region21: #{rnn_model_forward.2} parent=0 // pred_fallthru
    _
  %p24 = scmp.eq.s32.totalorder 0, 0
  // Predicated region
  $region22: #{rnn_model_forward.2} parent=0 // pred_check
    %p25 = pneg %p24
  $region23: #{rnn_model_forward.2} parent=0 // pred_check_branch
    %27 = sbr.rel (%p25) target = $region25
  $region24: #{rnn_model_forward.2} parent=0 // pred_region
    %v28 = vld [vmem:[%s3] sm:$0xff]
    %29 = vst [vmem:[#allocation2] sm:$0xff] %v28
    %v30 = vld [vmem:[%s4] sm:$0xff]
    %31 = vst [vmem:[#allocation3] sm:$0xff] %v30
  $region25: #{rnn_model_forward.2} parent=0 // pred_fallthru
    _
  %v32 = vld [vmem:[%s1] sm:$0xff]
  %v33 = vld [vmem:[%s1 + $0x8] sm:$0xff]
  %v34 = vld [vmem:[%s1 + $0x10] sm:$0xff]
  %v35 = vld [vmem:[%s1 + $0x18] sm:$0xff]
  %v36 = vld [vmem:[%s1 + $0x20] sm:$0xff]
  %v37 = vld [vmem:[%s1 + $0x28] sm:$0xff]
  %v38 = vld [vmem:[%s1 + $0x30] sm:$0xff]
  %v39 = vld [vmem:[%s1 + $0x38] sm:$0xff]
  %v40 = vld [vmem:[%s1 + $0x40] sm:$0xff]
  %v41 = vld [vmem:[%s1 + $0x48] sm:$0xff]
  %v42 = vld [vmem:[%s1 + $0x50] sm:$0xff]
  %v43 = vld [vmem:[%s1 + $0x58] sm:$0xff]
  %v44 = vld [vmem:[%s1 + $0x60] sm:$0xff]
  %v45 = vld [vmem:[%s1 + $0x68] sm:$0xff]
  %v46 = vld [vmem:[%s1 + $0x70] sm:$0xff]
  %v47 = vld [vmem:[%s1 + $0x78] sm:$0xff]
  %v48 = vld [vmem:[%s1 + $0x80] sm:$0xff]
  %v49 = vld [vmem:[%s1 + $0x88] sm:$0xff]
  %v50 = vld [vmem:[%s1 + $0x90] sm:$0xff]
  %v51 = vld [vmem:[%s1 + $0x98] sm:$0xff]
  %v52 = vld [vmem:[%s1 + $0xa0] sm:$0xff]
  %v53 = vld [vmem:[%s1 + $0xa8] sm:$0xff]
  %v54 = vld [vmem:[%s1 + $0xb0] sm:$0xff]
  %v55 = vld [vmem:[%s1 + $0xb8] sm:$0xff]
  %v56 = vld [vmem:[%s1 + $0xc0] sm:$0xff]
  %v57 = vld [vmem:[%s1 + $0xc8] sm:$0xff]
  %v58 = vld [vmem:[%s1 + $0xd0] sm:$0xff]
  %v59 = vld [vmem:[%s1 + $0xd8] sm:$0xff]
  %v60 = vld [vmem:[%s1 + $0xe0] sm:$0xff]
  %v61 = vld [vmem:[%s1 + $0xe8] sm:$0xff]
  %v62 = vld [vmem:[%s1 + $0xf0] sm:$0xff]
  %v63 = vld [vmem:[%s1 + $0xf8] sm:$0xff]
  %v64 = vld [vmem:[%s2] sm:$0xf]
  %v65 = vld [vmem:[#allocation2] sm:$0xff]
  %v66 = vld [vmem:[#allocation3] sm:$0xff]
  %v67 = vpack.c.bf16 %v65, %v65
  %v68 = vld [vmem:[%s0] sm:$0xff]
  %v69 = vld [vmem:[%s0 + $0x8] sm:$0xff]
  %v70 = vunpack.c.l.bf16 %v68
  %v71 = vunpack.c.h.bf16 %v68
  %v72 = vunpack.c.l.bf16 %v69
  %v73 = vunpack.c.h.bf16 %v69
  %v106 = vunpack.c.l.b16 %v32
  %v107 = vunpack.c.h.b16 %v32
  %v108 = vunpack.c.l.b16 %v33
  %v109 = vunpack.c.h.b16 %v33
  %v110 = vunpack.c.l.b16 %v34
  %v111 = vunpack.c.h.b16 %v34
  %v112 = vunpack.c.l.b16 %v35
  %v113 = vunpack.c.h.b16 %v35
  %v114 = vunpack.c.l.b16 %v36
  %v115 = vunpack.c.h.b16 %v36
  %v116 = vunpack.c.l.b16 %v37
  %v117 = vunpack.c.h.b16 %v37
  %v118 = vunpack.c.l.b16 %v38
  %v119 = vunpack.c.h.b16 %v38
  %v120 = vunpack.c.l.b16 %v39
  %v121 = vunpack.c.h.b16 %v39
  %v122 = vunpack.c.l.b16 %v40
  %v123 = vunpack.c.h.b16 %v40
  %v124 = vunpack.c.l.b16 %v41
  %v125 = vunpack.c.h.b16 %v41
  %v126 = vunpack.c.l.b16 %v42
  %v127 = vunpack.c.h.b16 %v42
  %v128 = vunpack.c.l.b16 %v43
  %v129 = vunpack.c.h.b16 %v43
  %v130 = vunpack.c.l.b16 %v44
  %v131 = vunpack.c.h.b16 %v44
  %v132 = vunpack.c.l.b16 %v45
  %v133 = vunpack.c.h.b16 %v45
  %v134 = vunpack.c.l.b16 %v46
  %v135 = vunpack.c.h.b16 %v46
  %v136 = vunpack.c.l.b16 %v47
  %v137 = vunpack.c.h.b16 %v47
  %v138 = vunpack.c.l.b16 %v48
  %v139 = vunpack.c.h.b16 %v48
  %v140 = vunpack.c.l.b16 %v49
  %v141 = vunpack.c.h.b16 %v49
  %v142 = vunpack.c.l.b16 %v50
  %v143 = vunpack.c.h.b16 %v50
  %v144 = vunpack.c.l.b16 %v51
  %v145 = vunpack.c.h.b16 %v51
  %v146 = vunpack.c.l.b16 %v52
  %v147 = vunpack.c.h.b16 %v52
  %v148 = vunpack.c.l.b16 %v53
  %v149 = vunpack.c.h.b16 %v53
  %v150 = vunpack.c.l.b16 %v54
  %v151 = vunpack.c.h.b16 %v54
  %v152 = vunpack.c.l.b16 %v55
  %v153 = vunpack.c.h.b16 %v55
  %v154 = vunpack.c.l.b16 %v56
  %v155 = vunpack.c.h.b16 %v56
  %v156 = vunpack.c.l.b16 %v57
  %v157 = vunpack.c.h.b16 %v57
  %v158 = vunpack.c.l.b16 %v58
  %v159 = vunpack.c.h.b16 %v58
  %v160 = vunpack.c.l.b16 %v59
  %v161 = vunpack.c.h.b16 %v59
  %v162 = vunpack.c.l.b16 %v60
  %v163 = vunpack.c.h.b16 %v60
  %v164 = vunpack.c.l.b16 %v61
  %v165 = vunpack.c.h.b16 %v61
  %v166 = vunpack.c.l.b16 %v62
  %v167 = vunpack.c.h.b16 %v62
  %v168 = vunpack.c.l.b16 %v63
  %v169 = vunpack.c.h.b16 %v63
  %v170 = vpack.c.b16 %v110, %v106
  %v171 = vpack.c.b16 %v111, %v107
  %v172 = vpack.c.b16 %v112, %v108
  %v173 = vpack.c.b16 %v113, %v109
  %v174 = vpack.c.b16 %v118, %v114
  %v175 = vpack.c.b16 %v119, %v115
  %v176 = vpack.c.b16 %v120, %v116
  %v177 = vpack.c.b16 %v121, %v117
  %v178 = vpack.c.b16 %v126, %v122
  %v179 = vpack.c.b16 %v127, %v123
  %v180 = vpack.c.b16 %v128, %v124
  %v181 = vpack.c.b16 %v129, %v125
  %v182 = vpack.c.b16 %v134, %v130
  %v183 = vpack.c.b16 %v135, %v131
  %v184 = vpack.c.b16 %v136, %v132
  %v185 = vpack.c.b16 %v137, %v133
  %v186 = vpack.c.b16 %v142, %v138
  %v187 = vpack.c.b16 %v143, %v139
  %v188 = vpack.c.b16 %v144, %v140
  %v189 = vpack.c.b16 %v145, %v141
  %v190 = vpack.c.b16 %v150, %v146
  %v191 = vpack.c.b16 %v151, %v147
  %v192 = vpack.c.b16 %v152, %v148
  %v193 = vpack.c.b16 %v153, %v149
  %v194 = vpack.c.b16 %v158, %v154
  %v195 = vpack.c.b16 %v159, %v155
  %v196 = vpack.c.b16 %v160, %v156
  %v197 = vpack.c.b16 %v161, %v157
  %v198 = vpack.c.b16 %v166, %v162
  %v199 = vpack.c.b16 %v167, %v163
  %v200 = vpack.c.b16 %v168, %v164
  %v201 = vpack.c.b16 %v169, %v165
  %234 = vmatprep.subr.bf16.mxu0 %v199
  %235 = vmatpush1.bf16.msra.mxu0 %v198
  %236 = vmatprep.subr.bf16.mxu0 %v195
  %237 = vmatpush1.bf16.msra.mxu0 %v194
  %238 = vmatprep.subr.bf16.mxu0 %v191
  %239 = vmatpush1.bf16.msra.mxu0 %v190
  %240 = vmatprep.subr.bf16.mxu0 %v187
  %241 = vmatpush1.bf16.msra.mxu0 %v186
  %242 = vmatprep.subr.bf16.mxu0 %v183
  %243 = vmatpush1.bf16.msra.mxu0 %v182
  %244 = vmatprep.subr.bf16.mxu0 %v179
  %245 = vmatpush1.bf16.msra.mxu0 %v178
  %246 = vmatprep.subr.bf16.mxu0 %v175
  %247 = vmatpush1.bf16.msra.mxu0 %v174
  %248 = vmatprep.subr.bf16.mxu0 %v171
  %249 = vmatpush1.bf16.msra.mxu0 %v170
  %250 = vmatprep.subr.bf16.mxu0 0
  %251 = vmatpush2.bf16.msra.mxu0 0
  %252 = vmatprep.subr.bf16.mxu0 0
  %253 = vmatpush2.bf16.msra.mxu0 0
  %254 = vmatprep.subr.bf16.mxu0 0
  %255 = vmatpush2.bf16.msra.mxu0 0
  %256 = vmatprep.subr.bf16.mxu0 0
  %257 = vmatpush2.bf16.msra.mxu0 0
  %258 = vmatprep.subr.bf16.mxu0 0
  %259 = vmatpush2.bf16.msra.mxu0 0
  %260 = vmatprep.subr.bf16.mxu0 0
  %261 = vmatpush2.bf16.msra.mxu0 0
  %262 = vmatprep.subr.bf16.mxu0 0
  %263 = vmatpush2.bf16.msra.mxu0 0
  %264 = vmatprep.subr.bf16.mxu0 0
  %265 = vmatpush2.bf16.msra.mxu0 0
  %266 = vmatprep.mubr.bf16.mxu0 0
  %267 = vmatmul.mubr.bf16.gmra.mxu0 %v67
  %v268 = vpop.f32.mrf.mxu0
  %v269 = vadd.f32 %v70, %v268
  %v270 = vpop.f32.mrf.mxu0
  %v271 = vadd.f32 %v71, %v270
  %v272 = vpop.f32.mrf.mxu0
  %v273 = vpop.f32.mrf.mxu0
  %274 = vdwg.mxu0
  %275 = vmatprep.subr.bf16.mxu0 %v201
  %276 = vmatpush1.bf16.msra.mxu0 %v200
  %277 = vmatprep.subr.bf16.mxu0 %v197
  %278 = vmatpush1.bf16.msra.mxu0 %v196
  %279 = vmatprep.subr.bf16.mxu0 %v193
  %280 = vmatpush1.bf16.msra.mxu0 %v192
  %281 = vmatprep.subr.bf16.mxu0 %v189
  %282 = vmatpush1.bf16.msra.mxu0 %v188
  %283 = vmatprep.subr.bf16.mxu0 %v185
  %284 = vmatpush1.bf16.msra.mxu0 %v184
  %285 = vmatprep.subr.bf16.mxu0 %v181
  %286 = vmatpush1.bf16.msra.mxu0 %v180
  %287 = vmatprep.subr.bf16.mxu0 %v177
  %288 = vmatpush1.bf16.msra.mxu0 %v176
  %289 = vmatprep.subr.bf16.mxu0 %v173
  %290 = vmatpush1.bf16.msra.mxu0 %v172
  %291 = vmatprep.subr.bf16.mxu0 0
  %292 = vmatpush2.bf16.msra.mxu0 0
  %293 = vmatprep.subr.bf16.mxu0 0
  %294 = vmatpush2.bf16.msra.mxu0 0
  %295 = vmatprep.subr.bf16.mxu0 0
  %296 = vmatpush2.bf16.msra.mxu0 0
  %297 = vmatprep.subr.bf16.mxu0 0
  %298 = vmatpush2.bf16.msra.mxu0 0
  %299 = vmatprep.subr.bf16.mxu0 0
  %300 = vmatpush2.bf16.msra.mxu0 0
  %301 = vmatprep.subr.bf16.mxu0 0
  %302 = vmatpush2.bf16.msra.mxu0 0
  %303 = vmatprep.subr.bf16.mxu0 0
  %304 = vmatpush2.bf16.msra.mxu0 0
  %305 = vmatprep.subr.bf16.mxu0 0
  %306 = vmatpush2.bf16.msra.mxu0 0
  %307 = vmatprep.mubr.bf16.mxu0 0
  %308 = vmatmul.mubr.bf16.gmra.mxu0 %v67
  %v309 = vpop.f32.mrf.mxu0
  %v310 = vadd.f32 %v72, %v309
  %v311 = vpop.f32.mrf.mxu0
  %v312 = vadd.f32 %v73, %v311
  %v313 = vpop.f32.mrf.mxu0
  %v314 = vpop.f32.mrf.mxu0
  %315 = vdwg.mxu0
  %v317 = vlaneseq
  %v318 = vshrl.u32 %v317, 7
  %v319 = vsub.s32 0, %v318
  %v320 = vrot.slane %v64, %v319
  %v321 = vlaneseq
  %v322 = vshrl.u32 %v321, 7
  %v323 = vsub.s32 1, %v322
  %v324 = vrot.slane %v64, %v323
  %v325 = vlaneseq
  %v326 = vshrl.u32 %v325, 7
  %v327 = vsub.s32 2, %v326
  %v328 = vrot.slane %v64, %v327
  %v329 = vlaneseq
  %v330 = vshrl.u32 %v329, 7
  %v331 = vsub.s32 3, %v330
  %v332 = vrot.slane %v64, %v331
  %v337 = vadd.f32 %v269, %v320
  %v338 = vadd.f32 %v271, %v324
  %v339 = vadd.f32 %v310, %v328
  %v340 = vadd.f32 %v312, %v332
  %v341 = vxor.u32 %v337, 2147483648
  %v342 = vmul.f32 %v341, 1.442695
  %v343 = vpow.pop %v342
  %v344 = vadd.f32 %v343, 1.0
  %v345 = vrcp.pop %v344
  %v346 = vmul.f32 1.0, %v345
  %v347 = vxor.u32 %v338, 2147483648
  %v348 = vmul.f32 %v347, 1.442695
  %v349 = vpow.pop %v348
  %v350 = vadd.f32 %v349, 1.0
  %v351 = vrcp.pop %v350
  %v352 = vmul.f32 1.0, %v351
  %v353 = vtanh.pop %v339
  %v354 = vxor.u32 %v340, 2147483648
  %v355 = vmul.f32 %v354, 1.442695
  %v356 = vpow.pop %v355
  %v357 = vadd.f32 %v356, 1.0
  %v358 = vrcp.pop %v357
  %v359 = vmul.f32 1.0, %v358
  %v360 = vmul.f32 %v352, %v66
  %v361 = vmul.f32 %v346, %v353
  %v362 = vadd.f32 %v360, %v361
  %v363 = vtanh.pop %v362
  %v364 = vmul.f32 %v359, %v363
  %365 = vst [vmem:[#allocation2] sm:$0xff] %v364
  %366 = vst [vmem:[#allocation3] sm:$0xff] %v362
  %v367 = vpack.c.bf16 %v364, %v364
  %368 = vst [vmem:[%s5] sm:$0xf] %v367
  %v369 = vld [vmem:[#allocation2] sm:$0xff]
  %v370 = vld [vmem:[#allocation3] sm:$0xff]
  %v371 = vpack.c.bf16 %v369, %v369
  %s372 = scalar_lea.vmem %s0, 16
  %v373 = vld [vmem:[%s372] sm:$0xff]
  %v374 = vld [vmem:[%s372 + $0x8] sm:$0xff]
  %v375 = vunpack.c.l.bf16 %v373
  %v376 = vunpack.c.h.bf16 %v373
  %v377 = vunpack.c.l.bf16 %v374
  %v378 = vunpack.c.h.bf16 %v374
  %379 = vmatprep.subr.bf16.mxu0 %v199
  %380 = vmatpush1.bf16.msra.mxu0 %v198
  %381 = vmatprep.subr.bf16.mxu0 %v195
  %382 = vmatpush1.bf16.msra.mxu0 %v194
  %383 = vmatprep.subr.bf16.mxu0 %v191
  %384 = vmatpush1.bf16.msra.mxu0 %v190
  %385 = vmatprep.subr.bf16.mxu0 %v187
  %386 = vmatpush1.bf16.msra.mxu0 %v186
  %387 = vmatprep.subr.bf16.mxu0 %v183
  %388 = vmatpush1.bf16.msra.mxu0 %v182
  %389 = vmatprep.subr.bf16.mxu0 %v179
  %390 = vmatpush1.bf16.msra.mxu0 %v178
  %391 = vmatprep.subr.bf16.mxu0 %v175
  %392 = vmatpush1.bf16.msra.mxu0 %v174
  %393 = vmatprep.subr.bf16.mxu0 %v171
  %394 = vmatpush1.bf16.msra.mxu0 %v170
  %395 = vmatprep.subr.bf16.mxu0 0
  %396 = vmatpush2.bf16.msra.mxu0 0
  %397 = vmatprep.subr.bf16.mxu0 0
  %398 = vmatpush2.bf16.msra.mxu0 0
  %399 = vmatprep.subr.bf16.mxu0 0
  %400 = vmatpush2.bf16.msra.mxu0 0
  %401 = vmatprep.subr.bf16.mxu0 0
  %402 = vmatpush2.bf16.msra.mxu0 0
  %403 = vmatprep.subr.bf16.mxu0 0
  %404 = vmatpush2.bf16.msra.mxu0 0
  %405 = vmatprep.subr.bf16.mxu0 0
  %406 = vmatpush2.bf16.msra.mxu0 0
  %407 = vmatprep.subr.bf16.mxu0 0
  %408 = vmatpush2.bf16.msra.mxu0 0
  %409 = vmatprep.subr.bf16.mxu0 0
  %410 = vmatpush2.bf16.msra.mxu0 0
  %411 = vmatprep.mubr.bf16.mxu0 0
  %412 = vmatmul.mubr.bf16.gmra.mxu0 %v371
  %v413 = vpop.f32.mrf.mxu0
  %v414 = vadd.f32 %v375, %v413
  %v415 = vpop.f32.mrf.mxu0
  %v416 = vadd.f32 %v376, %v415
  %v417 = vpop.f32.mrf.mxu0
  %v418 = vpop.f32.mrf.mxu0
  %419 = vdwg.mxu0
  %420 = vmatprep.subr.bf16.mxu0 %v201
  %421 = vmatpush1.bf16.msra.mxu0 %v200
  %422 = vmatprep.subr.bf16.mxu0 %v197
  %423 = vmatpush1.bf16.msra.mxu0 %v196
  %424 = vmatprep.subr.bf16.mxu0 %v193
  %425 = vmatpush1.bf16.msra.mxu0 %v192
  %426 = vmatprep.subr.bf16.mxu0 %v189
  %427 = vmatpush1.bf16.msra.mxu0 %v188
  %428 = vmatprep.subr.bf16.mxu0 %v185
  %429 = vmatpush1.bf16.msra.mxu0 %v184
  %430 = vmatprep.subr.bf16.mxu0 %v181
  %431 = vmatpush1.bf16.msra.mxu0 %v180
  %432 = vmatprep.subr.bf16.mxu0 %v177
  %433 = vmatpush1.bf16.msra.mxu0 %v176
  %434 = vmatprep.subr.bf16.mxu0 %v173
  %435 = vmatpush1.bf16.msra.mxu0 %v172
  %436 = vmatprep.subr.bf16.mxu0 0
  %437 = vmatpush2.bf16.msra.mxu0 0
  %438 = vmatprep.subr.bf16.mxu0 0
  %439 = vmatpush2.bf16.msra.mxu0 0
  %440 = vmatprep.subr.bf16.mxu0 0
  %441 = vmatpush2.bf16.msra.mxu0 0
  %442 = vmatprep.subr.bf16.mxu0 0
  %443 = vmatpush2.bf16.msra.mxu0 0
  %444 = vmatprep.subr.bf16.mxu0 0
  %445 = vmatpush2.bf16.msra.mxu0 0
  %446 = vmatprep.subr.bf16.mxu0 0
  %447 = vmatpush2.bf16.msra.mxu0 0
  %448 = vmatprep.subr.bf16.mxu0 0
  %449 = vmatpush2.bf16.msra.mxu0 0
  %450 = vmatprep.subr.bf16.mxu0 0
  %451 = vmatpush2.bf16.msra.mxu0 0
  %452 = vmatprep.mubr.bf16.mxu0 0
  %453 = vmatmul.mubr.bf16.gmra.mxu0 %v371
  %v454 = vpop.f32.mrf.mxu0
  %v455 = vadd.f32 %v377, %v454
  %v456 = vpop.f32.mrf.mxu0
  %v457 = vadd.f32 %v378, %v456
  %v458 = vpop.f32.mrf.mxu0
  %v459 = vpop.f32.mrf.mxu0
  %460 = vdwg.mxu0
  %v461 = vadd.f32 %v414, %v320
  %v462 = vadd.f32 %v416, %v324
  %v463 = vadd.f32 %v455, %v328
  %v464 = vadd.f32 %v457, %v332
  %v465 = vxor.u32 %v461, 2147483648
  %v466 = vmul.f32 %v465, 1.442695
  %v467 = vpow.pop %v466
  %v468 = vadd.f32 %v467, 1.0
  %v469 = vrcp.pop %v468
  %v470 = vmul.f32 1.0, %v469
  %v471 = vxor.u32 %v462, 2147483648
  %v472 = vmul.f32 %v471, 1.442695
  %v473 = vpow.pop %v472
  %v474 = vadd.f32 %v473, 1.0
  %v475 = vrcp.pop %v474
  %v476 = vmul.f32 1.0, %v475
  %v477 = vtanh.pop %v463
  %v478 = vxor.u32 %v464, 2147483648
  %v479 = vmul.f32 %v478, 1.442695
  %v480 = vpow.pop %v479
  %v481 = vadd.f32 %v480, 1.0
  %v482 = vrcp.pop %v481
  %v483 = vmul.f32 1.0, %v482
  %v484 = vmul.f32 %v476, %v370
  %v485 = vmul.f32 %v470, %v477
  %v486 = vadd.f32 %v484, %v485
  %v487 = vtanh.pop %v486
  %v488 = vmul.f32 %v483, %v487
  %489 = vst [vmem:[#allocation2] sm:$0xff] %v488
  %490 = vst [vmem:[#allocation3] sm:$0xff] %v486
  %v491 = vpack.c.bf16 %v488, %v488
  %s492 = scalar_lea.vmem %s5, 4
  %493 = vst [vmem:[%s492] sm:$0xf] %v491
  %v494 = vld [vmem:[#allocation2] sm:$0xff]
  %v495 = vld [vmem:[#allocation3] sm:$0xff]
  %v496 = vpack.c.bf16 %v494, %v494
  %s497 = scalar_lea.vmem %s0, 32
  %v498 = vld [vmem:[%s497] sm:$0xff]
  %v499 = vld [vmem:[%s497 + $0x8] sm:$0xff]
  %v500 = vunpack.c.l.bf16 %v498
  %v501 = vunpack.c.h.bf16 %v498
  %v502 = vunpack.c.l.bf16 %v499
  %v503 = vunpack.c.h.bf16 %v499
  %504 = vmatprep.subr.bf16.mxu0 %v199
  %505 = vmatpush1.bf16.msra.mxu0 %v198
  %506 = vmatprep.subr.bf16.mxu0 %v195
  %507 = vmatpush1.bf16.msra.mxu0 %v194
  %508 = vmatprep.subr.bf16.mxu0 %v191
  %509 = vmatpush1.bf16.msra.mxu0 %v190
  %510 = vmatprep.subr.bf16.mxu0 %v187
  %511 = vmatpush1.bf16.msra.mxu0 %v186
  %512 = vmatprep.subr.bf16.mxu0 %v183
  %513 = vmatpush1.bf16.msra.mxu0 %v182
  %514 = vmatprep.subr.bf16.mxu0 %v179
  %515 = vmatpush1.bf16.msra.mxu0 %v178
  %516 = vmatprep.subr.bf16.mxu0 %v175
  %517 = vmatpush1.bf16.msra.mxu0 %v174
  %518 = vmatprep.subr.bf16.mxu0 %v171
  %519 = vmatpush1.bf16.msra.mxu0 %v170
  %520 = vmatprep.subr.bf16.mxu0 0
  %521 = vmatpush2.bf16.msra.mxu0 0
  %522 = vmatprep.subr.bf16.mxu0 0
  %523 = vmatpush2.bf16.msra.mxu0 0
  %524 = vmatprep.subr.bf16.mxu0 0
  %525 = vmatpush2.bf16.msra.mxu0 0
  %526 = vmatprep.subr.bf16.mxu0 0
  %527 = vmatpush2.bf16.msra.mxu0 0
  %528 = vmatprep.subr.bf16.mxu0 0
  %529 = vmatpush2.bf16.msra.mxu0 0
  %530 = vmatprep.subr.bf16.mxu0 0
  %531 = vmatpush2.bf16.msra.mxu0 0
  %532 = vmatprep.subr.bf16.mxu0 0
  %533 = vmatpush2.bf16.msra.mxu0 0
  %534 = vmatprep.subr.bf16.mxu0 0
  %535 = vmatpush2.bf16.msra.mxu0 0
  %536 = vmatprep.mubr.bf16.mxu0 0
  %537 = vmatmul.mubr.bf16.gmra.mxu0 %v496
  %v538 = vpop.f32.mrf.mxu0
  %v539 = vadd.f32 %v500, %v538
  %v540 = vpop.f32.mrf.mxu0
  %v541 = vadd.f32 %v501, %v540
  %v542 = vpop.f32.mrf.mxu0
  %v543 = vpop.f32.mrf.mxu0
  %544 = vdwg.mxu0
  %545 = vmatprep.subr.bf16.mxu0 %v201
  %546 = vmatpush1.bf16.msra.mxu0 %v200
  %547 = vmatprep.subr.bf16.mxu0 %v197
  %548 = vmatpush1.bf16.msra.mxu0 %v196
  %549 = vmatprep.subr.bf16.mxu0 %v193
  %550 = vmatpush1.bf16.msra.mxu0 %v192
  %551 = vmatprep.subr.bf16.mxu0 %v189
  %552 = vmatpush1.bf16.msra.mxu0 %v188
  %553 = vmatprep.subr.bf16.mxu0 %v185
  %554 = vmatpush1.bf16.msra.mxu0 %v184
  %555 = vmatprep.subr.bf16.mxu0 %v181
  %556 = vmatpush1.bf16.msra.mxu0 %v180
  %557 = vmatprep.subr.bf16.mxu0 %v177
  %558 = vmatpush1.bf16.msra.mxu0 %v176
  %559 = vmatprep.subr.bf16.mxu0 %v173
  %560 = vmatpush1.bf16.msra.mxu0 %v172
  %561 = vmatprep.subr.bf16.mxu0 0
  %562 = vmatpush2.bf16.msra.mxu0 0
  %563 = vmatprep.subr.bf16.mxu0 0
  %564 = vmatpush2.bf16.msra.mxu0 0
  %565 = vmatprep.subr.bf16.mxu0 0
  %566 = vmatpush2.bf16.msra.mxu0 0
  %567 = vmatprep.subr.bf16.mxu0 0
  %568 = vmatpush2.bf16.msra.mxu0 0
  %569 = vmatprep.subr.bf16.mxu0 0
  %570 = vmatpush2.bf16.msra.mxu0 0
  %571 = vmatprep.subr.bf16.mxu0 0
  %572 = vmatpush2.bf16.msra.mxu0 0
  %573 = vmatprep.subr.bf16.mxu0 0
  %574 = vmatpush2.bf16.msra.mxu0 0
  %575 = vmatprep.subr.bf16.mxu0 0
  %576 = vmatpush2.bf16.msra.mxu0 0
  %577 = vmatprep.mubr.bf16.mxu0 0
  %578 = vmatmul.mubr.bf16.gmra.mxu0 %v496
  %v579 = vpop.f32.mrf.mxu0
  %v580 = vadd.f32 %v502, %v579
  %v581 = vpop.f32.mrf.mxu0
  %v582 = vadd.f32 %v503, %v581
  %v583 = vpop.f32.mrf.mxu0
  %v584 = vpop.f32.mrf.mxu0
  %585 = vdwg.mxu0
  %v586 = vadd.f32 %v539, %v320
  %v587 = vadd.f32 %v541, %v324
  %v588 = vadd.f32 %v580, %v328
  %v589 = vadd.f32 %v582, %v332
  %v590 = vxor.u32 %v586, 2147483648
  %v591 = vmul.f32 %v590, 1.442695
  %v592 = vpow.pop %v591
  %v593 = vadd.f32 %v592, 1.0
  %v594 = vrcp.pop %v593
  %v595 = vmul.f32 1.0, %v594
  %v596 = vxor.u32 %v587, 2147483648
  %v597 = vmul.f32 %v596, 1.442695
  %v598 = vpow.pop %v597
  %v599 = vadd.f32 %v598, 1.0
  %v600 = vrcp.pop %v599
  %v601 = vmul.f32 1.0, %v600
  %v602 = vtanh.pop %v588
  %v603 = vxor.u32 %v589, 2147483648
  %v604 = vmul.f32 %v603, 1.442695
  %v605 = vpow.pop %v604
  %v606 = vadd.f32 %v605, 1.0
  %v607 = vrcp.pop %v606
  %v608 = vmul.f32 1.0, %v607
  %v609 = vmul.f32 %v601, %v495
  %v610 = vmul.f32 %v595, %v602
  %v611 = vadd.f32 %v609, %v610
  %v612 = vtanh.pop %v611
  %v613 = vmul.f32 %v608, %v612
  %614 = vst [vmem:[#allocation2] sm:$0xff] %v613
  %615 = vst [vmem:[#allocation3] sm:$0xff] %v611
  %v616 = vpack.c.bf16 %v613, %v613
  %s617 = scalar_lea.vmem %s5, 8
  %618 = vst [vmem:[%s617] sm:$0xf] %v616
  %v619 = vld [vmem:[#allocation2] sm:$0xff]
  %v620 = vld [vmem:[#allocation3] sm:$0xff]
  %v621 = vpack.c.bf16 %v619, %v619
  %s622 = scalar_lea.vmem %s0, 48
  %v623 = vld [vmem:[%s622] sm:$0xff]
  %v624 = vld [vmem:[%s622 + $0x8] sm:$0xff]
  %v625 = vunpack.c.l.bf16 %v623
  %v626 = vunpack.c.h.bf16 %v623
  %v627 = vunpack.c.l.bf16 %v624
  %v628 = vunpack.c.h.bf16 %v624
  %629 = vmatprep.subr.bf16.mxu0 %v199
  %630 = vmatpush1.bf16.msra.mxu0 %v198
  %631 = vmatprep.subr.bf16.mxu0 %v195
  %632 = vmatpush1.bf16.msra.mxu0 %v194
  %633 = vmatprep.subr.bf16.mxu0 %v191
  %634 = vmatpush1.bf16.msra.mxu0 %v190
  %635 = vmatprep.subr.bf16.mxu0 %v187
  %636 = vmatpush1.bf16.msra.mxu0 %v186
  %637 = vmatprep.subr.bf16.mxu0 %v183
  %638 = vmatpush1.bf16.msra.mxu0 %v182
  %639 = vmatprep.subr.bf16.mxu0 %v179
  %640 = vmatpush1.bf16.msra.mxu0 %v178
  %641 = vmatprep.subr.bf16.mxu0 %v175
  %642 = vmatpush1.bf16.msra.mxu0 %v174
  %643 = vmatprep.subr.bf16.mxu0 %v171
  %644 = vmatpush1.bf16.msra.mxu0 %v170
  %645 = vmatprep.subr.bf16.mxu0 0
  %646 = vmatpush2.bf16.msra.mxu0 0
  %647 = vmatprep.subr.bf16.mxu0 0
  %648 = vmatpush2.bf16.msra.mxu0 0
  %649 = vmatprep.subr.bf16.mxu0 0
  %650 = vmatpush2.bf16.msra.mxu0 0
  %651 = vmatprep.subr.bf16.mxu0 0
  %652 = vmatpush2.bf16.msra.mxu0 0
  %653 = vmatprep.subr.bf16.mxu0 0
  %654 = vmatpush2.bf16.msra.mxu0 0
  %655 = vmatprep.subr.bf16.mxu0 0
  %656 = vmatpush2.bf16.msra.mxu0 0
  %657 = vmatprep.subr.bf16.mxu0 0
  %658 = vmatpush2.bf16.msra.mxu0 0
  %659 = vmatprep.subr.bf16.mxu0 0
  %660 = vmatpush2.bf16.msra.mxu0 0
  %661 = vmatprep.mubr.bf16.mxu0 0
  %662 = vmatmul.mubr.bf16.gmra.mxu0 %v621
  %v663 = vpop.f32.mrf.mxu0
  %v664 = vadd.f32 %v625, %v663
  %v665 = vpop.f32.mrf.mxu0
  %v666 = vadd.f32 %v626, %v665
  %v667 = vpop.f32.mrf.mxu0
  %v668 = vpop.f32.mrf.mxu0
  %669 = vdwg.mxu0
  %670 = vmatprep.subr.bf16.mxu0 %v201
  %671 = vmatpush1.bf16.msra.mxu0 %v200
  %672 = vmatprep.subr.bf16.mxu0 %v197
  %673 = vmatpush1.bf16.msra.mxu0 %v196
  %674 = vmatprep.subr.bf16.mxu0 %v193
  %675 = vmatpush1.bf16.msra.mxu0 %v192
  %676 = vmatprep.subr.bf16.mxu0 %v189
  %677 = vmatpush1.bf16.msra.mxu0 %v188
  %678 = vmatprep.subr.bf16.mxu0 %v185
  %679 = vmatpush1.bf16.msra.mxu0 %v184
  %680 = vmatprep.subr.bf16.mxu0 %v181
  %681 = vmatpush1.bf16.msra.mxu0 %v180
  %682 = vmatprep.subr.bf16.mxu0 %v177
  %683 = vmatpush1.bf16.msra.mxu0 %v176
  %684 = vmatprep.subr.bf16.mxu0 %v173
  %685 = vmatpush1.bf16.msra.mxu0 %v172
  %686 = vmatprep.subr.bf16.mxu0 0
  %687 = vmatpush2.bf16.msra.mxu0 0
  %688 = vmatprep.subr.bf16.mxu0 0
  %689 = vmatpush2.bf16.msra.mxu0 0
  %690 = vmatprep.subr.bf16.mxu0 0
  %691 = vmatpush2.bf16.msra.mxu0 0
  %692 = vmatprep.subr.bf16.mxu0 0
  %693 = vmatpush2.bf16.msra.mxu0 0
  %694 = vmatprep.subr.bf16.mxu0 0
  %695 = vmatpush2.bf16.msra.mxu0 0
  %696 = vmatprep.subr.bf16.mxu0 0
  %697 = vmatpush2.bf16.msra.mxu0 0
  %698 = vmatprep.subr.bf16.mxu0 0
  %699 = vmatpush2.bf16.msra.mxu0 0
  %700 = vmatprep.subr.bf16.mxu0 0
  %701 = vmatpush2.bf16.msra.mxu0 0
  %702 = vmatprep.mubr.bf16.mxu0 0
  %703 = vmatmul.mubr.bf16.gmra.mxu0 %v621
  %v704 = vpop.f32.mrf.mxu0
  %v705 = vadd.f32 %v627, %v704
  %v706 = vpop.f32.mrf.mxu0
  %v707 = vadd.f32 %v628, %v706
  %v708 = vpop.f32.mrf.mxu0
  %v709 = vpop.f32.mrf.mxu0
  %710 = vdwg.mxu0
  %v711 = vadd.f32 %v664, %v320
  %v712 = vadd.f32 %v666, %v324
  %v713 = vadd.f32 %v705, %v328
  %v714 = vadd.f32 %v707, %v332
  %v715 = vxor.u32 %v711, 2147483648
  %v716 = vmul.f32 %v715, 1.442695
  %v717 = vpow.pop %v716
  %v718 = vadd.f32 %v717, 1.0
  %v719 = vrcp.pop %v718
  %v720 = vmul.f32 1.0, %v719
  %v721 = vxor.u32 %v712, 2147483648
  %v722 = vmul.f32 %v721, 1.442695
  %v723 = vpow.pop %v722
  %v724 = vadd.f32 %v723, 1.0
  %v725 = vrcp.pop %v724
  %v726 = vmul.f32 1.0, %v725
  %v727 = vtanh.pop %v713
  %v728 = vxor.u32 %v714, 2147483648
  %v729 = vmul.f32 %v728, 1.442695
  %v730 = vpow.pop %v729
  %v731 = vadd.f32 %v730, 1.0
  %v732 = vrcp.pop %v731
  %v733 = vmul.f32 1.0, %v732
  %v734 = vmul.f32 %v726, %v620
  %v735 = vmul.f32 %v720, %v727
  %v736 = vadd.f32 %v734, %v735
  %v737 = vtanh.pop %v736
  %v738 = vmul.f32 %v733, %v737
  %739 = vst [vmem:[#allocation2] sm:$0xff] %v738
  %740 = vst [vmem:[#allocation3] sm:$0xff] %v736
  %v741 = vpack.c.bf16 %v738, %v738
  %s742 = scalar_lea.vmem %s5, 12
  %743 = vst [vmem:[%s742] sm:$0xf] %v741
  %v744 = vld [vmem:[#allocation2] sm:$0xff]
  %v745 = vld [vmem:[#allocation3] sm:$0xff]
  %v746 = vpack.c.bf16 %v744, %v744
  %s747 = scalar_lea.vmem %s0, 64
  %v748 = vld [vmem:[%s747] sm:$0xff]
  %v749 = vld [vmem:[%s747 + $0x8] sm:$0xff]
  %v750 = vunpack.c.l.bf16 %v748
  %v751 = vunpack.c.h.bf16 %v748
  %v752 = vunpack.c.l.bf16 %v749
  %v753 = vunpack.c.h.bf16 %v749
  %754 = vmatprep.subr.bf16.mxu0 %v199
  %755 = vmatpush1.bf16.msra.mxu0 %v198
  %756 = vmatprep.subr.bf16.mxu0 %v195
  %757 = vmatpush1.bf16.msra.mxu0 %v194
  %758 = vmatprep.subr.bf16.mxu0 %v191
  %759 = vmatpush1.bf16.msra.mxu0 %v190
  %760 = vmatprep.subr.bf16.mxu0 %v187
  %761 = vmatpush1.bf16.msra.mxu0 %v186
  %762 = vmatprep.subr.bf16.mxu0 %v183
  %763 = vmatpush1.bf16.msra.mxu0 %v182
  %764 = vmatprep.subr.bf16.mxu0 %v179
  %765 = vmatpush1.bf16.msra.mxu0 %v178
  %766 = vmatprep.subr.bf16.mxu0 %v175
  %767 = vmatpush1.bf16.msra.mxu0 %v174
  %768 = vmatprep.subr.bf16.mxu0 %v171
  %769 = vmatpush1.bf16.msra.mxu0 %v170
  %770 = vmatprep.subr.bf16.mxu0 0
  %771 = vmatpush2.bf16.msra.mxu0 0
  %772 = vmatprep.subr.bf16.mxu0 0
  %773 = vmatpush2.bf16.msra.mxu0 0
  %774 = vmatprep.subr.bf16.mxu0 0
  %775 = vmatpush2.bf16.msra.mxu0 0
  %776 = vmatprep.subr.bf16.mxu0 0
  %777 = vmatpush2.bf16.msra.mxu0 0
  %778 = vmatprep.subr.bf16.mxu0 0
  %779 = vmatpush2.bf16.msra.mxu0 0
  %780 = vmatprep.subr.bf16.mxu0 0
  %781 = vmatpush2.bf16.msra.mxu0 0
  %782 = vmatprep.subr.bf16.mxu0 0
  %783 = vmatpush2.bf16.msra.mxu0 0
  %784 = vmatprep.subr.bf16.mxu0 0
  %785 = vmatpush2.bf16.msra.mxu0 0
  %786 = vmatprep.mubr.bf16.mxu0 0
  %787 = vmatmul.mubr.bf16.gmra.mxu0 %v746
  %v788 = vpop.f32.mrf.mxu0
  %v789 = vadd.f32 %v750, %v788
  %v790 = vpop.f32.mrf.mxu0
  %v791 = vadd.f32 %v751, %v790
  %v792 = vpop.f32.mrf.mxu0
  %v793 = vpop.f32.mrf.mxu0
  %794 = vdwg.mxu0
  %795 = vmatprep.subr.bf16.mxu0 %v201
  %796 = vmatpush1.bf16.msra.mxu0 %v200
  %797 = vmatprep.subr.bf16.mxu0 %v197
  %798 = vmatpush1.bf16.msra.mxu0 %v196
  %799 = vmatprep.subr.bf16.mxu0 %v193
  %800 = vmatpush1.bf16.msra.mxu0 %v192
  %801 = vmatprep.subr.bf16.mxu0 %v189
  %802 = vmatpush1.bf16.msra.mxu0 %v188
  %803 = vmatprep.subr.bf16.mxu0 %v185
  %804 = vmatpush1.bf16.msra.mxu0 %v184
  %805 = vmatprep.subr.bf16.mxu0 %v181
  %806 = vmatpush1.bf16.msra.mxu0 %v180
  %807 = vmatprep.subr.bf16.mxu0 %v177
  %808 = vmatpush1.bf16.msra.mxu0 %v176
  %809 = vmatprep.subr.bf16.mxu0 %v173
  %810 = vmatpush1.bf16.msra.mxu0 %v172
  %811 = vmatprep.subr.bf16.mxu0 0
  %812 = vmatpush2.bf16.msra.mxu0 0
  %813 = vmatprep.subr.bf16.mxu0 0
  %814 = vmatpush2.bf16.msra.mxu0 0
  %815 = vmatprep.subr.bf16.mxu0 0
  %816 = vmatpush2.bf16.msra.mxu0 0
  %817 = vmatprep.subr.bf16.mxu0 0
  %818 = vmatpush2.bf16.msra.mxu0 0
  %819 = vmatprep.subr.bf16.mxu0 0
  %820 = vmatpush2.bf16.msra.mxu0 0
  %821 = vmatprep.subr.bf16.mxu0 0
  %822 = vmatpush2.bf16.msra.mxu0 0
  %823 = vmatprep.subr.bf16.mxu0 0
  %824 = vmatpush2.bf16.msra.mxu0 0
  %825 = vmatprep.subr.bf16.mxu0 0
  %826 = vmatpush2.bf16.msra.mxu0 0
  %827 = vmatprep.mubr.bf16.mxu0 0
  %828 = vmatmul.mubr.bf16.gmra.mxu0 %v746
  %v829 = vpop.f32.mrf.mxu0
  %v830 = vadd.f32 %v752, %v829
  %v831 = vpop.f32.mrf.mxu0
  %v832 = vadd.f32 %v753, %v831
  %v833 = vpop.f32.mrf.mxu0
  %v834 = vpop.f32.mrf.mxu0
  %835 = vdwg.mxu0
  %v836 = vadd.f32 %v789, %v320
  %v837 = vadd.f32 %v791, %v324
  %v838 = vadd.f32 %v830, %v328
  %v839 = vadd.f32 %v832, %v332
  %v840 = vxor.u32 %v836, 2147483648
  %v841 = vmul.f32 %v840, 1.442695
  %v842 = vpow.pop %v841
  %v843 = vadd.f32 %v842, 1.0
  %v844 = vrcp.pop %v843
  %v845 = vmul.f32 1.0, %v844
  %v846 = vxor.u32 %v837, 2147483648
  %v847 = vmul.f32 %v846, 1.442695
  %v848 = vpow.pop %v847
  %v849 = vadd.f32 %v848, 1.0
  %v850 = vrcp.pop %v849
  %v851 = vmul.f32 1.0, %v850
  %v852 = vtanh.pop %v838
  %v853 = vxor.u32 %v839, 2147483648
  %v854 = vmul.f32 %v853, 1.442695
  %v855 = vpow.pop %v854
  %v856 = vadd.f32 %v855, 1.0
  %v857 = vrcp.pop %v856
  %v858 = vmul.f32 1.0, %v857
  %v859 = vmul.f32 %v851, %v745
  %v860 = vmul.f32 %v845, %v852
  %v861 = vadd.f32 %v859, %v860
  %v862 = vtanh.pop %v861
  %v863 = vmul.f32 %v858, %v862
  %864 = vst [vmem:[#allocation2] sm:$0xff] %v863
  %865 = vst [vmem:[#allocation3] sm:$0xff] %v861
  %v866 = vpack.c.bf16 %v863, %v863
  %s867 = scalar_lea.vmem %s5, 16
  %868 = vst [vmem:[%s867] sm:$0xf] %v866
  %v869 = vld [vmem:[#allocation2] sm:$0xff]
  %v870 = vld [vmem:[#allocation3] sm:$0xff]
  %v871 = vpack.c.bf16 %v869, %v869
  %s872 = scalar_lea.vmem %s0, 80
  %v873 = vld [vmem:[%s872] sm:$0xff]
  %v874 = vld [vmem:[%s872 + $0x8] sm:$0xff]
  %v875 = vunpack.c.l.bf16 %v873
  %v876 = vunpack.c.h.bf16 %v873
  %v877 = vunpack.c.l.bf16 %v874
  %v878 = vunpack.c.h.bf16 %v874
  %879 = vmatprep.subr.bf16.mxu0 %v199
  %880 = vmatpush1.bf16.msra.mxu0 %v198
  %881 = vmatprep.subr.bf16.mxu0 %v195
  %882 = vmatpush1.bf16.msra.mxu0 %v194
  %883 = vmatprep.subr.bf16.mxu0 %v191
  %884 = vmatpush1.bf16.msra.mxu0 %v190
  %885 = vmatprep.subr.bf16.mxu0 %v187
  %886 = vmatpush1.bf16.msra.mxu0 %v186
  %887 = vmatprep.subr.bf16.mxu0 %v183
  %888 = vmatpush1.bf16.msra.mxu0 %v182
  %889 = vmatprep.subr.bf16.mxu0 %v179
  %890 = vmatpush1.bf16.msra.mxu0 %v178
  %891 = vmatprep.subr.bf16.mxu0 %v175
  %892 = vmatpush1.bf16.msra.mxu0 %v174
  %893 = vmatprep.subr.bf16.mxu0 %v171
  %894 = vmatpush1.bf16.msra.mxu0 %v170
  %895 = vmatprep.subr.bf16.mxu0 0
  %896 = vmatpush2.bf16.msra.mxu0 0
  %897 = vmatprep.subr.bf16.mxu0 0
  %898 = vmatpush2.bf16.msra.mxu0 0
  %899 = vmatprep.subr.bf16.mxu0 0
  %900 = vmatpush2.bf16.msra.mxu0 0
  %901 = vmatprep.subr.bf16.mxu0 0
  %902 = vmatpush2.bf16.msra.mxu0 0
  %903 = vmatprep.subr.bf16.mxu0 0
  %904 = vmatpush2.bf16.msra.mxu0 0
  %905 = vmatprep.subr.bf16.mxu0 0
  %906 = vmatpush2.bf16.msra.mxu0 0
  %907 = vmatprep.subr.bf16.mxu0 0
  %908 = vmatpush2.bf16.msra.mxu0 0
  %909 = vmatprep.subr.bf16.mxu0 0
  %910 = vmatpush2.bf16.msra.mxu0 0
  %911 = vmatprep.mubr.bf16.mxu0 0
  %912 = vmatmul.mubr.bf16.gmra.mxu0 %v871
  %v913 = vpop.f32.mrf.mxu0
  %v914 = vadd.f32 %v875, %v913
  %v915 = vpop.f32.mrf.mxu0
  %v916 = vadd.f32 %v876, %v915
  %v917 = vpop.f32.mrf.mxu0
  %v918 = vpop.f32.mrf.mxu0
  %919 = vdwg.mxu0
  %920 = vmatprep.subr.bf16.mxu0 %v201
  %921 = vmatpush1.bf16.msra.mxu0 %v200
  %922 = vmatprep.subr.bf16.mxu0 %v197
  %923 = vmatpush1.bf16.msra.mxu0 %v196
  %924 = vmatprep.subr.bf16.mxu0 %v193
  %925 = vmatpush1.bf16.msra.mxu0 %v192
  %926 = vmatprep.subr.bf16.mxu0 %v189
  %927 = vmatpush1.bf16.msra.mxu0 %v188
  %928 = vmatprep.subr.bf16.mxu0 %v185
  %929 = vmatpush1.bf16.msra.mxu0 %v184
  %930 = vmatprep.subr.bf16.mxu0 %v181
  %931 = vmatpush1.bf16.msra.mxu0 %v180
  %932 = vmatprep.subr.bf16.mxu0 %v177
  %933 = vmatpush1.bf16.msra.mxu0 %v176
  %934 = vmatprep.subr.bf16.mxu0 %v173
  %935 = vmatpush1.bf16.msra.mxu0 %v172
  %936 = vmatprep.subr.bf16.mxu0 0
  %937 = vmatpush2.bf16.msra.mxu0 0
  %938 = vmatprep.subr.bf16.mxu0 0
  %939 = vmatpush2.bf16.msra.mxu0 0
  %940 = vmatprep.subr.bf16.mxu0 0
  %941 = vmatpush2.bf16.msra.mxu0 0
  %942 = vmatprep.subr.bf16.mxu0 0
  %943 = vmatpush2.bf16.msra.mxu0 0
  %944 = vmatprep.subr.bf16.mxu0 0
  %945 = vmatpush2.bf16.msra.mxu0 0
  %946 = vmatprep.subr.bf16.mxu0 0
  %947 = vmatpush2.bf16.msra.mxu0 0
  %948 = vmatprep.subr.bf16.mxu0 0
  %949 = vmatpush2.bf16.msra.mxu0 0
  %950 = vmatprep.subr.bf16.mxu0 0
  %951 = vmatpush2.bf16.msra.mxu0 0
  %952 = vmatprep.mubr.bf16.mxu0 0
  %953 = vmatmul.mubr.bf16.gmra.mxu0 %v871
  %v954 = vpop.f32.mrf.mxu0
  %v955 = vadd.f32 %v877, %v954
  %v956 = vpop.f32.mrf.mxu0
  %v957 = vadd.f32 %v878, %v956
  %v958 = vpop.f32.mrf.mxu0
  %v959 = vpop.f32.mrf.mxu0
  %960 = vdwg.mxu0
  %v961 = vadd.f32 %v914, %v320
  %v962 = vadd.f32 %v916, %v324
  %v963 = vadd.f32 %v955, %v328
  %v964 = vadd.f32 %v957, %v332
  %v965 = vxor.u32 %v961, 2147483648
  %v966 = vmul.f32 %v965, 1.442695
  %v967 = vpow.pop %v966
  %v968 = vadd.f32 %v967, 1.0
  %v969 = vrcp.pop %v968
  %v970 = vmul.f32 1.0, %v969
  %v971 = vxor.u32 %v962, 2147483648
  %v972 = vmul.f32 %v971, 1.442695
  %v973 = vpow.pop %v972
  %v974 = vadd.f32 %v973, 1.0
  %v975 = vrcp.pop %v974
  %v976 = vmul.f32 1.0, %v975
  %v977 = vtanh.pop %v963
  %v978 = vxor.u32 %v964, 2147483648
  %v979 = vmul.f32 %v978, 1.442695
  %v980 = vpow.pop %v979
  %v981 = vadd.f32 %v980, 1.0
  %v982 = vrcp.pop %v981
  %v983 = vmul.f32 1.0, %v982
  %v984 = vmul.f32 %v976, %v870
  %v985 = vmul.f32 %v970, %v977
  %v986 = vadd.f32 %v984, %v985
  %v987 = vtanh.pop %v986
  %v988 = vmul.f32 %v983, %v987
  %989 = vst [vmem:[#allocation2] sm:$0xff] %v988
  %990 = vst [vmem:[#allocation3] sm:$0xff] %v986
  %v991 = vpack.c.bf16 %v988, %v988
  %s992 = scalar_lea.vmem %s5, 20
  %993 = vst [vmem:[%s992] sm:$0xf] %v991
  %v994 = vld [vmem:[#allocation2] sm:$0xff]
  %v995 = vld [vmem:[#allocation3] sm:$0xff]
  %v996 = vpack.c.bf16 %v994, %v994
  %s997 = scalar_lea.vmem %s0, 96
  %v998 = vld [vmem:[%s997] sm:$0xff]
  %v999 = vld [vmem:[%s997 + $0x8] sm:$0xff]
  %v1000 = vunpack.c.l.bf16 %v998
  %v1001 = vunpack.c.h.bf16 %v998
  %v1002 = vunpack.c.l.bf16 %v999
  %v1003 = vunpack.c.h.bf16 %v999
  %1004 = vmatprep.subr.bf16.mxu0 %v199
  %1005 = vmatpush1.bf16.msra.mxu0 %v198
  %1006 = vmatprep.subr.bf16.mxu0 %v195
  %1007 = vmatpush1.bf16.msra.mxu0 %v194
  %1008 = vmatprep.subr.bf16.mxu0 %v191
  %1009 = vmatpush1.bf16.msra.mxu0 %v190
  %1010 = vmatprep.subr.bf16.mxu0 %v187
  %1011 = vmatpush1.bf16.msra.mxu0 %v186
  %1012 = vmatprep.subr.bf16.mxu0 %v183
  %1013 = vmatpush1.bf16.msra.mxu0 %v182
  %1014 = vmatprep.subr.bf16.mxu0 %v179
  %1015 = vmatpush1.bf16.msra.mxu0 %v178
  %1016 = vmatprep.subr.bf16.mxu0 %v175
  %1017 = vmatpush1.bf16.msra.mxu0 %v174
  %1018 = vmatprep.subr.bf16.mxu0 %v171
  %1019 = vmatpush1.bf16.msra.mxu0 %v170
  %1020 = vmatprep.subr.bf16.mxu0 0
  %1021 = vmatpush2.bf16.msra.mxu0 0
  %1022 = vmatprep.subr.bf16.mxu0 0
  %1023 = vmatpush2.bf16.msra.mxu0 0
  %1024 = vmatprep.subr.bf16.mxu0 0
  %1025 = vmatpush2.bf16.msra.mxu0 0
  %1026 = vmatprep.subr.bf16.mxu0 0
  %1027 = vmatpush2.bf16.msra.mxu0 0
  %1028 = vmatprep.subr.bf16.mxu0 0
  %1029 = vmatpush2.bf16.msra.mxu0 0
  %1030 = vmatprep.subr.bf16.mxu0 0
  %1031 = vmatpush2.bf16.msra.mxu0 0
  %1032 = vmatprep.subr.bf16.mxu0 0
  %1033 = vmatpush2.bf16.msra.mxu0 0
  %1034 = vmatprep.subr.bf16.mxu0 0
  %1035 = vmatpush2.bf16.msra.mxu0 0
  %1036 = vmatprep.mubr.bf16.mxu0 0
  %1037 = vmatmul.mubr.bf16.gmra.mxu0 %v996
  %v1038 = vpop.f32.mrf.mxu0
  %v1039 = vadd.f32 %v1000, %v1038
  %v1040 = vpop.f32.mrf.mxu0
  %v1041 = vadd.f32 %v1001, %v1040
  %v1042 = vpop.f32.mrf.mxu0
  %v1043 = vpop.f32.mrf.mxu0
  %1044 = vdwg.mxu0
  %1045 = vmatprep.subr.bf16.mxu0 %v201
  %1046 = vmatpush1.bf16.msra.mxu0 %v200
  %1047 = vmatprep.subr.bf16.mxu0 %v197
  %1048 = vmatpush1.bf16.msra.mxu0 %v196
  %1049 = vmatprep.subr.bf16.mxu0 %v193
  %1050 = vmatpush1.bf16.msra.mxu0 %v192
  %1051 = vmatprep.subr.bf16.mxu0 %v189
  %1052 = vmatpush1.bf16.msra.mxu0 %v188
  %1053 = vmatprep.subr.bf16.mxu0 %v185
  %1054 = vmatpush1.bf16.msra.mxu0 %v184
  %1055 = vmatprep.subr.bf16.mxu0 %v181
  %1056 = vmatpush1.bf16.msra.mxu0 %v180
  %1057 = vmatprep.subr.bf16.mxu0 %v177
  %1058 = vmatpush1.bf16.msra.mxu0 %v176
  %1059 = vmatprep.subr.bf16.mxu0 %v173
  %1060 = vmatpush1.bf16.msra.mxu0 %v172
  %1061 = vmatprep.subr.bf16.mxu0 0
  %1062 = vmatpush2.bf16.msra.mxu0 0
  %1063 = vmatprep.subr.bf16.mxu0 0
  %1064 = vmatpush2.bf16.msra.mxu0 0
  %1065 = vmatprep.subr.bf16.mxu0 0
  %1066 = vmatpush2.bf16.msra.mxu0 0
  %1067 = vmatprep.subr.bf16.mxu0 0
  %1068 = vmatpush2.bf16.msra.mxu0 0
  %1069 = vmatprep.subr.bf16.mxu0 0
  %1070 = vmatpush2.bf16.msra.mxu0 0
  %1071 = vmatprep.subr.bf16.mxu0 0
  %1072 = vmatpush2.bf16.msra.mxu0 0
  %1073 = vmatprep.subr.bf16.mxu0 0
  %1074 = vmatpush2.bf16.msra.mxu0 0
  %1075 = vmatprep.subr.bf16.mxu0 0
  %1076 = vmatpush2.bf16.msra.mxu0 0
  %1077 = vmatprep.mubr.bf16.mxu0 0
  %1078 = vmatmul.mubr.bf16.gmra.mxu0 %v996
  %v1079 = vpop.f32.mrf.mxu0
  %v1080 = vadd.f32 %v1002, %v1079
  %v1081 = vpop.f32.mrf.mxu0
  %v1082 = vadd.f32 %v1003, %v1081
  %v1083 = vpop.f32.mrf.mxu0
  %v1084 = vpop.f32.mrf.mxu0
  %1085 = vdwg.mxu0
  %v1086 = vadd.f32 %v1039, %v320
  %v1087 = vadd.f32 %v1041, %v324
  %v1088 = vadd.f32 %v1080, %v328
  %v1089 = vadd.f32 %v1082, %v332
  %v1090 = vxor.u32 %v1086, 2147483648
  %v1091 = vmul.f32 %v1090, 1.442695
  %v1092 = vpow.pop %v1091
  %v1093 = vadd.f32 %v1092, 1.0
  %v1094 = vrcp.pop %v1093
  %v1095 = vmul.f32 1.0, %v1094
  %v1096 = vxor.u32 %v1087, 2147483648
  %v1097 = vmul.f32 %v1096, 1.442695
  %v1098 = vpow.pop %v1097
  %v1099 = vadd.f32 %v1098, 1.0
  %v1100 = vrcp.pop %v1099
  %v1101 = vmul.f32 1.0, %v1100
  %v1102 = vtanh.pop %v1088
  %v1103 = vxor.u32 %v1089, 2147483648
  %v1104 = vmul.f32 %v1103, 1.442695
  %v1105 = vpow.pop %v1104
  %v1106 = vadd.f32 %v1105, 1.0
  %v1107 = vrcp.pop %v1106
  %v1108 = vmul.f32 1.0, %v1107
  %v1109 = vmul.f32 %v1101, %v995
  %v1110 = vmul.f32 %v1095, %v1102
  %v1111 = vadd.f32 %v1109, %v1110
  %v1112 = vtanh.pop %v1111
  %v1113 = vmul.f32 %v1108, %v1112
  %1114 = vst [vmem:[#allocation2] sm:$0xff] %v1113
  %1115 = vst [vmem:[#allocation3] sm:$0xff] %v1111
  %v1116 = vpack.c.bf16 %v1113, %v1113
  %s1117 = scalar_lea.vmem %s5, 24
  %1118 = vst [vmem:[%s1117] sm:$0xf] %v1116
  %v1119 = vld [vmem:[#allocation2] sm:$0xff]
  %v1120 = vld [vmem:[#allocation3] sm:$0xff]
  %v1121 = vpack.c.bf16 %v1119, %v1119
  %s1122 = scalar_lea.vmem %s0, 112
  %v1123 = vld [vmem:[%s1122] sm:$0xff]
  %v1124 = vld [vmem:[%s1122 + $0x8] sm:$0xff]
  %v1125 = vunpack.c.l.bf16 %v1123
  %v1126 = vunpack.c.h.bf16 %v1123
  %v1127 = vunpack.c.l.bf16 %v1124
  %v1128 = vunpack.c.h.bf16 %v1124
  %1129 = vmatprep.subr.bf16.mxu0 %v199
  %1130 = vmatpush1.bf16.msra.mxu0 %v198
  %1131 = vmatprep.subr.bf16.mxu0 %v195
  %1132 = vmatpush1.bf16.msra.mxu0 %v194
  %1133 = vmatprep.subr.bf16.mxu0 %v191
  %1134 = vmatpush1.bf16.msra.mxu0 %v190
  %1135 = vmatprep.subr.bf16.mxu0 %v187
  %1136 = vmatpush1.bf16.msra.mxu0 %v186
  %1137 = vmatprep.subr.bf16.mxu0 %v183
  %1138 = vmatpush1.bf16.msra.mxu0 %v182
  %1139 = vmatprep.subr.bf16.mxu0 %v179
  %1140 = vmatpush1.bf16.msra.mxu0 %v178
  %1141 = vmatprep.subr.bf16.mxu0 %v175
  %1142 = vmatpush1.bf16.msra.mxu0 %v174
  %1143 = vmatprep.subr.bf16.mxu0 %v171
  %1144 = vmatpush1.bf16.msra.mxu0 %v170
  %1145 = vmatprep.subr.bf16.mxu0 0
  %1146 = vmatpush2.bf16.msra.mxu0 0
  %1147 = vmatprep.subr.bf16.mxu0 0
  %1148 = vmatpush2.bf16.msra.mxu0 0
  %1149 = vmatprep.subr.bf16.mxu0 0
  %1150 = vmatpush2.bf16.msra.mxu0 0
  %1151 = vmatprep.subr.bf16.mxu0 0
  %1152 = vmatpush2.bf16.msra.mxu0 0
  %1153 = vmatprep.subr.bf16.mxu0 0
  %1154 = vmatpush2.bf16.msra.mxu0 0
  %1155 = vmatprep.subr.bf16.mxu0 0
  %1156 = vmatpush2.bf16.msra.mxu0 0
  %1157 = vmatprep.subr.bf16.mxu0 0
  %1158 = vmatpush2.bf16.msra.mxu0 0
  %1159 = vmatprep.subr.bf16.mxu0 0
  %1160 = vmatpush2.bf16.msra.mxu0 0
  %1161 = vmatprep.mubr.bf16.mxu0 0
  %1162 = vmatmul.mubr.bf16.gmra.mxu0 %v1121
  %v1163 = vpop.f32.mrf.mxu0
  %v1164 = vadd.f32 %v1125, %v1163
  %v1165 = vpop.f32.mrf.mxu0
  %v1166 = vadd.f32 %v1126, %v1165
  %v1167 = vpop.f32.mrf.mxu0
  %v1168 = vpop.f32.mrf.mxu0
  %1169 = vdwg.mxu0
  %1170 = vmatprep.subr.bf16.mxu0 %v201
  %1171 = vmatpush1.bf16.msra.mxu0 %v200
  %1172 = vmatprep.subr.bf16.mxu0 %v197
  %1173 = vmatpush1.bf16.msra.mxu0 %v196
  %1174 = vmatprep.subr.bf16.mxu0 %v193
  %1175 = vmatpush1.bf16.msra.mxu0 %v192
  %1176 = vmatprep.subr.bf16.mxu0 %v189
  %1177 = vmatpush1.bf16.msra.mxu0 %v188
  %1178 = vmatprep.subr.bf16.mxu0 %v185
  %1179 = vmatpush1.bf16.msra.mxu0 %v184
  %1180 = vmatprep.subr.bf16.mxu0 %v181
  %1181 = vmatpush1.bf16.msra.mxu0 %v180
  %1182 = vmatprep.subr.bf16.mxu0 %v177
  %1183 = vmatpush1.bf16.msra.mxu0 %v176
  %1184 = vmatprep.subr.bf16.mxu0 %v173
  %1185 = vmatpush1.bf16.msra.mxu0 %v172
  %1186 = vmatprep.subr.bf16.mxu0 0
  %1187 = vmatpush2.bf16.msra.mxu0 0
  %1188 = vmatprep.subr.bf16.mxu0 0
  %1189 = vmatpush2.bf16.msra.mxu0 0
  %1190 = vmatprep.subr.bf16.mxu0 0
  %1191 = vmatpush2.bf16.msra.mxu0 0
  %1192 = vmatprep.subr.bf16.mxu0 0
  %1193 = vmatpush2.bf16.msra.mxu0 0
  %1194 = vmatprep.subr.bf16.mxu0 0
  %1195 = vmatpush2.bf16.msra.mxu0 0
  %1196 = vmatprep.subr.bf16.mxu0 0
  %1197 = vmatpush2.bf16.msra.mxu0 0
  %1198 = vmatprep.subr.bf16.mxu0 0
  %1199 = vmatpush2.bf16.msra.mxu0 0
  %1200 = vmatprep.subr.bf16.mxu0 0
  %1201 = vmatpush2.bf16.msra.mxu0 0
  %1202 = vmatprep.mubr.bf16.mxu0 0
  %1203 = vmatmul.mubr.bf16.gmra.mxu0 %v1121
  %v1204 = vpop.f32.mrf.mxu0
  %v1205 = vadd.f32 %v1127, %v1204
  %v1206 = vpop.f32.mrf.mxu0
  %v1207 = vadd.f32 %v1128, %v1206
  %v1208 = vpop.f32.mrf.mxu0
  %v1209 = vpop.f32.mrf.mxu0
  %1210 = vdwg.mxu0
  %v1211 = vadd.f32 %v1164, %v320
  %v1212 = vadd.f32 %v1166, %v324
  %v1213 = vadd.f32 %v1205, %v328
  %v1214 = vadd.f32 %v1207, %v332
  %v1215 = vxor.u32 %v1211, 2147483648
  %v1216 = vmul.f32 %v1215, 1.442695
  %v1217 = vpow.pop %v1216
  %v1218 = vadd.f32 %v1217, 1.0
  %v1219 = vrcp.pop %v1218
  %v1220 = vmul.f32 1.0, %v1219
  %v1221 = vxor.u32 %v1212, 2147483648
  %v1222 = vmul.f32 %v1221, 1.442695
  %v1223 = vpow.pop %v1222
  %v1224 = vadd.f32 %v1223, 1.0
  %v1225 = vrcp.pop %v1224
  %v1226 = vmul.f32 1.0, %v1225
  %v1227 = vtanh.pop %v1213
  %v1228 = vxor.u32 %v1214, 2147483648
  %v1229 = vmul.f32 %v1228, 1.442695
  %v1230 = vpow.pop %v1229
  %v1231 = vadd.f32 %v1230, 1.0
  %v1232 = vrcp.pop %v1231
  %v1233 = vmul.f32 1.0, %v1232
  %v1234 = vmul.f32 %v1226, %v1120
  %v1235 = vmul.f32 %v1220, %v1227
  %v1236 = vadd.f32 %v1234, %v1235
  %v1237 = vtanh.pop %v1236
  %v1238 = vmul.f32 %v1233, %v1237
  %1239 = vst [vmem:[#allocation2] sm:$0xff] %v1238
  %1240 = vst [vmem:[#allocation3] sm:$0xff] %v1236
  %v1241 = vpack.c.bf16 %v1238, %v1238
  %s1242 = scalar_lea.vmem %s5, 28
  %1243 = vst [vmem:[%s1242] sm:$0xf] %v1241
  %v1244 = vld [vmem:[#allocation2] sm:$0xff]
  %v1245 = vld [vmem:[#allocation3] sm:$0xff]
  %v1246 = vpack.c.bf16 %v1244, %v1244
  %s1247 = scalar_lea.vmem %s0, 128
  %v1248 = vld [vmem:[%s1247] sm:$0xff]
  %v1249 = vld [vmem:[%s1247 + $0x8] sm:$0xff]
  %v1250 = vunpack.c.l.bf16 %v1248
  %v1251 = vunpack.c.h.bf16 %v1248
  %v1252 = vunpack.c.l.bf16 %v1249
  %v1253 = vunpack.c.h.bf16 %v1249
  %1254 = vmatprep.subr.bf16.mxu0 %v199
  %1255 = vmatpush1.bf16.msra.mxu0 %v198
  %1256 = vmatprep.subr.bf16.mxu0 %v195
  %1257 = vmatpush1.bf16.msra.mxu0 %v194
  %1258 = vmatprep.subr.bf16.mxu0 %v191
  %1259 = vmatpush1.bf16.msra.mxu0 %v190
  %1260 = vmatprep.subr.bf16.mxu0 %v187
  %1261 = vmatpush1.bf16.msra.mxu0 %v186
  %1262 = vmatprep.subr.bf16.mxu0 %v183
  %1263 = vmatpush1.bf16.msra.mxu0 %v182
  %1264 = vmatprep.subr.bf16.mxu0 %v179
  %1265 = vmatpush1.bf16.msra.mxu0 %v178
  %1266 = vmatprep.subr.bf16.mxu0 %v175
  %1267 = vmatpush1.bf16.msra.mxu0 %v174
  %1268 = vmatprep.subr.bf16.mxu0 %v171
  %1269 = vmatpush1.bf16.msra.mxu0 %v170
  %1270 = vmatprep.subr.bf16.mxu0 0
  %1271 = vmatpush2.bf16.msra.mxu0 0
  %1272 = vmatprep.subr.bf16.mxu0 0
  %1273 = vmatpush2.bf16.msra.mxu0 0
  %1274 = vmatprep.subr.bf16.mxu0 0
  %1275 = vmatpush2.bf16.msra.mxu0 0
  %1276 = vmatprep.subr.bf16.mxu0 0
  %1277 = vmatpush2.bf16.msra.mxu0 0
  %1278 = vmatprep.subr.bf16.mxu0 0
  %1279 = vmatpush2.bf16.msra.mxu0 0
  %1280 = vmatprep.subr.bf16.mxu0 0
  %1281 = vmatpush2.bf16.msra.mxu0 0
  %1282 = vmatprep.subr.bf16.mxu0 0
  %1283 = vmatpush2.bf16.msra.mxu0 0
  %1284 = vmatprep.subr.bf16.mxu0 0
  %1285 = vmatpush2.bf16.msra.mxu0 0
  %1286 = vmatprep.mubr.bf16.mxu0 0
  %1287 = vmatmul.mubr.bf16.gmra.mxu0 %v1246
  %v1288 = vpop.f32.mrf.mxu0
  %v1289 = vadd.f32 %v1250, %v1288
  %v1290 = vpop.f32.mrf.mxu0
  %v1291 = vadd.f32 %v1251, %v1290
  %v1292 = vpop.f32.mrf.mxu0
  %v1293 = vpop.f32.mrf.mxu0
  %1294 = vdwg.mxu0
  %1295 = vmatprep.subr.bf16.mxu0 %v201
  %1296 = vmatpush1.bf16.msra.mxu0 %v200
  %1297 = vmatprep.subr.bf16.mxu0 %v197
  %1298 = vmatpush1.bf16.msra.mxu0 %v196
  %1299 = vmatprep.subr.bf16.mxu0 %v193
  %1300 = vmatpush1.bf16.msra.mxu0 %v192
  %1301 = vmatprep.subr.bf16.mxu0 %v189
  %1302 = vmatpush1.bf16.msra.mxu0 %v188
  %1303 = vmatprep.subr.bf16.mxu0 %v185
  %1304 = vmatpush1.bf16.msra.mxu0 %v184
  %1305 = vmatprep.subr.bf16.mxu0 %v181
  %1306 = vmatpush1.bf16.msra.mxu0 %v180
  %1307 = vmatprep.subr.bf16.mxu0 %v177
  %1308 = vmatpush1.bf16.msra.mxu0 %v176
  %1309 = vmatprep.subr.bf16.mxu0 %v173
  %1310 = vmatpush1.bf16.msra.mxu0 %v172
  %1311 = vmatprep.subr.bf16.mxu0 0
  %1312 = vmatpush2.bf16.msra.mxu0 0
  %1313 = vmatprep.subr.bf16.mxu0 0
  %1314 = vmatpush2.bf16.msra.mxu0 0
  %1315 = vmatprep.subr.bf16.mxu0 0
  %1316 = vmatpush2.bf16.msra.mxu0 0
  %1317 = vmatprep.subr.bf16.mxu0 0
  %1318 = vmatpush2.bf16.msra.mxu0 0
  %1319 = vmatprep.subr.bf16.mxu0 0
  %1320 = vmatpush2.bf16.msra.mxu0 0
  %1321 = vmatprep.subr.bf16.mxu0 0
  %1322 = vmatpush2.bf16.msra.mxu0 0
  %1323 = vmatprep.subr.bf16.mxu0 0
  %1324 = vmatpush2.bf16.msra.mxu0 0
  %1325 = vmatprep.subr.bf16.mxu0 0
  %1326 = vmatpush2.bf16.msra.mxu0 0
  %1327 = vmatprep.mubr.bf16.mxu0 0
  %1328 = vmatmul.mubr.bf16.gmra.mxu0 %v1246
  %v1329 = vpop.f32.mrf.mxu0
  %v1330 = vadd.f32 %v1252, %v1329
  %v1331 = vpop.f32.mrf.mxu0
  %v1332 = vadd.f32 %v1253, %v1331
  %v1333 = vpop.f32.mrf.mxu0
  %v1334 = vpop.f32.mrf.mxu0
  %1335 = vdwg.mxu0
  %v1336 = vadd.f32 %v1289, %v320
  %v1337 = vadd.f32 %v1291, %v324
  %v1338 = vadd.f32 %v1330, %v328
  %v1339 = vadd.f32 %v1332, %v332
  %v1340 = vxor.u32 %v1336, 2147483648
  %v1341 = vmul.f32 %v1340, 1.442695
  %v1342 = vpow.pop %v1341
  %v1343 = vadd.f32 %v1342, 1.0
  %v1344 = vrcp.pop %v1343
  %v1345 = vmul.f32 1.0, %v1344
  %v1346 = vxor.u32 %v1337, 2147483648
  %v1347 = vmul.f32 %v1346, 1.442695
  %v1348 = vpow.pop %v1347
  %v1349 = vadd.f32 %v1348, 1.0
  %v1350 = vrcp.pop %v1349
  %v1351 = vmul.f32 1.0, %v1350
  %v1352 = vtanh.pop %v1338
  %v1353 = vxor.u32 %v1339, 2147483648
  %v1354 = vmul.f32 %v1353, 1.442695
  %v1355 = vpow.pop %v1354
  %v1356 = vadd.f32 %v1355, 1.0
  %v1357 = vrcp.pop %v1356
  %v1358 = vmul.f32 1.0, %v1357
  %v1359 = vmul.f32 %v1351, %v1245
  %v1360 = vmul.f32 %v1345, %v1352
  %v1361 = vadd.f32 %v1359, %v1360
  %v1362 = vtanh.pop %v1361
  %v1363 = vmul.f32 %v1358, %v1362
  %1364 = vst [vmem:[#allocation2] sm:$0xff] %v1363
  %1365 = vst [vmem:[#allocation3] sm:$0xff] %v1361
  %v1366 = vpack.c.bf16 %v1363, %v1363
  %s1367 = scalar_lea.vmem %s5, 32
  %1368 = vst [vmem:[%s1367] sm:$0xf] %v1366
  %v1369 = vld [vmem:[#allocation2] sm:$0xff]
  %v1370 = vld [vmem:[#allocation3] sm:$0xff]
  %v1371 = vpack.c.bf16 %v1369, %v1369
  %s1372 = scalar_lea.vmem %s0, 144
  %v1373 = vld [vmem:[%s1372] sm:$0xff]
  %v1374 = vld [vmem:[%s1372 + $0x8] sm:$0xff]
  %v1375 = vunpack.c.l.bf16 %v1373
  %v1376 = vunpack.c.h.bf16 %v1373
  %v1377 = vunpack.c.l.bf16 %v1374
  %v1378 = vunpack.c.h.bf16 %v1374
  %1379 = vmatprep.subr.bf16.mxu0 %v199
  %1380 = vmatpush1.bf16.msra.mxu0 %v198
  %1381 = vmatprep.subr.bf16.mxu0 %v195
  %1382 = vmatpush1.bf16.msra.mxu0 %v194
  %1383 = vmatprep.subr.bf16.mxu0 %v191
  %1384 = vmatpush1.bf16.msra.mxu0 %v190
  %1385 = vmatprep.subr.bf16.mxu0 %v187
  %1386 = vmatpush1.bf16.msra.mxu0 %v186
  %1387 = vmatprep.subr.bf16.mxu0 %v183
  %1388 = vmatpush1.bf16.msra.mxu0 %v182
  %1389 = vmatprep.subr.bf16.mxu0 %v179
  %1390 = vmatpush1.bf16.msra.mxu0 %v178
  %1391 = vmatprep.subr.bf16.mxu0 %v175
  %1392 = vmatpush1.bf16.msra.mxu0 %v174
  %1393 = vmatprep.subr.bf16.mxu0 %v171
  %1394 = vmatpush1.bf16.msra.mxu0 %v170
  %1395 = vmatprep.subr.bf16.mxu0 0
  %1396 = vmatpush2.bf16.msra.mxu0 0
  %1397 = vmatprep.subr.bf16.mxu0 0
  %1398 = vmatpush2.bf16.msra.mxu0 0
  %1399 = vmatprep.subr.bf16.mxu0 0
  %1400 = vmatpush2.bf16.msra.mxu0 0
  %1401 = vmatprep.subr.bf16.mxu0 0
  %1402 = vmatpush2.bf16.msra.mxu0 0
  %1403 = vmatprep.subr.bf16.mxu0 0
  %1404 = vmatpush2.bf16.msra.mxu0 0
  %1405 = vmatprep.subr.bf16.mxu0 0
  %1406 = vmatpush2.bf16.msra.mxu0 0
  %1407 = vmatprep.subr.bf16.mxu0 0
  %1408 = vmatpush2.bf16.msra.mxu0 0
  %1409 = vmatprep.subr.bf16.mxu0 0
  %1410 = vmatpush2.bf16.msra.mxu0 0
  %1411 = vmatprep.mubr.bf16.mxu0 0
  %1412 = vmatmul.mubr.bf16.gmra.mxu0 %v1371
  %v1413 = vpop.f32.mrf.mxu0
  %v1414 = vadd.f32 %v1375, %v1413
  %v1415 = vpop.f32.mrf.mxu0
  %v1416 = vadd.f32 %v1376, %v1415
  %v1417 = vpop.f32.mrf.mxu0
  %v1418 = vpop.f32.mrf.mxu0
  %1419 = vdwg.mxu0
  %1420 = vmatprep.subr.bf16.mxu0 %v201
  %1421 = vmatpush1.bf16.msra.mxu0 %v200
  %1422 = vmatprep.subr.bf16.mxu0 %v197
  %1423 = vmatpush1.bf16.msra.mxu0 %v196
  %1424 = vmatprep.subr.bf16.mxu0 %v193
  %1425 = vmatpush1.bf16.msra.mxu0 %v192
  %1426 = vmatprep.subr.bf16.mxu0 %v189
  %1427 = vmatpush1.bf16.msra.mxu0 %v188
  %1428 = vmatprep.subr.bf16.mxu0 %v185
  %1429 = vmatpush1.bf16.msra.mxu0 %v184
  %1430 = vmatprep.subr.bf16.mxu0 %v181
  %1431 = vmatpush1.bf16.msra.mxu0 %v180
  %1432 = vmatprep.subr.bf16.mxu0 %v177
  %1433 = vmatpush1.bf16.msra.mxu0 %v176
  %1434 = vmatprep.subr.bf16.mxu0 %v173
  %1435 = vmatpush1.bf16.msra.mxu0 %v172
  %1436 = vmatprep.subr.bf16.mxu0 0
  %1437 = vmatpush2.bf16.msra.mxu0 0
  %1438 = vmatprep.subr.bf16.mxu0 0
  %1439 = vmatpush2.bf16.msra.mxu0 0
  %1440 = vmatprep.subr.bf16.mxu0 0
  %1441 = vmatpush2.bf16.msra.mxu0 0
  %1442 = vmatprep.subr.bf16.mxu0 0
  %1443 = vmatpush2.bf16.msra.mxu0 0
  %1444 = vmatprep.subr.bf16.mxu0 0
  %1445 = vmatpush2.bf16.msra.mxu0 0
  %1446 = vmatprep.subr.bf16.mxu0 0
  %1447 = vmatpush2.bf16.msra.mxu0 0
  %1448 = vmatprep.subr.bf16.mxu0 0
  %1449 = vmatpush2.bf16.msra.mxu0 0
  %1450 = vmatprep.subr.bf16.mxu0 0
  %1451 = vmatpush2.bf16.msra.mxu0 0
  %1452 = vmatprep.mubr.bf16.mxu0 0
  %1453 = vmatmul.mubr.bf16.gmra.mxu0 %v1371
  %v1454 = vpop.f32.mrf.mxu0
  %v1455 = vadd.f32 %v1377, %v1454
  %v1456 = vpop.f32.mrf.mxu0
  %v1457 = vadd.f32 %v1378, %v1456
  %v1458 = vpop.f32.mrf.mxu0
  %v1459 = vpop.f32.mrf.mxu0
  %1460 = vdwg.mxu0
  %v1461 = vadd.f32 %v1414, %v320
  %v1462 = vadd.f32 %v1416, %v324
  %v1463 = vadd.f32 %v1455, %v328
  %v1464 = vadd.f32 %v1457, %v332
  %v1465 = vxor.u32 %v1461, 2147483648
  %v1466 = vmul.f32 %v1465, 1.442695
  %v1467 = vpow.pop %v1466
  %v1468 = vadd.f32 %v1467, 1.0
  %v1469 = vrcp.pop %v1468
  %v1470 = vmul.f32 1.0, %v1469
  %v1471 = vxor.u32 %v1462, 2147483648
  %v1472 = vmul.f32 %v1471, 1.442695
  %v1473 = vpow.pop %v1472
  %v1474 = vadd.f32 %v1473, 1.0
  %v1475 = vrcp.pop %v1474
  %v1476 = vmul.f32 1.0, %v1475
  %v1477 = vtanh.pop %v1463
  %v1478 = vxor.u32 %v1464, 2147483648
  %v1479 = vmul.f32 %v1478, 1.442695
  %v1480 = vpow.pop %v1479
  %v1481 = vadd.f32 %v1480, 1.0
  %v1482 = vrcp.pop %v1481
  %v1483 = vmul.f32 1.0, %v1482
  %v1484 = vmul.f32 %v1476, %v1370
  %v1485 = vmul.f32 %v1470, %v1477
  %v1486 = vadd.f32 %v1484, %v1485
  %v1487 = vtanh.pop %v1486
  %v1488 = vmul.f32 %v1483, %v1487
  %1489 = vst [vmem:[#allocation2] sm:$0xff] %v1488
  %1490 = vst [vmem:[#allocation3] sm:$0xff] %v1486
  %v1491 = vpack.c.bf16 %v1488, %v1488
  %s1492 = scalar_lea.vmem %s5, 36
  %1493 = vst [vmem:[%s1492] sm:$0xf] %v1491
  %v1494 = vld [vmem:[#allocation2] sm:$0xff]
  %v1495 = vld [vmem:[#allocation3] sm:$0xff]
  %v1496 = vpack.c.bf16 %v1494, %v1494
  %s1497 = scalar_lea.vmem %s0, 160
  %v1498 = vld [vmem:[%s1497] sm:$0xff]
  %v1499 = vld [vmem:[%s1497 + $0x8] sm:$0xff]
  %v1500 = vunpack.c.l.bf16 %v1498
  %v1501 = vunpack.c.h.bf16 %v1498
  %v1502 = vunpack.c.l.bf16 %v1499
  %v1503 = vunpack.c.h.bf16 %v1499
  %1504 = vmatprep.subr.bf16.mxu0 %v199
  %1505 = vmatpush1.bf16.msra.mxu0 %v198
  %1506 = vmatprep.subr.bf16.mxu0 %v195
  %1507 = vmatpush1.bf16.msra.mxu0 %v194
  %1508 = vmatprep.subr.bf16.mxu0 %v191
  %1509 = vmatpush1.bf16.msra.mxu0 %v190
  %1510 = vmatprep.subr.bf16.mxu0 %v187
  %1511 = vmatpush1.bf16.msra.mxu0 %v186
  %1512 = vmatprep.subr.bf16.mxu0 %v183
  %1513 = vmatpush1.bf16.msra.mxu0 %v182
  %1514 = vmatprep.subr.bf16.mxu0 %v179
  %1515 = vmatpush1.bf16.msra.mxu0 %v178
  %1516 = vmatprep.subr.bf16.mxu0 %v175
  %1517 = vmatpush1.bf16.msra.mxu0 %v174
  %1518 = vmatprep.subr.bf16.mxu0 %v171
  %1519 = vmatpush1.bf16.msra.mxu0 %v170
  %1520 = vmatprep.subr.bf16.mxu0 0
  %1521 = vmatpush2.bf16.msra.mxu0 0
  %1522 = vmatprep.subr.bf16.mxu0 0
  %1523 = vmatpush2.bf16.msra.mxu0 0
  %1524 = vmatprep.subr.bf16.mxu0 0
  %1525 = vmatpush2.bf16.msra.mxu0 0
  %1526 = vmatprep.subr.bf16.mxu0 0
  %1527 = vmatpush2.bf16.msra.mxu0 0
  %1528 = vmatprep.subr.bf16.mxu0 0
  %1529 = vmatpush2.bf16.msra.mxu0 0
  %1530 = vmatprep.subr.bf16.mxu0 0
  %1531 = vmatpush2.bf16.msra.mxu0 0
  %1532 = vmatprep.subr.bf16.mxu0 0
  %1533 = vmatpush2.bf16.msra.mxu0 0
  %1534 = vmatprep.subr.bf16.mxu0 0
  %1535 = vmatpush2.bf16.msra.mxu0 0
  %1536 = vmatprep.mubr.bf16.mxu0 0
  %1537 = vmatmul.mubr.bf16.gmra.mxu0 %v1496
  %v1538 = vpop.f32.mrf.mxu0
  %v1539 = vadd.f32 %v1500, %v1538
  %v1540 = vpop.f32.mrf.mxu0
  %v1541 = vadd.f32 %v1501, %v1540
  %v1542 = vpop.f32.mrf.mxu0
  %v1543 = vpop.f32.mrf.mxu0
  %1544 = vdwg.mxu0
  %1545 = vmatprep.subr.bf16.mxu0 %v201
  %1546 = vmatpush1.bf16.msra.mxu0 %v200
  %1547 = vmatprep.subr.bf16.mxu0 %v197
  %1548 = vmatpush1.bf16.msra.mxu0 %v196
  %1549 = vmatprep.subr.bf16.mxu0 %v193
  %1550 = vmatpush1.bf16.msra.mxu0 %v192
  %1551 = vmatprep.subr.bf16.mxu0 %v189
  %1552 = vmatpush1.bf16.msra.mxu0 %v188
  %1553 = vmatprep.subr.bf16.mxu0 %v185
  %1554 = vmatpush1.bf16.msra.mxu0 %v184
  %1555 = vmatprep.subr.bf16.mxu0 %v181
  %1556 = vmatpush1.bf16.msra.mxu0 %v180
  %1557 = vmatprep.subr.bf16.mxu0 %v177
  %1558 = vmatpush1.bf16.msra.mxu0 %v176
  %1559 = vmatprep.subr.bf16.mxu0 %v173
  %1560 = vmatpush1.bf16.msra.mxu0 %v172
  %1561 = vmatprep.subr.bf16.mxu0 0
  %1562 = vmatpush2.bf16.msra.mxu0 0
  %1563 = vmatprep.subr.bf16.mxu0 0
  %1564 = vmatpush2.bf16.msra.mxu0 0
  %1565 = vmatprep.subr.bf16.mxu0 0
  %1566 = vmatpush2.bf16.msra.mxu0 0
  %1567 = vmatprep.subr.bf16.mxu0 0
  %1568 = vmatpush2.bf16.msra.mxu0 0
  %1569 = vmatprep.subr.bf16.mxu0 0
  %1570 = vmatpush2.bf16.msra.mxu0 0
  %1571 = vmatprep.subr.bf16.mxu0 0
  %1572 = vmatpush2.bf16.msra.mxu0 0
  %1573 = vmatprep.subr.bf16.mxu0 0
  %1574 = vmatpush2.bf16.msra.mxu0 0
  %1575 = vmatprep.subr.bf16.mxu0 0
  %1576 = vmatpush2.bf16.msra.mxu0 0
  %1577 = vmatprep.mubr.bf16.mxu0 0
  %1578 = vmatmul.mubr.bf16.gmra.mxu0 %v1496
  %v1579 = vpop.f32.mrf.mxu0
  %v1580 = vadd.f32 %v1502, %v1579
  %v1581 = vpop.f32.mrf.mxu0
  %v1582 = vadd.f32 %v1503, %v1581
  %v1583 = vpop.f32.mrf.mxu0
  %v1584 = vpop.f32.mrf.mxu0
  %1585 = vdwg.mxu0
  %v1586 = vadd.f32 %v1539, %v320
  %v1587 = vadd.f32 %v1541, %v324
  %v1588 = vadd.f32 %v1580, %v328
  %v1589 = vadd.f32 %v1582, %v332
  %v1590 = vxor.u32 %v1586, 2147483648
  %v1591 = vmul.f32 %v1590, 1.442695
  %v1592 = vpow.pop %v1591
  %v1593 = vadd.f32 %v1592, 1.0
  %v1594 = vrcp.pop %v1593
  %v1595 = vmul.f32 1.0, %v1594
  %v1596 = vxor.u32 %v1587, 2147483648
  %v1597 = vmul.f32 %v1596, 1.442695
  %v1598 = vpow.pop %v1597
  %v1599 = vadd.f32 %v1598, 1.0
  %v1600 = vrcp.pop %v1599
  %v1601 = vmul.f32 1.0, %v1600
  %v1602 = vtanh.pop %v1588
  %v1603 = vxor.u32 %v1589, 2147483648
  %v1604 = vmul.f32 %v1603, 1.442695
  %v1605 = vpow.pop %v1604
  %v1606 = vadd.f32 %v1605, 1.0
  %v1607 = vrcp.pop %v1606
  %v1608 = vmul.f32 1.0, %v1607
  %v1609 = vmul.f32 %v1601, %v1495
  %v1610 = vmul.f32 %v1595, %v1602
  %v1611 = vadd.f32 %v1609, %v1610
  %v1612 = vtanh.pop %v1611
  %v1613 = vmul.f32 %v1608, %v1612
  %1614 = vst [vmem:[#allocation2] sm:$0xff] %v1613
  %1615 = vst [vmem:[#allocation3] sm:$0xff] %v1611
  %v1616 = vpack.c.bf16 %v1613, %v1613
  %s1617 = scalar_lea.vmem %s5, 40
  %1618 = vst [vmem:[%s1617] sm:$0xf] %v1616
  %v1619 = vld [vmem:[#allocation2] sm:$0xff]
  %v1620 = vld [vmem:[#allocation3] sm:$0xff]
  %v1621 = vpack.c.bf16 %v1619, %v1619
  %s1622 = scalar_lea.vmem %s0, 176
  %v1623 = vld [vmem:[%s1622] sm:$0xff]
  %v1624 = vld [vmem:[%s1622 + $0x8] sm:$0xff]
  %v1625 = vunpack.c.l.bf16 %v1623
  %v1626 = vunpack.c.h.bf16 %v1623
  %v1627 = vunpack.c.l.bf16 %v1624
  %v1628 = vunpack.c.h.bf16 %v1624
  %1629 = vmatprep.subr.bf16.mxu0 %v199
  %1630 = vmatpush1.bf16.msra.mxu0 %v198
  %1631 = vmatprep.subr.bf16.mxu0 %v195
  %1632 = vmatpush1.bf16.msra.mxu0 %v194
  %1633 = vmatprep.subr.bf16.mxu0 %v191
  %1634 = vmatpush1.bf16.msra.mxu0 %v190
  %1635 = vmatprep.subr.bf16.mxu0 %v187
  %1636 = vmatpush1.bf16.msra.mxu0 %v186
  %1637 = vmatprep.subr.bf16.mxu0 %v183
  %1638 = vmatpush1.bf16.msra.mxu0 %v182
  %1639 = vmatprep.subr.bf16.mxu0 %v179
  %1640 = vmatpush1.bf16.msra.mxu0 %v178
  %1641 = vmatprep.subr.bf16.mxu0 %v175
  %1642 = vmatpush1.bf16.msra.mxu0 %v174
  %1643 = vmatprep.subr.bf16.mxu0 %v171
  %1644 = vmatpush1.bf16.msra.mxu0 %v170
  %1645 = vmatprep.subr.bf16.mxu0 0
  %1646 = vmatpush2.bf16.msra.mxu0 0
  %1647 = vmatprep.subr.bf16.mxu0 0
  %1648 = vmatpush2.bf16.msra.mxu0 0
  %1649 = vmatprep.subr.bf16.mxu0 0
  %1650 = vmatpush2.bf16.msra.mxu0 0
  %1651 = vmatprep.subr.bf16.mxu0 0
  %1652 = vmatpush2.bf16.msra.mxu0 0
  %1653 = vmatprep.subr.bf16.mxu0 0
  %1654 = vmatpush2.bf16.msra.mxu0 0
  %1655 = vmatprep.subr.bf16.mxu0 0
  %1656 = vmatpush2.bf16.msra.mxu0 0
  %1657 = vmatprep.subr.bf16.mxu0 0
  %1658 = vmatpush2.bf16.msra.mxu0 0
  %1659 = vmatprep.subr.bf16.mxu0 0
  %1660 = vmatpush2.bf16.msra.mxu0 0
  %1661 = vmatprep.mubr.bf16.mxu0 0
  %1662 = vmatmul.mubr.bf16.gmra.mxu0 %v1621
  %v1663 = vpop.f32.mrf.mxu0
  %v1664 = vadd.f32 %v1625, %v1663
  %v1665 = vpop.f32.mrf.mxu0
  %v1666 = vadd.f32 %v1626, %v1665
  %v1667 = vpop.f32.mrf.mxu0
  %v1668 = vpop.f32.mrf.mxu0
  %1669 = vdwg.mxu0
  %1670 = vmatprep.subr.bf16.mxu0 %v201
  %1671 = vmatpush1.bf16.msra.mxu0 %v200
  %1672 = vmatprep.subr.bf16.mxu0 %v197
  %1673 = vmatpush1.bf16.msra.mxu0 %v196
  %1674 = vmatprep.subr.bf16.mxu0 %v193
  %1675 = vmatpush1.bf16.msra.mxu0 %v192
  %1676 = vmatprep.subr.bf16.mxu0 %v189
  %1677 = vmatpush1.bf16.msra.mxu0 %v188
  %1678 = vmatprep.subr.bf16.mxu0 %v185
  %1679 = vmatpush1.bf16.msra.mxu0 %v184
  %1680 = vmatprep.subr.bf16.mxu0 %v181
  %1681 = vmatpush1.bf16.msra.mxu0 %v180
  %1682 = vmatprep.subr.bf16.mxu0 %v177
  %1683 = vmatpush1.bf16.msra.mxu0 %v176
  %1684 = vmatprep.subr.bf16.mxu0 %v173
  %1685 = vmatpush1.bf16.msra.mxu0 %v172
  %1686 = vmatprep.subr.bf16.mxu0 0
  %1687 = vmatpush2.bf16.msra.mxu0 0
  %1688 = vmatprep.subr.bf16.mxu0 0
  %1689 = vmatpush2.bf16.msra.mxu0 0
  %1690 = vmatprep.subr.bf16.mxu0 0
  %1691 = vmatpush2.bf16.msra.mxu0 0
  %1692 = vmatprep.subr.bf16.mxu0 0
  %1693 = vmatpush2.bf16.msra.mxu0 0
  %1694 = vmatprep.subr.bf16.mxu0 0
  %1695 = vmatpush2.bf16.msra.mxu0 0
  %1696 = vmatprep.subr.bf16.mxu0 0
  %1697 = vmatpush2.bf16.msra.mxu0 0
  %1698 = vmatprep.subr.bf16.mxu0 0
  %1699 = vmatpush2.bf16.msra.mxu0 0
  %1700 = vmatprep.subr.bf16.mxu0 0
  %1701 = vmatpush2.bf16.msra.mxu0 0
  %1702 = vmatprep.mubr.bf16.mxu0 0
  %1703 = vmatmul.mubr.bf16.gmra.mxu0 %v1621
  %v1704 = vpop.f32.mrf.mxu0
  %v1705 = vadd.f32 %v1627, %v1704
  %v1706 = vpop.f32.mrf.mxu0
  %v1707 = vadd.f32 %v1628, %v1706
  %v1708 = vpop.f32.mrf.mxu0
  %v1709 = vpop.f32.mrf.mxu0
  %1710 = vdwg.mxu0
  %v1711 = vadd.f32 %v1664, %v320
  %v1712 = vadd.f32 %v1666, %v324
  %v1713 = vadd.f32 %v1705, %v328
  %v1714 = vadd.f32 %v1707, %v332
  %v1715 = vxor.u32 %v1711, 2147483648
  %v1716 = vmul.f32 %v1715, 1.442695
  %v1717 = vpow.pop %v1716
  %v1718 = vadd.f32 %v1717, 1.0
  %v1719 = vrcp.pop %v1718
  %v1720 = vmul.f32 1.0, %v1719
  %v1721 = vxor.u32 %v1712, 2147483648
  %v1722 = vmul.f32 %v1721, 1.442695
  %v1723 = vpow.pop %v1722
  %v1724 = vadd.f32 %v1723, 1.0
  %v1725 = vrcp.pop %v1724
  %v1726 = vmul.f32 1.0, %v1725
  %v1727 = vtanh.pop %v1713
  %v1728 = vxor.u32 %v1714, 2147483648
  %v1729 = vmul.f32 %v1728, 1.442695
  %v1730 = vpow.pop %v1729
  %v1731 = vadd.f32 %v1730, 1.0
  %v1732 = vrcp.pop %v1731
  %v1733 = vmul.f32 1.0, %v1732
  %v1734 = vmul.f32 %v1726, %v1620
  %v1735 = vmul.f32 %v1720, %v1727
  %v1736 = vadd.f32 %v1734, %v1735
  %v1737 = vtanh.pop %v1736
  %v1738 = vmul.f32 %v1733, %v1737
  %1739 = vst [vmem:[#allocation2] sm:$0xff] %v1738
  %1740 = vst [vmem:[#allocation3] sm:$0xff] %v1736
  %v1741 = vpack.c.bf16 %v1738, %v1738
  %s1742 = scalar_lea.vmem %s5, 44
  %1743 = vst [vmem:[%s1742] sm:$0xf] %v1741
  // Predicated region
  $region26: #{rnn_model_forward.2} parent=0 // pred_check
    %p1744 = pneg %p24
  $region27: #{rnn_model_forward.2} parent=0 // pred_check_branch
    %1746 = sbr.rel (%p1744) target = $region29
  $region28: #{rnn_model_forward.2} parent=0 // pred_region
    %v1747 = vld [vmem:[#allocation2] sm:$0xff]
    %1748 = vst [vmem:[%s6] sm:$0xff] %v1747
    %v1749 = vld [vmem:[#allocation3] sm:$0xff]
    %1750 = vst [vmem:[%s7] sm:$0xff] %v1749
  $region29: #{rnn_model_forward.2} parent=0 // pred_fallthru
    _
  // Predicated region
  $region30: #{rnn_model_forward.2} parent=0 // pred_check
    _
  $region31: #{rnn_model_forward.2} parent=0 // pred_check_branch
    %1752 = sbr.rel (0) target = $region33
  $region32: #{rnn_model_forward.2} parent=0 // pred_region
    _
  $region33: #{rnn_model_forward.2} parent=0 // pred_fallthru
    _
  // Predicated region
  $region34: #{rnn_model_forward.2} parent=0 // pred_check
    _
  $region35: #{rnn_model_forward.2} parent=0 // pred_check_branch
    %1754 = sbr.rel (0) target = $region37
  $region36: #{rnn_model_forward.2} parent=0 // pred_region
    _
  $region37: #{rnn_model_forward.2} parent=0 // pred_fallthru
    _
  // Predicated region
  $region38: #{rnn_model_forward.2} parent=0 // pred_check
    _
  $region39: #{rnn_model_forward.2} parent=0 // pred_check_branch
    %1756 = sbr.rel (0) target = $region41
  $region40: #{rnn_model_forward.2} parent=0 // pred_region
    _
  $region41: #{rnn_model_forward.2} parent=0 // pred_fallthru
    _
  // Predicated region
  $region42: #{rnn_model_forward.2} parent=0 // pred_check
    _
  $region43: #{rnn_model_forward.2} parent=0 // pred_check_branch
    %1758 = sbr.rel (0) target = $region45
  $region44: #{rnn_model_forward.2} parent=0 // pred_region
    _
  $region45: #{rnn_model_forward.2} parent=0 // pred_fallthru
    _
  // Predicated region
  $region46: #{rnn_model_forward.2} parent=0 // pred_check
    _
  $region47: #{rnn_model_forward.2} parent=0 // pred_check_branch
    %1760 = sbr.rel (0) target = $region49
  $region48: #{rnn_model_forward.2} parent=0 // pred_region
    _
  $region49: #{rnn_model_forward.2} parent=0 // pred_fallthru
    _
  // Predicated region
  $region50: #{rnn_model_forward.2} parent=0 // pred_check
    _
  $region51: #{rnn_model_forward.2} parent=0 // pred_check_branch
    %1762 = sbr.rel (0) target = $region53
  $region52: #{rnn_model_forward.2} parent=0 // pred_region
    _
  $region53: #{rnn_model_forward.2} parent=0 // pred_fallthru
    _

</llo_original>
